<compile_context>
chip_gen: v5e
topology: v5e:2x2
jax: 0.10.0
libtpu: 0.0.40
codegen_flags: <defaults>
</compile_context>

<pallas_src>
import functools

import numpy as np
import jax
import jax.numpy as jnp
from jax import lax
from jax.experimental import pallas as pl
from jax.experimental.pallas import tpu as pltpu


# ----------------------- static LeNet geometry (3x32x32) -------------------- #
_H0, _W0, _CIN = 32, 32, 3          # input (fc1 = Linear(16*5*5) implies 32x32)
_K = 5
_C1, _C2 = 6, 16
_H1, _W1 = _H0 - _K + 1, _W0 - _K + 1      # 28, 28
_H1P, _W1P = _H1 // 2, _W1 // 2            # 14, 14
_H2, _W2 = _H1P - _K + 1, _W1P - _K + 1    # 10, 10
_H2P, _W2P = _H2 // 2, _W2 // 2            # 5, 5
_F1, _F2 = 120, 84
_LANES = 128                               # every kernel column dim padded to this


def _round_up(x, m):
    return ((x + m - 1) // m) * m


# --------------------- weight restructuring (done once) --------------------- #

def _conv_as_banded_matrices(w, w_in):
    """PyTorch conv weight (Cout, Cin, K, K) -> K structured matrices.

    Kernel computes  acc[s, :] = sum_ki  act[s+ki(*stride), :] @ A[ki]  with
    activation rows laid out channel-major: act[h, ci*w_in + w].  Output
    columns are  parity*_LANES + co*Wp + wp  with wo = 2*wp + parity, so the
    2x2 max-pool over W is just max(acc[:, :128], acc[:, 128:]).
    """
    cout, cin, k, _ = w.shape
    wo_count = w_in - k + 1
    wp_count = wo_count // 2
    assert cin * w_in <= _LANES and cout * wp_count <= _LANES
    ki, kj, ci, co, wp, par = (a.ravel() for a in np.meshgrid(
        np.arange(k), np.arange(k), np.arange(cin), np.arange(cout),
        np.arange(wp_count), np.arange(2), indexing="ij"))
    wo = 2 * wp + par
    rows = ci * w_in + wo + kj                       # input column it multiplies
    cols = par * _LANES + co * wp_count + wp         # output column it feeds
    vals = w[co, ci, ki, kj].astype(jnp.float32)
    mats = jnp.zeros((k, _LANES, 2 * _LANES), jnp.float32)
    return mats.at[ki, rows, cols].set(vals)


def _fc1_banded_matrices(wf1):
    """fc1 weight (120, 400) reindexed so pooled-conv2 row h (cols = co*5+w)
    hits torch's flatten order co*25 + h*5 + w.  Shape (5, 128, 128), padded."""
    r = np.arange(_C2 * _W2P)
    r_co, r_w = r // _W2P, r % _W2P
    h = np.arange(_H2P)
    flat_idx = r_co[None, :] * (_H2P * _W2P) + h[:, None] * _W2P + r_w[None, :]
    vals = jnp.transpose(wf1[:, flat_idx], (1, 2, 0)).astype(jnp.float32)  # (5,80,120)
    out = jnp.zeros((_H2P, _LANES, _LANES), jnp.float32)
    return out.at[:, :_C2 * _W2P, :_F1].set(vals)


def _pad_2d(m, shape):
    out = jnp.zeros(shape, jnp.float32)
    return out.at[:m.shape[0], :m.shape[1]].set(m.astype(jnp.float32))


def _pad_row(v, width):
    return _pad_2d(v.reshape(1, -1), (1, width))


def prepare_params(p):
    """PyTorch-layout params -> kernel-ready (restructured, lane-padded) params."""
    num_classes = p["wf3"].shape[0]
    nc_pad = _round_up(num_classes, _LANES)
    return {
        "a1": _conv_as_banded_matrices(p["w1"], _W0),            # (5, 128, 256)
        "b1": _pad_row(jnp.repeat(p["b1"], _W1P), _LANES),       # (1, 128)
        "a2": _conv_as_banded_matrices(p["w2"], _W1P),           # (5, 128, 256)
        "b2": _pad_row(jnp.repeat(p["b2"], _W2P), _LANES),       # (1, 128)
        "wf1": _fc1_banded_matrices(p["wf1"]),                   # (5, 128, 128)
        "bf1": _pad_row(p["bf1"], _LANES),
        "wf2": _pad_2d(p["wf2"].T, (_LANES, _LANES)),
        "bf2": _pad_row(p["bf2"], _LANES),
        "wf3": _pad_2d(p["wf3"].T, (_LANES, nc_pad)),
        "bf3": _pad_row(p["bf3"], nc_pad),
    }


def _make_pool_row_select(nb):
    """0/1 matrix gathering, for every image b and pooled row hp, row
    32*b + 4*hp of the conv2-pooled slab into output row hp*nb + b.
    Built once on the host; one small MXU matmul inside the kernel."""
    rm2 = nb * _H0 - 15                        # rows of the m2 slab (see kernel)
    sel = np.zeros((_H2P * nb, rm2), np.float32)
    for hp in range(_H2P):
        for b in range(nb):
            sel[hp * nb + b, _H0 * b + 4 * hp] = 1.0
    return jnp.asarray(sel)


# ------------------------------ Pallas kernel ------------------------------- #

def _lenet_kernel(nb, x_ref, sel_ref, a1_ref, b1_ref, a2_ref, b2_ref,
                  wf1_ref, bf1_ref, wf2_ref, bf2_ref, wf3_ref, bf3_ref, o_ref):
    rows_in = nb * _H0
    x = x_ref[...]                                              # (nb*32, 128)

    # ---- conv1 (banded matmuls) + W-pool + bias + ReLU ----------------------
    r1 = rows_in - (_K - 1)
    acc = jnp.dot(x[0:r1, :], a1_ref[0], preferred_element_type=jnp.float32)
    for ki in range(1, _K):
        acc = acc + jnp.dot(x[ki:ki + r1, :], a1_ref[ki],
                            preferred_element_type=jnp.float32)
    y = jnp.maximum(acc[:, :_LANES], acc[:, _LANES:])           # max-pool over W
    y = jnp.maximum(y + b1_ref[...], 0.0)                       # bias + ReLU
    # H-pool: m1[s] = max(y[s], y[s+1]); pooled row hp of image b sits at
    # s = 32*b + 2*hp (stride-2 decimation is folded into conv2's offsets).
    m1 = jnp.maximum(y[0:r1 - 1, :], y[1:r1, :])

    # ---- conv2 on the stride-2 pooled rows + W-pool + bias + ReLU -----------
    r2 = (r1 - 1) - 2 * (_K - 1)
    acc = jnp.dot(m1[0:r2, :], a2_ref[0], preferred_element_type=jnp.float32)
    for ki in range(1, _K):
        acc = acc + jnp.dot(m1[2 * ki:2 * ki + r2, :], a2_ref[ki],
                            preferred_element_type=jnp.float32)
    y = jnp.maximum(acc[:, :_LANES], acc[:, _LANES:])
    y = jnp.maximum(y + b2_ref[...], 0.0)
    # H-pool: conv2 output row ho2 of image b sits at s = 32*b + 2*ho2, so the
    # pool pairs rows (s, s+2); pooled row hp2 ends up at s = 32*b + 4*hp2.
    m2 = jnp.maximum(y[0:r2 - 2, :], y[2:r2, :])

    # ---- gather the 5 pooled rows of every image (one constant 0/1 matmul) --
    # q[hp*nb + b, :] = m2[32*b + 4*hp, :]
    q = jnp.dot(sel_ref[...], m2, preferred_element_type=jnp.float32)

    # ---- fc1 (torch flatten folded into wf1) + fc2 + fc3 ---------------------
    h = bf1_ref[...]
    for hp in range(_H2P):
        h = h + jnp.dot(q[hp * nb:(hp + 1) * nb, :], wf1_ref[hp],
                        preferred_element_type=jnp.float32)
    h = jnp.maximum(h, 0.0)
    h = jnp.maximum(jnp.dot(h, wf2_ref[...], preferred_element_type=jnp.float32)
                    + bf2_ref[...], 0.0)
    o_ref[...] = (jnp.dot(h, wf3_ref[...], preferred_element_type=jnp.float32)
                  + bf3_ref[...])


# ------------------------------ forward wrapper ----------------------------- #

def lenet_forward(x, kp, *, num_classes, nb=8):
    n = x.shape[0]
    n_pad = _round_up(n, nb)
    nc_pad = kp["wf3"].shape[1]

    # NCHW -> per-image channel-major rows x[h, ci*W0 + w]; images stacked
    # along the row axis, lane-padded to 128 (input-only glue; every other
    # layout transformation lives in the restructured weights).
    xr = jnp.transpose(x, (0, 2, 1, 3)).reshape(n, _H0, _CIN * _W0)
    xr = jnp.pad(xr, ((0, n_pad - n), (0, 0), (0, _LANES - _CIN * _W0)))
    x2d = xr.reshape(n_pad * _H0, _LANES).astype(jnp.float32)

    sel = _make_pool_row_select(nb)            # host-built constant
    rows_in = nb * _H0

    def whole(*shape):
        return pl.BlockSpec(shape, lambda i, _s=len(shape): (0,) * _s)

    out = pl.pallas_call(
        functools.partial(_lenet_kernel, nb),
        out_shape=jax.ShapeDtypeStruct((n_pad, nc_pad), jnp.float32),
        grid_spec=pltpu.PrefetchScalarGridSpec(
            num_scalar_prefetch=0,
            grid=(n_pad // nb,),
            in_specs=[
                pl.BlockSpec((rows_in, _LANES), lambda i: (i, 0)),   # NB images
                whole(*sel.shape),                                   # row gather
                whole(_K, _LANES, 2 * _LANES), whole(1, _LANES),     # conv1
                whole(_K, _LANES, 2 * _LANES), whole(1, _LANES),     # conv2
                whole(_H2P, _LANES, _LANES), whole(1, _LANES),       # fc1
                whole(_LANES, _LANES), whole(1, _LANES),             # fc2
                whole(_LANES, nc_pad), whole(1, nc_pad),             # fc3
            ],
            out_specs=pl.BlockSpec((nb, nc_pad), lambda i: (i, 0)),
        ),
        compiler_params=pltpu.CompilerParams(
            dimension_semantics=("parallel",)),
    )(x2d, sel, kp["a1"], kp["b1"], kp["a2"], kp["b2"],
      kp["wf1"], kp["bf1"], kp["wf2"], kp["bf2"], kp["wf3"], kp["bf3"])
    return out[:n, :num_classes]


# ------------------------- reference & parameter init ----------------------- #

def init_lenet_params(key, num_classes):
    """Deterministic synthetic parameters in PyTorch layout."""
    ks = jax.random.split(key, 10)
    def u(k, shape, scale):
        return (jax.random.uniform(k, shape, jnp.float32) - 0.5) * 2.0 * scale
    return {
        "w1":  u(ks[0], (_C1, _CIN, _K, _K),  0.1),
        "b1":  u(ks[1], (_C1,),               0.1),
        "w2":  u(ks[2], (_C2, _C1, _K, _K),   0.1),
        "b2":  u(ks[3], (_C2,),               0.1),
        "wf1": u(ks[4], (_F1, _C2 * _H2P * _W2P), 0.05),  # PyTorch Linear: (out, in)
        "bf1": u(ks[5], (_F1,),               0.05),
        "wf2": u(ks[6], (_F2, _F1),           0.05),
        "bf2": u(ks[7], (_F2,),               0.05),
        "wf3": u(ks[8], (num_classes, _F2),   0.05),
        "bf3": u(ks[9], (num_classes,),       0.05),
    }


def lenet_reference(x, p):
    """Plain-JAX reproduction of the PyTorch forward (for a correctness check)."""
    hp = lax.Precision.HIGHEST
    dn = ("NCHW", "OIHW", "NCHW")
    y = lax.conv_general_dilated(x, p["w1"], (1, 1), "VALID",
                                 dimension_numbers=dn, precision=hp)
    y = jnp.maximum(y + p["b1"][None, :, None, None], 0.0)
    y = lax.reduce_window(y, -jnp.inf, lax.max, (1, 1, 2, 2), (1, 1, 2, 2), "VALID")
    y = lax.conv_general_dilated(y, p["w2"], (1, 1), "VALID",
                                 dimension_numbers=dn, precision=hp)
    y = jnp.maximum(y + p["b2"][None, :, None, None], 0.0)
    y = lax.reduce_window(y, -jnp.inf, lax.max, (1, 1, 2, 2), (1, 1, 2, 2), "VALID")
    flat = y.reshape(y.shape[0], -1)                          # torch x.view(-1, 400)
    h = jnp.maximum(jnp.dot(flat, p["wf1"].T, precision=hp) + p["bf1"], 0.0)
    h = jnp.maximum(jnp.dot(h, p["wf2"].T, precision=hp) + p["bf2"], 0.0)
    return jnp.dot(h, p["wf3"].T, precision=hp) + p["bf3"]


# ----------------------------------- main ------------------------------------ #

if __name__ == "__main__":
    NUM_CLASSES = 10      # module default 1000 also supported (padded to 1024 lanes)
    N = 2                 # batch (padded to a multiple of the per-step block)
    key = jax.random.PRNGKey(0)
    k_x, k_p = jax.random.split(key)

    x = jax.random.normal(k_x, (N, _CIN, _H0, _W0), dtype=jnp.float32)
    params = init_lenet_params(k_p, NUM_CLASSES)
    kparams = prepare_params(params)          # one-time weight restructuring

    fwd = jax.jit(functools.partial(lenet_forward, num_classes=NUM_CLASSES))
    out = fwd(x, kparams)
    jax.block_until_ready(out)

    assert out.shape == (N, NUM_CLASSES), out.shape
    assert out.dtype == jnp.float32

    ref = lenet_reference(x, params)
    np.testing.assert_allclose(np.asarray(out), np.asarray(ref), rtol=2e-2, atol=2e-2)
    print("KERNEL_OK")
</pallas_src>

<mosaic_0001>
module attributes {stable_mosaic.version = 11 : i64} {
  func.func @_lenet_kernel(%arg0: i32, %arg1: memref<256x128xf32, #tpu.memory_space<vmem>>, %arg2: memref<40x241xf32, #tpu.memory_space<vmem>>, %arg3: memref<5x128x256xf32, #tpu.memory_space<vmem>>, %arg4: memref<1x128xf32, #tpu.memory_space<vmem>>, %arg5: memref<5x128x256xf32, #tpu.memory_space<vmem>>, %arg6: memref<1x128xf32, #tpu.memory_space<vmem>>, %arg7: memref<5x128x128xf32, #tpu.memory_space<vmem>>, %arg8: memref<1x128xf32, #tpu.memory_space<vmem>>, %arg9: memref<128x128xf32, #tpu.memory_space<vmem>>, %arg10: memref<1x128xf32, #tpu.memory_space<vmem>>, %arg11: memref<128x128xf32, #tpu.memory_space<vmem>>, %arg12: memref<1x128xf32, #tpu.memory_space<vmem>>, %arg13: memref<8x128xf32, #tpu.memory_space<vmem>>) attributes {dimension_semantics = [#tpu.dimension_semantics<parallel>], iteration_bounds = array<i64: 1>, scalar_prefetch = 0 : i64, scratch_operands = 0 : i64, tpu.core_type = #tpu.core_type<tc>, window_params = [{transform_indices = @transform_0, window_bounds = array<i64: 256, 128>}, {pipeline_mode = #tpu.pipeline_mode<synchronous>, transform_indices = @transform_1, window_bounds = array<i64: 40, 241>}, {pipeline_mode = #tpu.pipeline_mode<synchronous>, transform_indices = @transform_2, window_bounds = array<i64: 5, 128, 256>}, {pipeline_mode = #tpu.pipeline_mode<synchronous>, transform_indices = @transform_3, window_bounds = array<i64: 1, 128>}, {pipeline_mode = #tpu.pipeline_mode<synchronous>, transform_indices = @transform_4, window_bounds = array<i64: 5, 128, 256>}, {pipeline_mode = #tpu.pipeline_mode<synchronous>, transform_indices = @transform_5, window_bounds = array<i64: 1, 128>}, {pipeline_mode = #tpu.pipeline_mode<synchronous>, transform_indices = @transform_6, window_bounds = array<i64: 5, 128, 128>}, {pipeline_mode = #tpu.pipeline_mode<synchronous>, transform_indices = @transform_7, window_bounds = array<i64: 1, 128>}, {pipeline_mode = #tpu.pipeline_mode<synchronous>, transform_indices = @transform_8, window_bounds = array<i64: 128, 128>}, {pipeline_mode = #tpu.pipeline_mode<synchronous>, transform_indices = @transform_9, window_bounds = array<i64: 1, 128>}, {pipeline_mode = #tpu.pipeline_mode<synchronous>, transform_indices = @transform_10, window_bounds = array<i64: 128, 128>}, {pipeline_mode = #tpu.pipeline_mode<synchronous>, transform_indices = @transform_11, window_bounds = array<i64: 1, 128>}, {transform_indices = @transform_12, window_bounds = array<i64: 8, 128>}]} {
    %c0 = arith.constant 0 : index
    %c0_0 = arith.constant 0 : index
    %0 = vector.load %arg1[%c0, %c0_0] : memref<256x128xf32, #tpu.memory_space<vmem>>, vector<256x128xf32>
    %1 = vector.extract_strided_slice %0 {offsets = [0, 0], sizes = [252, 128], strides = [1, 1]} : vector<256x128xf32> to vector<252x128xf32>
    %c0_1 = arith.constant 0 : index
    %c0_2 = arith.constant 0 : index
    %c0_3 = arith.constant 0 : index
    %2 = vector.load %arg3[%c0_1, %c0_2, %c0_3] : memref<5x128x256xf32, #tpu.memory_space<vmem>>, vector<1x128x256xf32>
    %3 = vector.shape_cast %2 : vector<1x128x256xf32> to vector<128x256xf32>
    %cst = arith.constant dense<0.000000e+00> : vector<252x256xf32>
    %4 = tpu.matmul %1, %3, %cst {dimension_numbers = #tpu.dot_dimension_numbers<[1], [0], [0], [1], [0, 0, 1, 1], [], []>} : vector<252x128xf32>, vector<128x256xf32>, vector<252x256xf32> -> vector<252x256xf32>
    %5 = vector.extract_strided_slice %0 {offsets = [1, 0], sizes = [252, 128], strides = [1, 1]} : vector<256x128xf32> to vector<252x128xf32>
    %c1 = arith.constant 1 : index
    %c0_4 = arith.constant 0 : index
    %c0_5 = arith.constant 0 : index
    %6 = vector.load %arg3[%c1, %c0_4, %c0_5] : memref<5x128x256xf32, #tpu.memory_space<vmem>>, vector<1x128x256xf32>
    %7 = vector.shape_cast %6 : vector<1x128x256xf32> to vector<128x256xf32>
    %cst_6 = arith.constant dense<0.000000e+00> : vector<252x256xf32>
    %8 = tpu.matmul %5, %7, %cst_6 {dimension_numbers = #tpu.dot_dimension_numbers<[1], [0], [0], [1], [0, 0, 1, 1], [], []>} : vector<252x128xf32>, vector<128x256xf32>, vector<252x256xf32> -> vector<252x256xf32>
    %9 = arith.addf %4, %8 : vector<252x256xf32>
    %10 = vector.extract_strided_slice %0 {offsets = [2, 0], sizes = [252, 128], strides = [1, 1]} : vector<256x128xf32> to vector<252x128xf32>
    %c2 = arith.constant 2 : index
    %c0_7 = arith.constant 0 : index
    %c0_8 = arith.constant 0 : index
    %11 = vector.load %arg3[%c2, %c0_7, %c0_8] : memref<5x128x256xf32, #tpu.memory_space<vmem>>, vector<1x128x256xf32>
    %12 = vector.shape_cast %11 : vector<1x128x256xf32> to vector<128x256xf32>
    %cst_9 = arith.constant dense<0.000000e+00> : vector<252x256xf32>
    %13 = tpu.matmul %10, %12, %cst_9 {dimension_numbers = #tpu.dot_dimension_numbers<[1], [0], [0], [1], [0, 0, 1, 1], [], []>} : vector<252x128xf32>, vector<128x256xf32>, vector<252x256xf32> -> vector<252x256xf32>
    %14 = arith.addf %9, %13 : vector<252x256xf32>
    %15 = vector.extract_strided_slice %0 {offsets = [3, 0], sizes = [252, 128], strides = [1, 1]} : vector<256x128xf32> to vector<252x128xf32>
    %c3 = arith.constant 3 : index
    %c0_10 = arith.constant 0 : index
    %c0_11 = arith.constant 0 : index
    %16 = vector.load %arg3[%c3, %c0_10, %c0_11] : memref<5x128x256xf32, #tpu.memory_space<vmem>>, vector<1x128x256xf32>
    %17 = vector.shape_cast %16 : vector<1x128x256xf32> to vector<128x256xf32>
    %cst_12 = arith.constant dense<0.000000e+00> : vector<252x256xf32>
    %18 = tpu.matmul %15, %17, %cst_12 {dimension_numbers = #tpu.dot_dimension_numbers<[1], [0], [0], [1], [0, 0, 1, 1], [], []>} : vector<252x128xf32>, vector<128x256xf32>, vector<252x256xf32> -> vector<252x256xf32>
    %19 = arith.addf %14, %18 : vector<252x256xf32>
    %20 = vector.extract_strided_slice %0 {offsets = [4, 0], sizes = [252, 128], strides = [1, 1]} : vector<256x128xf32> to vector<252x128xf32>
    %c4 = arith.constant 4 : index
    %c0_13 = arith.constant 0 : index
    %c0_14 = arith.constant 0 : index
    %21 = vector.load %arg3[%c4, %c0_13, %c0_14] : memref<5x128x256xf32, #tpu.memory_space<vmem>>, vector<1x128x256xf32>
    %22 = vector.shape_cast %21 : vector<1x128x256xf32> to vector<128x256xf32>
    %cst_15 = arith.constant dense<0.000000e+00> : vector<252x256xf32>
    %23 = tpu.matmul %20, %22, %cst_15 {dimension_numbers = #tpu.dot_dimension_numbers<[1], [0], [0], [1], [0, 0, 1, 1], [], []>} : vector<252x128xf32>, vector<128x256xf32>, vector<252x256xf32> -> vector<252x256xf32>
    %24 = arith.addf %19, %23 : vector<252x256xf32>
    %25 = vector.extract_strided_slice %24 {offsets = [0, 0], sizes = [252, 128], strides = [1, 1]} : vector<252x256xf32> to vector<252x128xf32>
    %26 = vector.extract_strided_slice %24 {offsets = [0, 128], sizes = [252, 128], strides = [1, 1]} : vector<252x256xf32> to vector<252x128xf32>
    %27 = arith.maximumf %25, %26 : vector<252x128xf32>
    %c0_16 = arith.constant 0 : index
    %c0_17 = arith.constant 0 : index
    %28 = vector.load %arg4[%c0_16, %c0_17] : memref<1x128xf32, #tpu.memory_space<vmem>>, vector<1x128xf32>
    %29 = vector.broadcast %28 : vector<1x128xf32> to vector<252x128xf32>
    %30 = arith.addf %27, %29 : vector<252x128xf32>
    %cst_18 = arith.constant 0.000000e+00 : f32
    %31 = vector.broadcast %cst_18 : f32 to vector<252x128xf32>
    %32 = arith.maximumf %30, %31 : vector<252x128xf32>
    %33 = vector.extract_strided_slice %32 {offsets = [0, 0], sizes = [251, 128], strides = [1, 1]} : vector<252x128xf32> to vector<251x128xf32>
    %34 = vector.extract_strided_slice %32 {offsets = [1, 0], sizes = [251, 128], strides = [1, 1]} : vector<252x128xf32> to vector<251x128xf32>
    %35 = arith.maximumf %33, %34 : vector<251x128xf32>
    %36 = vector.extract_strided_slice %35 {offsets = [0, 0], sizes = [243, 128], strides = [1, 1]} : vector<251x128xf32> to vector<243x128xf32>
    %c0_19 = arith.constant 0 : index
    %c0_20 = arith.constant 0 : index
    %c0_21 = arith.constant 0 : index
    %37 = vector.load %arg5[%c0_19, %c0_20, %c0_21] : memref<5x128x256xf32, #tpu.memory_space<vmem>>, vector<1x128x256xf32>
    %38 = vector.shape_cast %37 : vector<1x128x256xf32> to vector<128x256xf32>
    %cst_22 = arith.constant dense<0.000000e+00> : vector<243x256xf32>
    %39 = tpu.matmul %36, %38, %cst_22 {dimension_numbers = #tpu.dot_dimension_numbers<[1], [0], [0], [1], [0, 0, 1, 1], [], []>} : vector<243x128xf32>, vector<128x256xf32>, vector<243x256xf32> -> vector<243x256xf32>
    %40 = vector.extract_strided_slice %35 {offsets = [2, 0], sizes = [243, 128], strides = [1, 1]} : vector<251x128xf32> to vector<243x128xf32>
    %c1_23 = arith.constant 1 : index
    %c0_24 = arith.constant 0 : index
    %c0_25 = arith.constant 0 : index
    %41 = vector.load %arg5[%c1_23, %c0_24, %c0_25] : memref<5x128x256xf32, #tpu.memory_space<vmem>>, vector<1x128x256xf32>
    %42 = vector.shape_cast %41 : vector<1x128x256xf32> to vector<128x256xf32>
    %cst_26 = arith.constant dense<0.000000e+00> : vector<243x256xf32>
    %43 = tpu.matmul %40, %42, %cst_26 {dimension_numbers = #tpu.dot_dimension_numbers<[1], [0], [0], [1], [0, 0, 1, 1], [], []>} : vector<243x128xf32>, vector<128x256xf32>, vector<243x256xf32> -> vector<243x256xf32>
    %44 = arith.addf %39, %43 : vector<243x256xf32>
    %45 = vector.extract_strided_slice %35 {offsets = [4, 0], sizes = [243, 128], strides = [1, 1]} : vector<251x128xf32> to vector<243x128xf32>
    %c2_27 = arith.constant 2 : index
    %c0_28 = arith.constant 0 : index
    %c0_29 = arith.constant 0 : index
    %46 = vector.load %arg5[%c2_27, %c0_28, %c0_29] : memref<5x128x256xf32, #tpu.memory_space<vmem>>, vector<1x128x256xf32>
    %47 = vector.shape_cast %46 : vector<1x128x256xf32> to vector<128x256xf32>
    %cst_30 = arith.constant dense<0.000000e+00> : vector<243x256xf32>
    %48 = tpu.matmul %45, %47, %cst_30 {dimension_numbers = #tpu.dot_dimension_numbers<[1], [0], [0], [1], [0, 0, 1, 1], [], []>} : vector<243x128xf32>, vector<128x256xf32>, vector<243x256xf32> -> vector<243x256xf32>
    %49 = arith.addf %44, %48 : vector<243x256xf32>
    %50 = vector.extract_strided_slice %35 {offsets = [6, 0], sizes = [243, 128], strides = [1, 1]} : vector<251x128xf32> to vector<243x128xf32>
    %c3_31 = arith.constant 3 : index
    %c0_32 = arith.constant 0 : index
    %c0_33 = arith.constant 0 : index
    %51 = vector.load %arg5[%c3_31, %c0_32, %c0_33] : memref<5x128x256xf32, #tpu.memory_space<vmem>>, vector<1x128x256xf32>
    %52 = vector.shape_cast %51 : vector<1x128x256xf32> to vector<128x256xf32>
    %cst_34 = arith.constant dense<0.000000e+00> : vector<243x256xf32>
    %53 = tpu.matmul %50, %52, %cst_34 {dimension_numbers = #tpu.dot_dimension_numbers<[1], [0], [0], [1], [0, 0, 1, 1], [], []>} : vector<243x128xf32>, vector<128x256xf32>, vector<243x256xf32> -> vector<243x256xf32>
    %54 = arith.addf %49, %53 : vector<243x256xf32>
    %55 = vector.extract_strided_slice %35 {offsets = [8, 0], sizes = [243, 128], strides = [1, 1]} : vector<251x128xf32> to vector<243x128xf32>
    %c4_35 = arith.constant 4 : index
    %c0_36 = arith.constant 0 : index
    %c0_37 = arith.constant 0 : index
    %56 = vector.load %arg5[%c4_35, %c0_36, %c0_37] : memref<5x128x256xf32, #tpu.memory_space<vmem>>, vector<1x128x256xf32>
    %57 = vector.shape_cast %56 : vector<1x128x256xf32> to vector<128x256xf32>
    %cst_38 = arith.constant dense<0.000000e+00> : vector<243x256xf32>
    %58 = tpu.matmul %55, %57, %cst_38 {dimension_numbers = #tpu.dot_dimension_numbers<[1], [0], [0], [1], [0, 0, 1, 1], [], []>} : vector<243x128xf32>, vector<128x256xf32>, vector<243x256xf32> -> vector<243x256xf32>
    %59 = arith.addf %54, %58 : vector<243x256xf32>
    %60 = vector.extract_strided_slice %59 {offsets = [0, 0], sizes = [243, 128], strides = [1, 1]} : vector<243x256xf32> to vector<243x128xf32>
    %61 = vector.extract_strided_slice %59 {offsets = [0, 128], sizes = [243, 128], strides = [1, 1]} : vector<243x256xf32> to vector<243x128xf32>
    %62 = arith.maximumf %60, %61 : vector<243x128xf32>
    %c0_39 = arith.constant 0 : index
    %c0_40 = arith.constant 0 : index
    %63 = vector.load %arg6[%c0_39, %c0_40] : memref<1x128xf32, #tpu.memory_space<vmem>>, vector<1x128xf32>
    %64 = vector.broadcast %63 : vector<1x128xf32> to vector<243x128xf32>
    %65 = arith.addf %62, %64 : vector<243x128xf32>
    %cst_41 = arith.constant 0.000000e+00 : f32
    %66 = vector.broadcast %cst_41 : f32 to vector<243x128xf32>
    %67 = arith.maximumf %65, %66 : vector<243x128xf32>
    %68 = vector.extract_strided_slice %67 {offsets = [0, 0], sizes = [241, 128], strides = [1, 1]} : vector<243x128xf32> to vector<241x128xf32>
    %69 = vector.extract_strided_slice %67 {offsets = [2, 0], sizes = [241, 128], strides = [1, 1]} : vector<243x128xf32> to vector<241x128xf32>
    %70 = arith.maximumf %68, %69 : vector<241x128xf32>
    %c0_42 = arith.constant 0 : index
    %c0_43 = arith.constant 0 : index
    %71 = vector.load %arg2[%c0_42, %c0_43] : memref<40x241xf32, #tpu.memory_space<vmem>>, vector<40x241xf32>
    %cst_44 = arith.constant dense<0.000000e+00> : vector<40x128xf32>
    %72 = tpu.matmul %71, %70, %cst_44 {dimension_numbers = #tpu.dot_dimension_numbers<[1], [0], [0], [1], [0, 0, 1, 1], [], []>} : vector<40x241xf32>, vector<241x128xf32>, vector<40x128xf32> -> vector<40x128xf32>
    %c0_45 = arith.constant 0 : index
    %c0_46 = arith.constant 0 : index
    %73 = vector.load %arg8[%c0_45, %c0_46] : memref<1x128xf32, #tpu.memory_space<vmem>>, vector<1x128xf32>
    %74 = vector.extract_strided_slice %72 {offsets = [0, 0], sizes = [8, 128], strides = [1, 1]} : vector<40x128xf32> to vector<8x128xf32>
    %c0_47 = arith.constant 0 : index
    %c0_48 = arith.constant 0 : index
    %c0_49 = arith.constant 0 : index
    %75 = vector.load %arg7[%c0_47, %c0_48, %c0_49] : memref<5x128x128xf32, #tpu.memory_space<vmem>>, vector<1x128x128xf32>
    %76 = vector.shape_cast %75 : vector<1x128x128xf32> to vector<128x128xf32>
    %cst_50 = arith.constant dense<0.000000e+00> : vector<8x128xf32>
    %77 = tpu.matmul %74, %76, %cst_50 {dimension_numbers = #tpu.dot_dimension_numbers<[1], [0], [0], [1], [0, 0, 1, 1], [], []>} : vector<8x128xf32>, vector<128x128xf32>, vector<8x128xf32> -> vector<8x128xf32>
    %78 = vector.broadcast %73 : vector<1x128xf32> to vector<8x128xf32>
    %79 = arith.addf %78, %77 : vector<8x128xf32>
    %80 = vector.extract_strided_slice %72 {offsets = [8, 0], sizes = [8, 128], strides = [1, 1]} : vector<40x128xf32> to vector<8x128xf32>
    %c1_51 = arith.constant 1 : index
    %c0_52 = arith.constant 0 : index
    %c0_53 = arith.constant 0 : index
    %81 = vector.load %arg7[%c1_51, %c0_52, %c0_53] : memref<5x128x128xf32, #tpu.memory_space<vmem>>, vector<1x128x128xf32>
    %82 = vector.shape_cast %81 : vector<1x128x128xf32> to vector<128x128xf32>
    %cst_54 = arith.constant dense<0.000000e+00> : vector<8x128xf32>
    %83 = tpu.matmul %80, %82, %cst_54 {dimension_numbers = #tpu.dot_dimension_numbers<[1], [0], [0], [1], [0, 0, 1, 1], [], []>} : vector<8x128xf32>, vector<128x128xf32>, vector<8x128xf32> -> vector<8x128xf32>
    %84 = arith.addf %79, %83 : vector<8x128xf32>
    %85 = vector.extract_strided_slice %72 {offsets = [16, 0], sizes = [8, 128], strides = [1, 1]} : vector<40x128xf32> to vector<8x128xf32>
    %c2_55 = arith.constant 2 : index
    %c0_56 = arith.constant 0 : index
    %c0_57 = arith.constant 0 : index
    %86 = vector.load %arg7[%c2_55, %c0_56, %c0_57] : memref<5x128x128xf32, #tpu.memory_space<vmem>>, vector<1x128x128xf32>
    %87 = vector.shape_cast %86 : vector<1x128x128xf32> to vector<128x128xf32>
    %cst_58 = arith.constant dense<0.000000e+00> : vector<8x128xf32>
    %88 = tpu.matmul %85, %87, %cst_58 {dimension_numbers = #tpu.dot_dimension_numbers<[1], [0], [0], [1], [0, 0, 1, 1], [], []>} : vector<8x128xf32>, vector<128x128xf32>, vector<8x128xf32> -> vector<8x128xf32>
    %89 = arith.addf %84, %88 : vector<8x128xf32>
    %90 = vector.extract_strided_slice %72 {offsets = [24, 0], sizes = [8, 128], strides = [1, 1]} : vector<40x128xf32> to vector<8x128xf32>
    %c3_59 = arith.constant 3 : index
    %c0_60 = arith.constant 0 : index
    %c0_61 = arith.constant 0 : index
    %91 = vector.load %arg7[%c3_59, %c0_60, %c0_61] : memref<5x128x128xf32, #tpu.memory_space<vmem>>, vector<1x128x128xf32>
    %92 = vector.shape_cast %91 : vector<1x128x128xf32> to vector<128x128xf32>
    %cst_62 = arith.constant dense<0.000000e+00> : vector<8x128xf32>
    %93 = tpu.matmul %90, %92, %cst_62 {dimension_numbers = #tpu.dot_dimension_numbers<[1], [0], [0], [1], [0, 0, 1, 1], [], []>} : vector<8x128xf32>, vector<128x128xf32>, vector<8x128xf32> -> vector<8x128xf32>
    %94 = arith.addf %89, %93 : vector<8x128xf32>
    %95 = vector.extract_strided_slice %72 {offsets = [32, 0], sizes = [8, 128], strides = [1, 1]} : vector<40x128xf32> to vector<8x128xf32>
    %c4_63 = arith.constant 4 : index
    %c0_64 = arith.constant 0 : index
    %c0_65 = arith.constant 0 : index
    %96 = vector.load %arg7[%c4_63, %c0_64, %c0_65] : memref<5x128x128xf32, #tpu.memory_space<vmem>>, vector<1x128x128xf32>
    %97 = vector.shape_cast %96 : vector<1x128x128xf32> to vector<128x128xf32>
    %cst_66 = arith.constant dense<0.000000e+00> : vector<8x128xf32>
    %98 = tpu.matmul %95, %97, %cst_66 {dimension_numbers = #tpu.dot_dimension_numbers<[1], [0], [0], [1], [0, 0, 1, 1], [], []>} : vector<8x128xf32>, vector<128x128xf32>, vector<8x128xf32> -> vector<8x128xf32>
    %99 = arith.addf %94, %98 : vector<8x128xf32>
    %cst_67 = arith.constant 0.000000e+00 : f32
    %100 = vector.broadcast %cst_67 : f32 to vector<8x128xf32>
    %101 = arith.maximumf %99, %100 : vector<8x128xf32>
    %c0_68 = arith.constant 0 : index
    %c0_69 = arith.constant 0 : index
    %102 = vector.load %arg9[%c0_68, %c0_69] : memref<128x128xf32, #tpu.memory_space<vmem>>, vector<128x128xf32>
    %cst_70 = arith.constant dense<0.000000e+00> : vector<8x128xf32>
    %103 = tpu.matmul %101, %102, %cst_70 {dimension_numbers = #tpu.dot_dimension_numbers<[1], [0], [0], [1], [0, 0, 1, 1], [], []>} : vector<8x128xf32>, vector<128x128xf32>, vector<8x128xf32> -> vector<8x128xf32>
    %c0_71 = arith.constant 0 : index
    %c0_72 = arith.constant 0 : index
    %104 = vector.load %arg10[%c0_71, %c0_72] : memref<1x128xf32, #tpu.memory_space<vmem>>, vector<1x128xf32>
    %105 = vector.broadcast %104 : vector<1x128xf32> to vector<8x128xf32>
    %106 = arith.addf %103, %105 : vector<8x128xf32>
    %cst_73 = arith.constant 0.000000e+00 : f32
    %107 = vector.broadcast %cst_73 : f32 to vector<8x128xf32>
    %108 = arith.maximumf %106, %107 : vector<8x128xf32>
    %c0_74 = arith.constant 0 : index
    %c0_75 = arith.constant 0 : index
    %109 = vector.load %arg11[%c0_74, %c0_75] : memref<128x128xf32, #tpu.memory_space<vmem>>, vector<128x128xf32>
    %cst_76 = arith.constant dense<0.000000e+00> : vector<8x128xf32>
    %110 = tpu.matmul %108, %109, %cst_76 {dimension_numbers = #tpu.dot_dimension_numbers<[1], [0], [0], [1], [0, 0, 1, 1], [], []>} : vector<8x128xf32>, vector<128x128xf32>, vector<8x128xf32> -> vector<8x128xf32>
    %c0_77 = arith.constant 0 : index
    %c0_78 = arith.constant 0 : index
    %111 = vector.load %arg12[%c0_77, %c0_78] : memref<1x128xf32, #tpu.memory_space<vmem>>, vector<1x128xf32>
    %112 = vector.broadcast %111 : vector<1x128xf32> to vector<8x128xf32>
    %113 = arith.addf %110, %112 : vector<8x128xf32>
    %c0_79 = arith.constant 0 : index
    %c0_80 = arith.constant 0 : index
    %114 = vector.load %arg13[%c0_79, %c0_80] : memref<8x128xf32, #tpu.memory_space<vmem>>, vector<8x128xf32>
    tpu.vector_store %arg13[%c0_79, %c0_80], %113 {strides = array<i32>} : memref<8x128xf32, #tpu.memory_space<vmem>>, vector<8x128xf32>,
    return
  }
  func.func @transform_0(%arg0: i32) -> (i32, i32) {
    %c0_i32 = arith.constant 0 : i32
    %c0_i32_0 = arith.constant 0 : i32
    return %arg0, %c0_i32 : i32, i32
  }
  func.func @transform_1(%arg0: i32) -> (i32, i32) {
    %c0_i32 = arith.constant 0 : i32
    %c0_i32_0 = arith.constant 0 : i32
    %c0_i32_1 = arith.constant 0 : i32
    return %c0_i32, %c0_i32_0 : i32, i32
  }
  func.func @transform_2(%arg0: i32) -> (i32, i32, i32) {
    %c0_i32 = arith.constant 0 : i32
    %c0_i32_0 = arith.constant 0 : i32
    %c0_i32_1 = arith.constant 0 : i32
    %c0_i32_2 = arith.constant 0 : i32
    return %c0_i32, %c0_i32_0, %c0_i32_1 : i32, i32, i32
  }
  func.func @transform_3(%arg0: i32) -> (i32, i32) {
    %c0_i32 = arith.constant 0 : i32
    %c0_i32_0 = arith.constant 0 : i32
    %c0_i32_1 = arith.constant 0 : i32
    return %c0_i32, %c0_i32_0 : i32, i32
  }
  func.func @transform_4(%arg0: i32) -> (i32, i32, i32) {
    %c0_i32 = arith.constant 0 : i32
    %c0_i32_0 = arith.constant 0 : i32
    %c0_i32_1 = arith.constant 0 : i32
    %c0_i32_2 = arith.constant 0 : i32
    return %c0_i32, %c0_i32_0, %c0_i32_1 : i32, i32, i32
  }
  func.func @transform_5(%arg0: i32) -> (i32, i32) {
    %c0_i32 = arith.constant 0 : i32
    %c0_i32_0 = arith.constant 0 : i32
    %c0_i32_1 = arith.constant 0 : i32
    return %c0_i32, %c0_i32_0 : i32, i32
  }
  func.func @transform_6(%arg0: i32) -> (i32, i32, i32) {
    %c0_i32 = arith.constant 0 : i32
    %c0_i32_0 = arith.constant 0 : i32
    %c0_i32_1 = arith.constant 0 : i32
    %c0_i32_2 = arith.constant 0 : i32
    return %c0_i32, %c0_i32_0, %c0_i32_1 : i32, i32, i32
  }
  func.func @transform_7(%arg0: i32) -> (i32, i32) {
    %c0_i32 = arith.constant 0 : i32
    %c0_i32_0 = arith.constant 0 : i32
    %c0_i32_1 = arith.constant 0 : i32
    return %c0_i32, %c0_i32_0 : i32, i32
  }
  func.func @transform_8(%arg0: i32) -> (i32, i32) {
    %c0_i32 = arith.constant 0 : i32
    %c0_i32_0 = arith.constant 0 : i32
    %c0_i32_1 = arith.constant 0 : i32
    return %c0_i32, %c0_i32_0 : i32, i32
  }
  func.func @transform_9(%arg0: i32) -> (i32, i32) {
    %c0_i32 = arith.constant 0 : i32
    %c0_i32_0 = arith.constant 0 : i32
    %c0_i32_1 = arith.constant 0 : i32
    return %c0_i32, %c0_i32_0 : i32, i32
  }
  func.func @transform_10(%arg0: i32) -> (i32, i32) {
    %c0_i32 = arith.constant 0 : i32
    %c0_i32_0 = arith.constant 0 : i32
    %c0_i32_1 = arith.constant 0 : i32
    return %c0_i32, %c0_i32_0 : i32, i32
  }
  func.func @transform_11(%arg0: i32) -> (i32, i32) {
    %c0_i32 = arith.constant 0 : i32
    %c0_i32_0 = arith.constant 0 : i32
    %c0_i32_1 = arith.constant 0 : i32
    return %c0_i32, %c0_i32_0 : i32, i32
  }
  func.func @transform_12(%arg0: i32) -> (i32, i32) {
    %c0_i32 = arith.constant 0 : i32
    %c0_i32_0 = arith.constant 0 : i32
    return %arg0, %c0_i32 : i32, i32
  }
}

</mosaic_0001>

<llo_original>
// kernel: lenet_forward.1
$region0: #{lenet_forward.1}
  #allocation0 [shape = 'u32[]', space=smem, size = 0x4, offset = 0x4, fixed_abs, tag = 'smem constant byte address 0x4 - core index']
  #allocation1 [shape = 'u32[72,128]{1,0:T(1,128)}', space=vmem, size = 0x9000, scoped, tag = 'internal scratch']
  %s0 = inlined_call_operand.vmem [shape: f32[256,128], index: 0, kind: input, shape index: {}]
  %s1 = inlined_call_operand.vmem [shape: f32[40,241], index: 1, kind: input, shape index: {}]
  %s2 = inlined_call_operand.hbm [shape: f32[5,128,256], index: 2, kind: input, shape index: {}]
  %s3 = inlined_call_operand.vmem [shape: f32[1,128], index: 3, kind: input, shape index: {}]
  %s4 = inlined_call_operand.hbm [shape: f32[5,128,256], index: 4, kind: input, shape index: {}]
  %s5 = inlined_call_operand.vmem [shape: f32[1,128], index: 5, kind: input, shape index: {}]
  %s6 = inlined_call_operand.vmem [shape: f32[5,128,128], index: 6, kind: input, shape index: {}]
  %s7 = inlined_call_operand.vmem [shape: f32[1,128], index: 7, kind: input, shape index: {}]
  %s8 = inlined_call_operand.vmem [shape: f32[128,128], index: 8, kind: input, shape index: {}]
  %s9 = inlined_call_operand.vmem [shape: f32[1,128], index: 9, kind: input, shape index: {}]
  %s10 = inlined_call_operand.vmem [shape: f32[128,128], index: 10, kind: input, shape index: {}]
  %s11 = inlined_call_operand.vmem [shape: f32[1,128], index: 11, kind: input, shape index: {}]
  %s12 = inlined_call_operand.vmem [shape: f32[8,128], index: 12, kind: output, shape index: {}]
  %s13 = sld [smem:[#allocation0]]
  $region66: #{lenet_forward.1} parent=0
    _
  %s15 = ssub.s32 1, %s13
  %s16 = scalar_select 0, %s15, %s13
  $region1: #{lenet_forward.1} parent=0
    #allocation2 [shape = 'u8[655360]{0}', space=vmem, size = 0xa0000, scoped, tag = 'input window, operand 2, single buffered']
    #allocation3 [shape = 's32[1]{0}', space=sflag, size = 0x4, scoped, tag = 'scoped memory for lenet_forward.1']
    #allocation4 [shape = 'u8[655360]{0}', space=vmem, size = 0xa0000, scoped, tag = 'input window, operand 4, single buffered']
    #allocation5 [shape = 's32[1]{0}', space=sflag, size = 0x4, scoped, tag = 'scoped memory for lenet_forward.1']
    %17 = vsyncpa [#allocation3], 0
    %18 = vsyncpa [#allocation5], 0
    // Predicated region
    $region2: #{lenet_forward.1} parent=1 // pred_check
      _
    $region3: #{lenet_forward.1} parent=1 // pred_check_branch
      %20 = sbr.rel (0) target = $region5
    $region4: #{lenet_forward.1} parent=1 // pred_region
      _
    $region5: #{lenet_forward.1} parent=1 // pred_fallthru
      _
    // Predicated region
    $region6: #{lenet_forward.1} parent=1 // pred_check
      _
    $region7: #{lenet_forward.1} parent=1 // pred_check_branch
      %22 = sbr.rel (0) target = $region9
    $region8: #{lenet_forward.1} parent=1 // pred_region
      _
    $region9: #{lenet_forward.1} parent=1 // pred_fallthru
      _
    // Predicated region
    $region10: #{lenet_forward.1} parent=1 // pred_check
      _
    $region11: #{lenet_forward.1} parent=1 // pred_check_branch
      %24 = sbr.rel (0) target = $region13
    $region12: #{lenet_forward.1} parent=1 // pred_region
      %26 = vsyncadd [#allocation3], 0
      %s27 = sshll.u32 %s2, 4
      %s28 = int_to_ptr.hbm [resolvable:$true] %s27
      %s29 = sshll.u32 [#allocation2], 4
      %s30 = int_to_ptr.vmem [resolvable:$true] %s29
      %35 = dma.hbm_to_vmem [thread:$0]  %s28, 20480, %s30, [#allocation3], 256, 256, 16
    $region13: #{lenet_forward.1} parent=1 // pred_fallthru
      _
    // Predicated region
    $region14: #{lenet_forward.1} parent=1 // pred_check
      _
    $region15: #{lenet_forward.1} parent=1 // pred_check_branch
      %37 = sbr.rel (0) target = $region17
    $region16: #{lenet_forward.1} parent=1 // pred_region
      _
    $region17: #{lenet_forward.1} parent=1 // pred_fallthru
      _
    // Predicated region
    $region18: #{lenet_forward.1} parent=1 // pred_check
      _
    $region19: #{lenet_forward.1} parent=1 // pred_check_branch
      %39 = sbr.rel (0) target = $region21
    $region20: #{lenet_forward.1} parent=1 // pred_region
      %41 = vsyncadd [#allocation5], 0
      %s42 = sshll.u32 %s4, 4
      %s43 = int_to_ptr.hbm [resolvable:$true] %s42
      %s44 = sshll.u32 [#allocation4], 4
      %s45 = int_to_ptr.vmem [resolvable:$true] %s44
      %50 = dma.hbm_to_vmem [thread:$0]  %s43, 20480, %s45, [#allocation5], 256, 256, 16
    $region21: #{lenet_forward.1} parent=1 // pred_fallthru
      _
    // Predicated region
    $region22: #{lenet_forward.1} parent=1 // pred_check
      _
    $region23: #{lenet_forward.1} parent=1 // pred_check_branch
      %52 = sbr.rel (0) target = $region25
    $region24: #{lenet_forward.1} parent=1 // pred_region
      _
    $region25: #{lenet_forward.1} parent=1 // pred_fallthru
      _
    // Predicated region
    $region26: #{lenet_forward.1} parent=1 // pred_check
      _
    $region27: #{lenet_forward.1} parent=1 // pred_check_branch
      %54 = sbr.rel (0) target = $region29
    $region28: #{lenet_forward.1} parent=1 // pred_region
      _
    $region29: #{lenet_forward.1} parent=1 // pred_fallthru
      _
    // Predicated region
    $region30: #{lenet_forward.1} parent=1 // pred_check
      _
    $region31: #{lenet_forward.1} parent=1 // pred_check_branch
      %56 = sbr.rel (0) target = $region33
    $region32: #{lenet_forward.1} parent=1 // pred_region
      _
    $region33: #{lenet_forward.1} parent=1 // pred_fallthru
      _
    // Predicated region
    $region34: #{lenet_forward.1} parent=1 // pred_check
      _
    $region35: #{lenet_forward.1} parent=1 // pred_check_branch
      %58 = sbr.rel (0) target = $region37
    $region36: #{lenet_forward.1} parent=1 // pred_region
      _
    $region37: #{lenet_forward.1} parent=1 // pred_fallthru
      _
    // Predicated region
    $region38: #{lenet_forward.1} parent=1 // pred_check
      _
    $region39: #{lenet_forward.1} parent=1 // pred_check_branch
      %60 = sbr.rel (0) target = $region41
    $region40: #{lenet_forward.1} parent=1 // pred_region
      _
    $region41: #{lenet_forward.1} parent=1 // pred_fallthru
      _
    // Predicated region
    $region42: #{lenet_forward.1} parent=1 // pred_check
      _
    $region43: #{lenet_forward.1} parent=1 // pred_check_branch
      %62 = sbr.rel (0) target = $region45
    $region44: #{lenet_forward.1} parent=1 // pred_region
      _
    $region45: #{lenet_forward.1} parent=1 // pred_fallthru
      _
    // Predicated region
    $region46: #{lenet_forward.1} parent=1 // pred_check
      _
    $region47: #{lenet_forward.1} parent=1 // pred_check_branch
      %64 = sbr.rel (0) target = $region49
    $region48: #{lenet_forward.1} parent=1 // pred_region
      _
    $region49: #{lenet_forward.1} parent=1 // pred_fallthru
      _
    // Predicated region
    $region50: #{lenet_forward.1} parent=1 // pred_check
      _
    $region51: #{lenet_forward.1} parent=1 // pred_check_branch
      %66 = sbr.rel (0) target = $region53
    $region52: #{lenet_forward.1} parent=1 // pred_region
      %68 = dma.done [#allocation3], 20480
    $region53: #{lenet_forward.1} parent=1 // pred_fallthru
      _
    // Predicated region
    $region54: #{lenet_forward.1} parent=1 // pred_check
      _
    $region55: #{lenet_forward.1} parent=1 // pred_check_branch
      %70 = sbr.rel (0) target = $region57
    $region56: #{lenet_forward.1} parent=1 // pred_region
      %72 = dma.done [#allocation5], 20480
    $region57: #{lenet_forward.1} parent=1 // pred_fallthru
      _
    %v73 = vld [vmem:[%s0] sm:$0xff]
    %v74 = vld [vmem:[%s0 + $0x8] sm:$0xff]
    %v75 = vld [vmem:[%s0 + $0x10] sm:$0xff]
    %v76 = vld [vmem:[%s0 + $0x18] sm:$0xff]
    %v77 = vld [vmem:[%s0 + $0x20] sm:$0xff]
    %v78 = vld [vmem:[%s0 + $0x28] sm:$0xff]
    %v79 = vld [vmem:[%s0 + $0x30] sm:$0xff]
    %v80 = vld [vmem:[%s0 + $0x38] sm:$0xff]
    %v81 = vld [vmem:[%s0 + $0x40] sm:$0xff]
    %v82 = vld [vmem:[%s0 + $0x48] sm:$0xff]
    %v83 = vld [vmem:[%s0 + $0x50] sm:$0xff]
    %v84 = vld [vmem:[%s0 + $0x58] sm:$0xff]
    %v85 = vld [vmem:[%s0 + $0x60] sm:$0xff]
    %v86 = vld [vmem:[%s0 + $0x68] sm:$0xff]
    %v87 = vld [vmem:[%s0 + $0x70] sm:$0xff]
    %v88 = vld [vmem:[%s0 + $0x78] sm:$0xff]
    %v89 = vld [vmem:[%s0 + $0x80] sm:$0xff]
    %v90 = vld [vmem:[%s0 + $0x88] sm:$0xff]
    %v91 = vld [vmem:[%s0 + $0x90] sm:$0xff]
    %v92 = vld [vmem:[%s0 + $0x98] sm:$0xff]
    %v93 = vld [vmem:[%s0 + $0xa0] sm:$0xff]
    %v94 = vld [vmem:[%s0 + $0xa8] sm:$0xff]
    %v95 = vld [vmem:[%s0 + $0xb0] sm:$0xff]
    %v96 = vld [vmem:[%s0 + $0xb8] sm:$0xff]
    %v97 = vld [vmem:[%s0 + $0xc0] sm:$0xff]
    %v98 = vld [vmem:[%s0 + $0xc8] sm:$0xff]
    %v99 = vld [vmem:[%s0 + $0xd0] sm:$0xff]
    %v100 = vld [vmem:[%s0 + $0xd8] sm:$0xff]
    %v101 = vld [vmem:[%s0 + $0xe0] sm:$0xff]
    %v102 = vld [vmem:[%s0 + $0xe8] sm:$0xff]
    %v103 = vld [vmem:[%s0 + $0xf0] sm:$0xff]
    %v104 = vld [vmem:[%s0 + $0xf8] sm:$0xff]
    %v105 = vld [vmem:[#allocation2] sm:$0xff]
    %v106 = vld [vmem:[#allocation2 + $0x8] sm:$0xff]
    %v107 = vld [vmem:[#allocation2 + $0x10] sm:$0xff]
    %v108 = vld [vmem:[#allocation2 + $0x18] sm:$0xff]
    %v109 = vld [vmem:[#allocation2 + $0x20] sm:$0xff]
    %v110 = vld [vmem:[#allocation2 + $0x28] sm:$0xff]
    %v111 = vld [vmem:[#allocation2 + $0x30] sm:$0xff]
    %v112 = vld [vmem:[#allocation2 + $0x38] sm:$0xff]
    %v113 = vld [vmem:[#allocation2 + $0x40] sm:$0xff]
    %v114 = vld [vmem:[#allocation2 + $0x48] sm:$0xff]
    %v115 = vld [vmem:[#allocation2 + $0x50] sm:$0xff]
    %v116 = vld [vmem:[#allocation2 + $0x58] sm:$0xff]
    %v117 = vld [vmem:[#allocation2 + $0x60] sm:$0xff]
    %v118 = vld [vmem:[#allocation2 + $0x68] sm:$0xff]
    %v119 = vld [vmem:[#allocation2 + $0x70] sm:$0xff]
    %v120 = vld [vmem:[#allocation2 + $0x78] sm:$0xff]
    %v121 = vld [vmem:[#allocation2 + $0x80] sm:$0xff]
    %v122 = vld [vmem:[#allocation2 + $0x88] sm:$0xff]
    %v123 = vld [vmem:[#allocation2 + $0x90] sm:$0xff]
    %v124 = vld [vmem:[#allocation2 + $0x98] sm:$0xff]
    %v125 = vld [vmem:[#allocation2 + $0xa0] sm:$0xff]
    %v126 = vld [vmem:[#allocation2 + $0xa8] sm:$0xff]
    %v127 = vld [vmem:[#allocation2 + $0xb0] sm:$0xff]
    %v128 = vld [vmem:[#allocation2 + $0xb8] sm:$0xff]
    %v129 = vld [vmem:[#allocation2 + $0xc0] sm:$0xff]
    %v130 = vld [vmem:[#allocation2 + $0xc8] sm:$0xff]
    %v131 = vld [vmem:[#allocation2 + $0xd0] sm:$0xff]
    %v132 = vld [vmem:[#allocation2 + $0xd8] sm:$0xff]
    %v133 = vld [vmem:[#allocation2 + $0xe0] sm:$0xff]
    %v134 = vld [vmem:[#allocation2 + $0xe8] sm:$0xff]
    %v135 = vld [vmem:[#allocation2 + $0xf0] sm:$0xff]
    %v136 = vld [vmem:[#allocation2 + $0xf8] sm:$0xff]
    %s137 = scalar_lea.vmem [#allocation2], 256
    %v138 = vld [vmem:[%s137] sm:$0xff]
    %v139 = vld [vmem:[%s137 + $0x8] sm:$0xff]
    %v140 = vld [vmem:[%s137 + $0x10] sm:$0xff]
    %v141 = vld [vmem:[%s137 + $0x18] sm:$0xff]
    %v142 = vld [vmem:[%s137 + $0x20] sm:$0xff]
    %v143 = vld [vmem:[%s137 + $0x28] sm:$0xff]
    %v144 = vld [vmem:[%s137 + $0x30] sm:$0xff]
    %v145 = vld [vmem:[%s137 + $0x38] sm:$0xff]
    %v146 = vld [vmem:[%s137 + $0x40] sm:$0xff]
    %v147 = vld [vmem:[%s137 + $0x48] sm:$0xff]
    %v148 = vld [vmem:[%s137 + $0x50] sm:$0xff]
    %v149 = vld [vmem:[%s137 + $0x58] sm:$0xff]
    %v150 = vld [vmem:[%s137 + $0x60] sm:$0xff]
    %v151 = vld [vmem:[%s137 + $0x68] sm:$0xff]
    %v152 = vld [vmem:[%s137 + $0x70] sm:$0xff]
    %v153 = vld [vmem:[%s137 + $0x78] sm:$0xff]
    %v154 = vld [vmem:[%s137 + $0x80] sm:$0xff]
    %v155 = vld [vmem:[%s137 + $0x88] sm:$0xff]
    %v156 = vld [vmem:[%s137 + $0x90] sm:$0xff]
    %v157 = vld [vmem:[%s137 + $0x98] sm:$0xff]
    %v158 = vld [vmem:[%s137 + $0xa0] sm:$0xff]
    %v159 = vld [vmem:[%s137 + $0xa8] sm:$0xff]
    %v160 = vld [vmem:[%s137 + $0xb0] sm:$0xff]
    %v161 = vld [vmem:[%s137 + $0xb8] sm:$0xff]
    %v162 = vld [vmem:[%s137 + $0xc0] sm:$0xff]
    %v163 = vld [vmem:[%s137 + $0xc8] sm:$0xff]
    %v164 = vld [vmem:[%s137 + $0xd0] sm:$0xff]
    %v165 = vld [vmem:[%s137 + $0xd8] sm:$0xff]
    %v166 = vld [vmem:[%s137 + $0xe0] sm:$0xff]
    %v167 = vld [vmem:[%s137 + $0xe8] sm:$0xff]
    %v168 = vld [vmem:[%s137 + $0xf0] sm:$0xff]
    %v169 = vld [vmem:[%s137 + $0xf8] sm:$0xff]
    %vm202 = vcmask 1046528
    %v203 = vrot.slane %v73, 1
    %v204 = vrot.slane %v74, 1
    %v205 = vsel %vm202, %v203, %v204
    %v206 = vrot.slane %v75, 1
    %v207 = vsel %vm202, %v204, %v206
    %v208 = vrot.slane %v76, 1
    %v209 = vsel %vm202, %v206, %v208
    %v210 = vrot.slane %v77, 1
    %v211 = vsel %vm202, %v208, %v210
    %v212 = vrot.slane %v78, 1
    %v213 = vsel %vm202, %v210, %v212
    %v214 = vrot.slane %v79, 1
    %v215 = vsel %vm202, %v212, %v214
    %v216 = vrot.slane %v80, 1
    %v217 = vsel %vm202, %v214, %v216
    %v218 = vrot.slane %v81, 1
    %v219 = vsel %vm202, %v216, %v218
    %v220 = vrot.slane %v82, 1
    %v221 = vsel %vm202, %v218, %v220
    %v222 = vrot.slane %v83, 1
    %v223 = vsel %vm202, %v220, %v222
    %v224 = vrot.slane %v84, 1
    %v225 = vsel %vm202, %v222, %v224
    %v226 = vrot.slane %v85, 1
    %v227 = vsel %vm202, %v224, %v226
    %v228 = vrot.slane %v86, 1
    %v229 = vsel %vm202, %v226, %v228
    %v230 = vrot.slane %v87, 1
    %v231 = vsel %vm202, %v228, %v230
    %v232 = vrot.slane %v88, 1
    %v233 = vsel %vm202, %v230, %v232
    %v234 = vrot.slane %v89, 1
    %v235 = vsel %vm202, %v232, %v234
    %v236 = vrot.slane %v90, 1
    %v237 = vsel %vm202, %v234, %v236
    %v238 = vrot.slane %v91, 1
    %v239 = vsel %vm202, %v236, %v238
    %v240 = vrot.slane %v92, 1
    %v241 = vsel %vm202, %v238, %v240
    %v242 = vrot.slane %v93, 1
    %v243 = vsel %vm202, %v240, %v242
    %v244 = vrot.slane %v94, 1
    %v245 = vsel %vm202, %v242, %v244
    %v246 = vrot.slane %v95, 1
    %v247 = vsel %vm202, %v244, %v246
    %v248 = vrot.slane %v96, 1
    %v249 = vsel %vm202, %v246, %v248
    %v250 = vrot.slane %v97, 1
    %v251 = vsel %vm202, %v248, %v250
    %v252 = vrot.slane %v98, 1
    %v253 = vsel %vm202, %v250, %v252
    %v254 = vrot.slane %v99, 1
    %v255 = vsel %vm202, %v252, %v254
    %v256 = vrot.slane %v100, 1
    %v257 = vsel %vm202, %v254, %v256
    %v258 = vrot.slane %v101, 1
    %v259 = vsel %vm202, %v256, %v258
    %v260 = vrot.slane %v102, 1
    %v261 = vsel %vm202, %v258, %v260
    %v262 = vrot.slane %v103, 1
    %v263 = vsel %vm202, %v260, %v262
    %v264 = vrot.slane %v104, 1
    %v265 = vsel %vm202, %v262, %v264
    %298 = vmatpush.msra.mxu0 %v168
    %299 = vmatpush.msra.mxu0 %v166
    %300 = vmatpush.msra.mxu0 %v164
    %301 = vmatpush.msra.mxu0 %v162
    %302 = vmatpush.msra.mxu0 %v160
    %303 = vmatpush.msra.mxu0 %v158
    %304 = vmatpush.msra.mxu0 %v156
    %305 = vmatpush.msra.mxu0 %v154
    %306 = vmatpush.msra.mxu0 %v152
    %307 = vmatpush.msra.mxu0 %v150
    %308 = vmatpush.msra.mxu0 %v148
    %309 = vmatpush.msra.mxu0 %v146
    %310 = vmatpush.msra.mxu0 %v144
    %311 = vmatpush.msra.mxu0 %v142
    %312 = vmatpush.msra.mxu0 %v140
    %313 = vmatpush.msra.mxu0 %v138
    %314 = vmatmul.f32.gmra.mxu0 %v205
    %v315 = vpop.f32.mrf.mxu0
    %v316 = vadd.f32 0.0, %v315
    %317 = vmatmul.f32.gmra.mxu0 %v207
    %v318 = vpop.f32.mrf.mxu0
    %v319 = vadd.f32 0.0, %v318
    %320 = vmatmul.f32.gmra.mxu0 %v209
    %v321 = vpop.f32.mrf.mxu0
    %v322 = vadd.f32 0.0, %v321
    %323 = vmatmul.f32.gmra.mxu0 %v211
    %v324 = vpop.f32.mrf.mxu0
    %v325 = vadd.f32 0.0, %v324
    %326 = vmatmul.f32.gmra.mxu0 %v213
    %v327 = vpop.f32.mrf.mxu0
    %v328 = vadd.f32 0.0, %v327
    %329 = vmatmul.f32.gmra.mxu0 %v215
    %v330 = vpop.f32.mrf.mxu0
    %v331 = vadd.f32 0.0, %v330
    %332 = vmatmul.f32.gmra.mxu0 %v217
    %v333 = vpop.f32.mrf.mxu0
    %v334 = vadd.f32 0.0, %v333
    %335 = vmatmul.f32.gmra.mxu0 %v219
    %v336 = vpop.f32.mrf.mxu0
    %v337 = vadd.f32 0.0, %v336
    %338 = vmatmul.f32.gmra.mxu0 %v221
    %v339 = vpop.f32.mrf.mxu0
    %v340 = vadd.f32 0.0, %v339
    %341 = vmatmul.f32.gmra.mxu0 %v223
    %v342 = vpop.f32.mrf.mxu0
    %v343 = vadd.f32 0.0, %v342
    %344 = vmatmul.f32.gmra.mxu0 %v225
    %v345 = vpop.f32.mrf.mxu0
    %v346 = vadd.f32 0.0, %v345
    %347 = vmatmul.f32.gmra.mxu0 %v227
    %v348 = vpop.f32.mrf.mxu0
    %v349 = vadd.f32 0.0, %v348
    %350 = vmatmul.f32.gmra.mxu0 %v229
    %v351 = vpop.f32.mrf.mxu0
    %v352 = vadd.f32 0.0, %v351
    %353 = vmatmul.f32.gmra.mxu0 %v231
    %v354 = vpop.f32.mrf.mxu0
    %v355 = vadd.f32 0.0, %v354
    %356 = vmatmul.f32.gmra.mxu0 %v233
    %v357 = vpop.f32.mrf.mxu0
    %v358 = vadd.f32 0.0, %v357
    %359 = vmatmul.f32.gmra.mxu0 %v235
    %v360 = vpop.f32.mrf.mxu0
    %v361 = vadd.f32 0.0, %v360
    %362 = vmatmul.f32.gmra.mxu0 %v237
    %v363 = vpop.f32.mrf.mxu0
    %v364 = vadd.f32 0.0, %v363
    %365 = vmatmul.f32.gmra.mxu0 %v239
    %v366 = vpop.f32.mrf.mxu0
    %v367 = vadd.f32 0.0, %v366
    %368 = vmatmul.f32.gmra.mxu0 %v241
    %v369 = vpop.f32.mrf.mxu0
    %v370 = vadd.f32 0.0, %v369
    %371 = vmatmul.f32.gmra.mxu0 %v243
    %v372 = vpop.f32.mrf.mxu0
    %v373 = vadd.f32 0.0, %v372
    %374 = vmatmul.f32.gmra.mxu0 %v245
    %v375 = vpop.f32.mrf.mxu0
    %v376 = vadd.f32 0.0, %v375
    %377 = vmatmul.f32.gmra.mxu0 %v247
    %v378 = vpop.f32.mrf.mxu0
    %v379 = vadd.f32 0.0, %v378
    %380 = vmatmul.f32.gmra.mxu0 %v249
    %v381 = vpop.f32.mrf.mxu0
    %v382 = vadd.f32 0.0, %v381
    %383 = vmatmul.f32.gmra.mxu0 %v251
    %v384 = vpop.f32.mrf.mxu0
    %v385 = vadd.f32 0.0, %v384
    %386 = vmatmul.f32.gmra.mxu0 %v253
    %v387 = vpop.f32.mrf.mxu0
    %v388 = vadd.f32 0.0, %v387
    %389 = vmatmul.f32.gmra.mxu0 %v255
    %v390 = vpop.f32.mrf.mxu0
    %v391 = vadd.f32 0.0, %v390
    %392 = vmatmul.f32.gmra.mxu0 %v257
    %v393 = vpop.f32.mrf.mxu0
    %v394 = vadd.f32 0.0, %v393
    %395 = vmatmul.f32.gmra.mxu0 %v259
    %v396 = vpop.f32.mrf.mxu0
    %v397 = vadd.f32 0.0, %v396
    %398 = vmatmul.f32.gmra.mxu0 %v261
    %v399 = vpop.f32.mrf.mxu0
    %v400 = vadd.f32 0.0, %v399
    %401 = vmatmul.f32.gmra.mxu0 %v263
    %v402 = vpop.f32.mrf.mxu0
    %v403 = vadd.f32 0.0, %v402
    %404 = vmatmul.f32.gmra.mxu0 %v265
    %v405 = vpop.f32.mrf.mxu0
    %v406 = vadd.f32 0.0, %v405
    %407 = vmatmul.f32.gmra.mxu0 %v264
    %v408 = vpop.f32.mrf.mxu0
    %v409 = vadd.f32 0.0, %v408
    %410 = vdwg.mxu0
    %411 = vmatpush.msra.mxu0 %v169
    %412 = vmatpush.msra.mxu0 %v167
    %413 = vmatpush.msra.mxu0 %v165
    %414 = vmatpush.msra.mxu0 %v163
    %415 = vmatpush.msra.mxu0 %v161
    %416 = vmatpush.msra.mxu0 %v159
    %417 = vmatpush.msra.mxu0 %v157
    %418 = vmatpush.msra.mxu0 %v155
    %419 = vmatpush.msra.mxu0 %v153
    %420 = vmatpush.msra.mxu0 %v151
    %421 = vmatpush.msra.mxu0 %v149
    %422 = vmatpush.msra.mxu0 %v147
    %423 = vmatpush.msra.mxu0 %v145
    %424 = vmatpush.msra.mxu0 %v143
    %425 = vmatpush.msra.mxu0 %v141
    %426 = vmatpush.msra.mxu0 %v139
    %427 = vmatmul.f32.gmra.mxu0 %v205
    %v428 = vpop.f32.mrf.mxu0
    %v429 = vadd.f32 0.0, %v428
    %430 = vmatmul.f32.gmra.mxu0 %v207
    %v431 = vpop.f32.mrf.mxu0
    %v432 = vadd.f32 0.0, %v431
    %433 = vmatmul.f32.gmra.mxu0 %v209
    %v434 = vpop.f32.mrf.mxu0
    %v435 = vadd.f32 0.0, %v434
    %436 = vmatmul.f32.gmra.mxu0 %v211
    %v437 = vpop.f32.mrf.mxu0
    %v438 = vadd.f32 0.0, %v437
    %439 = vmatmul.f32.gmra.mxu0 %v213
    %v440 = vpop.f32.mrf.mxu0
    %v441 = vadd.f32 0.0, %v440
    %442 = vmatmul.f32.gmra.mxu0 %v215
    %v443 = vpop.f32.mrf.mxu0
    %v444 = vadd.f32 0.0, %v443
    %445 = vmatmul.f32.gmra.mxu0 %v217
    %v446 = vpop.f32.mrf.mxu0
    %v447 = vadd.f32 0.0, %v446
    %448 = vmatmul.f32.gmra.mxu0 %v219
    %v449 = vpop.f32.mrf.mxu0
    %v450 = vadd.f32 0.0, %v449
    %451 = vmatmul.f32.gmra.mxu0 %v221
    %v452 = vpop.f32.mrf.mxu0
    %v453 = vadd.f32 0.0, %v452
    %454 = vmatmul.f32.gmra.mxu0 %v223
    %v455 = vpop.f32.mrf.mxu0
    %v456 = vadd.f32 0.0, %v455
    %457 = vmatmul.f32.gmra.mxu0 %v225
    %v458 = vpop.f32.mrf.mxu0
    %v459 = vadd.f32 0.0, %v458
    %460 = vmatmul.f32.gmra.mxu0 %v227
    %v461 = vpop.f32.mrf.mxu0
    %v462 = vadd.f32 0.0, %v461
    %463 = vmatmul.f32.gmra.mxu0 %v229
    %v464 = vpop.f32.mrf.mxu0
    %v465 = vadd.f32 0.0, %v464
    %466 = vmatmul.f32.gmra.mxu0 %v231
    %v467 = vpop.f32.mrf.mxu0
    %v468 = vadd.f32 0.0, %v467
    %469 = vmatmul.f32.gmra.mxu0 %v233
    %v470 = vpop.f32.mrf.mxu0
    %v471 = vadd.f32 0.0, %v470
    %472 = vmatmul.f32.gmra.mxu0 %v235
    %v473 = vpop.f32.mrf.mxu0
    %v474 = vadd.f32 0.0, %v473
    %475 = vmatmul.f32.gmra.mxu0 %v237
    %v476 = vpop.f32.mrf.mxu0
    %v477 = vadd.f32 0.0, %v476
    %478 = vmatmul.f32.gmra.mxu0 %v239
    %v479 = vpop.f32.mrf.mxu0
    %v480 = vadd.f32 0.0, %v479
    %481 = vmatmul.f32.gmra.mxu0 %v241
    %v482 = vpop.f32.mrf.mxu0
    %v483 = vadd.f32 0.0, %v482
    %484 = vmatmul.f32.gmra.mxu0 %v243
    %v485 = vpop.f32.mrf.mxu0
    %v486 = vadd.f32 0.0, %v485
    %487 = vmatmul.f32.gmra.mxu0 %v245
    %v488 = vpop.f32.mrf.mxu0
    %v489 = vadd.f32 0.0, %v488
    %490 = vmatmul.f32.gmra.mxu0 %v247
    %v491 = vpop.f32.mrf.mxu0
    %v492 = vadd.f32 0.0, %v491
    %493 = vmatmul.f32.gmra.mxu0 %v249
    %v494 = vpop.f32.mrf.mxu0
    %v495 = vadd.f32 0.0, %v494
    %496 = vmatmul.f32.gmra.mxu0 %v251
    %v497 = vpop.f32.mrf.mxu0
    %v498 = vadd.f32 0.0, %v497
    %499 = vmatmul.f32.gmra.mxu0 %v253
    %v500 = vpop.f32.mrf.mxu0
    %v501 = vadd.f32 0.0, %v500
    %502 = vmatmul.f32.gmra.mxu0 %v255
    %v503 = vpop.f32.mrf.mxu0
    %v504 = vadd.f32 0.0, %v503
    %505 = vmatmul.f32.gmra.mxu0 %v257
    %v506 = vpop.f32.mrf.mxu0
    %v507 = vadd.f32 0.0, %v506
    %508 = vmatmul.f32.gmra.mxu0 %v259
    %v509 = vpop.f32.mrf.mxu0
    %v510 = vadd.f32 0.0, %v509
    %511 = vmatmul.f32.gmra.mxu0 %v261
    %v512 = vpop.f32.mrf.mxu0
    %v513 = vadd.f32 0.0, %v512
    %514 = vmatmul.f32.gmra.mxu0 %v263
    %v515 = vpop.f32.mrf.mxu0
    %v516 = vadd.f32 0.0, %v515
    %517 = vmatmul.f32.gmra.mxu0 %v265
    %v518 = vpop.f32.mrf.mxu0
    %v519 = vadd.f32 0.0, %v518
    %520 = vmatmul.f32.gmra.mxu0 %v264
    %v521 = vpop.f32.mrf.mxu0
    %v522 = vadd.f32 0.0, %v521
    %523 = vdwg.mxu0
    %524 = vmatpush.msra.mxu0 %v135
    %525 = vmatpush.msra.mxu0 %v133
    %526 = vmatpush.msra.mxu0 %v131
    %527 = vmatpush.msra.mxu0 %v129
    %528 = vmatpush.msra.mxu0 %v127
    %529 = vmatpush.msra.mxu0 %v125
    %530 = vmatpush.msra.mxu0 %v123
    %531 = vmatpush.msra.mxu0 %v121
    %532 = vmatpush.msra.mxu0 %v119
    %533 = vmatpush.msra.mxu0 %v117
    %534 = vmatpush.msra.mxu0 %v115
    %535 = vmatpush.msra.mxu0 %v113
    %536 = vmatpush.msra.mxu0 %v111
    %537 = vmatpush.msra.mxu0 %v109
    %538 = vmatpush.msra.mxu0 %v107
    %539 = vmatpush.msra.mxu0 %v105
    %540 = vmatmul.f32.gmra.mxu0 %v73
    %v541 = vpop.f32.mrf.mxu0
    %v542 = vadd.f32 %v316, %v541
    %543 = vmatmul.f32.gmra.mxu0 %v74
    %v544 = vpop.f32.mrf.mxu0
    %v545 = vadd.f32 %v319, %v544
    %546 = vmatmul.f32.gmra.mxu0 %v75
    %v547 = vpop.f32.mrf.mxu0
    %v548 = vadd.f32 %v322, %v547
    %549 = vmatmul.f32.gmra.mxu0 %v76
    %v550 = vpop.f32.mrf.mxu0
    %v551 = vadd.f32 %v325, %v550
    %552 = vmatmul.f32.gmra.mxu0 %v77
    %v553 = vpop.f32.mrf.mxu0
    %v554 = vadd.f32 %v328, %v553
    %555 = vmatmul.f32.gmra.mxu0 %v78
    %v556 = vpop.f32.mrf.mxu0
    %v557 = vadd.f32 %v331, %v556
    %558 = vmatmul.f32.gmra.mxu0 %v79
    %v559 = vpop.f32.mrf.mxu0
    %v560 = vadd.f32 %v334, %v559
    %561 = vmatmul.f32.gmra.mxu0 %v80
    %v562 = vpop.f32.mrf.mxu0
    %v563 = vadd.f32 %v337, %v562
    %564 = vmatmul.f32.gmra.mxu0 %v81
    %v565 = vpop.f32.mrf.mxu0
    %v566 = vadd.f32 %v340, %v565
    %567 = vmatmul.f32.gmra.mxu0 %v82
    %v568 = vpop.f32.mrf.mxu0
    %v569 = vadd.f32 %v343, %v568
    %570 = vmatmul.f32.gmra.mxu0 %v83
    %v571 = vpop.f32.mrf.mxu0
    %v572 = vadd.f32 %v346, %v571
    %573 = vmatmul.f32.gmra.mxu0 %v84
    %v574 = vpop.f32.mrf.mxu0
    %v575 = vadd.f32 %v349, %v574
    %576 = vmatmul.f32.gmra.mxu0 %v85
    %v577 = vpop.f32.mrf.mxu0
    %v578 = vadd.f32 %v352, %v577
    %579 = vmatmul.f32.gmra.mxu0 %v86
    %v580 = vpop.f32.mrf.mxu0
    %v581 = vadd.f32 %v355, %v580
    %582 = vmatmul.f32.gmra.mxu0 %v87
    %v583 = vpop.f32.mrf.mxu0
    %v584 = vadd.f32 %v358, %v583
    %585 = vmatmul.f32.gmra.mxu0 %v88
    %v586 = vpop.f32.mrf.mxu0
    %v587 = vadd.f32 %v361, %v586
    %588 = vmatmul.f32.gmra.mxu0 %v89
    %v589 = vpop.f32.mrf.mxu0
    %v590 = vadd.f32 %v364, %v589
    %591 = vmatmul.f32.gmra.mxu0 %v90
    %v592 = vpop.f32.mrf.mxu0
    %v593 = vadd.f32 %v367, %v592
    %594 = vmatmul.f32.gmra.mxu0 %v91
    %v595 = vpop.f32.mrf.mxu0
    %v596 = vadd.f32 %v370, %v595
    %597 = vmatmul.f32.gmra.mxu0 %v92
    %v598 = vpop.f32.mrf.mxu0
    %v599 = vadd.f32 %v373, %v598
    %600 = vmatmul.f32.gmra.mxu0 %v93
    %v601 = vpop.f32.mrf.mxu0
    %v602 = vadd.f32 %v376, %v601
    %603 = vmatmul.f32.gmra.mxu0 %v94
    %v604 = vpop.f32.mrf.mxu0
    %v605 = vadd.f32 %v379, %v604
    %606 = vmatmul.f32.gmra.mxu0 %v95
    %v607 = vpop.f32.mrf.mxu0
    %v608 = vadd.f32 %v382, %v607
    %609 = vmatmul.f32.gmra.mxu0 %v96
    %v610 = vpop.f32.mrf.mxu0
    %v611 = vadd.f32 %v385, %v610
    %612 = vmatmul.f32.gmra.mxu0 %v97
    %v613 = vpop.f32.mrf.mxu0
    %v614 = vadd.f32 %v388, %v613
    %615 = vmatmul.f32.gmra.mxu0 %v98
    %v616 = vpop.f32.mrf.mxu0
    %v617 = vadd.f32 %v391, %v616
    %618 = vmatmul.f32.gmra.mxu0 %v99
    %v619 = vpop.f32.mrf.mxu0
    %v620 = vadd.f32 %v394, %v619
    %621 = vmatmul.f32.gmra.mxu0 %v100
    %v622 = vpop.f32.mrf.mxu0
    %v623 = vadd.f32 %v397, %v622
    %624 = vmatmul.f32.gmra.mxu0 %v101
    %v625 = vpop.f32.mrf.mxu0
    %v626 = vadd.f32 %v400, %v625
    %627 = vmatmul.f32.gmra.mxu0 %v102
    %v628 = vpop.f32.mrf.mxu0
    %v629 = vadd.f32 %v403, %v628
    %630 = vmatmul.f32.gmra.mxu0 %v103
    %v631 = vpop.f32.mrf.mxu0
    %v632 = vadd.f32 %v406, %v631
    %633 = vmatmul.f32.gmra.mxu0 %v104
    %v634 = vpop.f32.mrf.mxu0
    %v635 = vadd.f32 %v409, %v634
    %636 = vdwg.mxu0
    %637 = vmatpush.msra.mxu0 %v136
    %638 = vmatpush.msra.mxu0 %v134
    %639 = vmatpush.msra.mxu0 %v132
    %640 = vmatpush.msra.mxu0 %v130
    %641 = vmatpush.msra.mxu0 %v128
    %642 = vmatpush.msra.mxu0 %v126
    %643 = vmatpush.msra.mxu0 %v124
    %644 = vmatpush.msra.mxu0 %v122
    %645 = vmatpush.msra.mxu0 %v120
    %646 = vmatpush.msra.mxu0 %v118
    %647 = vmatpush.msra.mxu0 %v116
    %648 = vmatpush.msra.mxu0 %v114
    %649 = vmatpush.msra.mxu0 %v112
    %650 = vmatpush.msra.mxu0 %v110
    %651 = vmatpush.msra.mxu0 %v108
    %652 = vmatpush.msra.mxu0 %v106
    %653 = vmatmul.f32.gmra.mxu0 %v73
    %v654 = vpop.f32.mrf.mxu0
    %v655 = vadd.f32 %v429, %v654
    %656 = vmatmul.f32.gmra.mxu0 %v74
    %v657 = vpop.f32.mrf.mxu0
    %v658 = vadd.f32 %v432, %v657
    %659 = vmatmul.f32.gmra.mxu0 %v75
    %v660 = vpop.f32.mrf.mxu0
    %v661 = vadd.f32 %v435, %v660
    %662 = vmatmul.f32.gmra.mxu0 %v76
    %v663 = vpop.f32.mrf.mxu0
    %v664 = vadd.f32 %v438, %v663
    %665 = vmatmul.f32.gmra.mxu0 %v77
    %v666 = vpop.f32.mrf.mxu0
    %v667 = vadd.f32 %v441, %v666
    %668 = vmatmul.f32.gmra.mxu0 %v78
    %v669 = vpop.f32.mrf.mxu0
    %v670 = vadd.f32 %v444, %v669
    %671 = vmatmul.f32.gmra.mxu0 %v79
    %v672 = vpop.f32.mrf.mxu0
    %v673 = vadd.f32 %v447, %v672
    %674 = vmatmul.f32.gmra.mxu0 %v80
    %v675 = vpop.f32.mrf.mxu0
    %v676 = vadd.f32 %v450, %v675
    %677 = vmatmul.f32.gmra.mxu0 %v81
    %v678 = vpop.f32.mrf.mxu0
    %v679 = vadd.f32 %v453, %v678
    %680 = vmatmul.f32.gmra.mxu0 %v82
    %v681 = vpop.f32.mrf.mxu0
    %v682 = vadd.f32 %v456, %v681
    %683 = vmatmul.f32.gmra.mxu0 %v83
    %v684 = vpop.f32.mrf.mxu0
    %v685 = vadd.f32 %v459, %v684
    %686 = vmatmul.f32.gmra.mxu0 %v84
    %v687 = vpop.f32.mrf.mxu0
    %v688 = vadd.f32 %v462, %v687
    %689 = vmatmul.f32.gmra.mxu0 %v85
    %v690 = vpop.f32.mrf.mxu0
    %v691 = vadd.f32 %v465, %v690
    %692 = vmatmul.f32.gmra.mxu0 %v86
    %v693 = vpop.f32.mrf.mxu0
    %v694 = vadd.f32 %v468, %v693
    %695 = vmatmul.f32.gmra.mxu0 %v87
    %v696 = vpop.f32.mrf.mxu0
    %v697 = vadd.f32 %v471, %v696
    %698 = vmatmul.f32.gmra.mxu0 %v88
    %v699 = vpop.f32.mrf.mxu0
    %v700 = vadd.f32 %v474, %v699
    %701 = vmatmul.f32.gmra.mxu0 %v89
    %v702 = vpop.f32.mrf.mxu0
    %v703 = vadd.f32 %v477, %v702
    %704 = vmatmul.f32.gmra.mxu0 %v90
    %v705 = vpop.f32.mrf.mxu0
    %v706 = vadd.f32 %v480, %v705
    %707 = vmatmul.f32.gmra.mxu0 %v91
    %v708 = vpop.f32.mrf.mxu0
    %v709 = vadd.f32 %v483, %v708
    %710 = vmatmul.f32.gmra.mxu0 %v92
    %v711 = vpop.f32.mrf.mxu0
    %v712 = vadd.f32 %v486, %v711
    %713 = vmatmul.f32.gmra.mxu0 %v93
    %v714 = vpop.f32.mrf.mxu0
    %v715 = vadd.f32 %v489, %v714
    %716 = vmatmul.f32.gmra.mxu0 %v94
    %v717 = vpop.f32.mrf.mxu0
    %v718 = vadd.f32 %v492, %v717
    %719 = vmatmul.f32.gmra.mxu0 %v95
    %v720 = vpop.f32.mrf.mxu0
    %v721 = vadd.f32 %v495, %v720
    %722 = vmatmul.f32.gmra.mxu0 %v96
    %v723 = vpop.f32.mrf.mxu0
    %v724 = vadd.f32 %v498, %v723
    %725 = vmatmul.f32.gmra.mxu0 %v97
    %v726 = vpop.f32.mrf.mxu0
    %v727 = vadd.f32 %v501, %v726
    %728 = vmatmul.f32.gmra.mxu0 %v98
    %v729 = vpop.f32.mrf.mxu0
    %v730 = vadd.f32 %v504, %v729
    %731 = vmatmul.f32.gmra.mxu0 %v99
    %v732 = vpop.f32.mrf.mxu0
    %v733 = vadd.f32 %v507, %v732
    %734 = vmatmul.f32.gmra.mxu0 %v100
    %v735 = vpop.f32.mrf.mxu0
    %v736 = vadd.f32 %v510, %v735
    %737 = vmatmul.f32.gmra.mxu0 %v101
    %v738 = vpop.f32.mrf.mxu0
    %v739 = vadd.f32 %v513, %v738
    %740 = vmatmul.f32.gmra.mxu0 %v102
    %v741 = vpop.f32.mrf.mxu0
    %v742 = vadd.f32 %v516, %v741
    %743 = vmatmul.f32.gmra.mxu0 %v103
    %v744 = vpop.f32.mrf.mxu0
    %v745 = vadd.f32 %v519, %v744
    %746 = vmatmul.f32.gmra.mxu0 %v104
    %v747 = vpop.f32.mrf.mxu0
    %v748 = vadd.f32 %v522, %v747
    %749 = vdwg.mxu0
    %s750 = scalar_lea.vmem [#allocation2], 512
    %v751 = vld [vmem:[%s750] sm:$0xff]
    %v752 = vld [vmem:[%s750 + $0x8] sm:$0xff]
    %v753 = vld [vmem:[%s750 + $0x10] sm:$0xff]
    %v754 = vld [vmem:[%s750 + $0x18] sm:$0xff]
    %v755 = vld [vmem:[%s750 + $0x20] sm:$0xff]
    %v756 = vld [vmem:[%s750 + $0x28] sm:$0xff]
    %v757 = vld [vmem:[%s750 + $0x30] sm:$0xff]
    %v758 = vld [vmem:[%s750 + $0x38] sm:$0xff]
    %v759 = vld [vmem:[%s750 + $0x40] sm:$0xff]
    %v760 = vld [vmem:[%s750 + $0x48] sm:$0xff]
    %v761 = vld [vmem:[%s750 + $0x50] sm:$0xff]
    %v762 = vld [vmem:[%s750 + $0x58] sm:$0xff]
    %v763 = vld [vmem:[%s750 + $0x60] sm:$0xff]
    %v764 = vld [vmem:[%s750 + $0x68] sm:$0xff]
    %v765 = vld [vmem:[%s750 + $0x70] sm:$0xff]
    %v766 = vld [vmem:[%s750 + $0x78] sm:$0xff]
    %v767 = vld [vmem:[%s750 + $0x80] sm:$0xff]
    %v768 = vld [vmem:[%s750 + $0x88] sm:$0xff]
    %v769 = vld [vmem:[%s750 + $0x90] sm:$0xff]
    %v770 = vld [vmem:[%s750 + $0x98] sm:$0xff]
    %v771 = vld [vmem:[%s750 + $0xa0] sm:$0xff]
    %v772 = vld [vmem:[%s750 + $0xa8] sm:$0xff]
    %v773 = vld [vmem:[%s750 + $0xb0] sm:$0xff]
    %v774 = vld [vmem:[%s750 + $0xb8] sm:$0xff]
    %v775 = vld [vmem:[%s750 + $0xc0] sm:$0xff]
    %v776 = vld [vmem:[%s750 + $0xc8] sm:$0xff]
    %v777 = vld [vmem:[%s750 + $0xd0] sm:$0xff]
    %v778 = vld [vmem:[%s750 + $0xd8] sm:$0xff]
    %v779 = vld [vmem:[%s750 + $0xe0] sm:$0xff]
    %v780 = vld [vmem:[%s750 + $0xe8] sm:$0xff]
    %v781 = vld [vmem:[%s750 + $0xf0] sm:$0xff]
    %v782 = vld [vmem:[%s750 + $0xf8] sm:$0xff]
    %vm783 = vcmask 1045504
    %v784 = vrot.slane %v73, 2
    %v785 = vrot.slane %v74, 2
    %v786 = vsel %vm783, %v784, %v785
    %v787 = vrot.slane %v75, 2
    %v788 = vsel %vm783, %v785, %v787
    %v789 = vrot.slane %v76, 2
    %v790 = vsel %vm783, %v787, %v789
    %v791 = vrot.slane %v77, 2
    %v792 = vsel %vm783, %v789, %v791
    %v793 = vrot.slane %v78, 2
    %v794 = vsel %vm783, %v791, %v793
    %v795 = vrot.slane %v79, 2
    %v796 = vsel %vm783, %v793, %v795
    %v797 = vrot.slane %v80, 2
    %v798 = vsel %vm783, %v795, %v797
    %v799 = vrot.slane %v81, 2
    %v800 = vsel %vm783, %v797, %v799
    %v801 = vrot.slane %v82, 2
    %v802 = vsel %vm783, %v799, %v801
    %v803 = vrot.slane %v83, 2
    %v804 = vsel %vm783, %v801, %v803
    %v805 = vrot.slane %v84, 2
    %v806 = vsel %vm783, %v803, %v805
    %v807 = vrot.slane %v85, 2
    %v808 = vsel %vm783, %v805, %v807
    %v809 = vrot.slane %v86, 2
    %v810 = vsel %vm783, %v807, %v809
    %v811 = vrot.slane %v87, 2
    %v812 = vsel %vm783, %v809, %v811
    %v813 = vrot.slane %v88, 2
    %v814 = vsel %vm783, %v811, %v813
    %v815 = vrot.slane %v89, 2
    %v816 = vsel %vm783, %v813, %v815
    %v817 = vrot.slane %v90, 2
    %v818 = vsel %vm783, %v815, %v817
    %v819 = vrot.slane %v91, 2
    %v820 = vsel %vm783, %v817, %v819
    %v821 = vrot.slane %v92, 2
    %v822 = vsel %vm783, %v819, %v821
    %v823 = vrot.slane %v93, 2
    %v824 = vsel %vm783, %v821, %v823
    %v825 = vrot.slane %v94, 2
    %v826 = vsel %vm783, %v823, %v825
    %v827 = vrot.slane %v95, 2
    %v828 = vsel %vm783, %v825, %v827
    %v829 = vrot.slane %v96, 2
    %v830 = vsel %vm783, %v827, %v829
    %v831 = vrot.slane %v97, 2
    %v832 = vsel %vm783, %v829, %v831
    %v833 = vrot.slane %v98, 2
    %v834 = vsel %vm783, %v831, %v833
    %v835 = vrot.slane %v99, 2
    %v836 = vsel %vm783, %v833, %v835
    %v837 = vrot.slane %v100, 2
    %v838 = vsel %vm783, %v835, %v837
    %v839 = vrot.slane %v101, 2
    %v840 = vsel %vm783, %v837, %v839
    %v841 = vrot.slane %v102, 2
    %v842 = vsel %vm783, %v839, %v841
    %v843 = vrot.slane %v103, 2
    %v844 = vsel %vm783, %v841, %v843
    %v845 = vrot.slane %v104, 2
    %v846 = vsel %vm783, %v843, %v845
    %879 = vmatpush.msra.mxu0 %v781
    %880 = vmatpush.msra.mxu0 %v779
    %881 = vmatpush.msra.mxu0 %v777
    %882 = vmatpush.msra.mxu0 %v775
    %883 = vmatpush.msra.mxu0 %v773
    %884 = vmatpush.msra.mxu0 %v771
    %885 = vmatpush.msra.mxu0 %v769
    %886 = vmatpush.msra.mxu0 %v767
    %887 = vmatpush.msra.mxu0 %v765
    %888 = vmatpush.msra.mxu0 %v763
    %889 = vmatpush.msra.mxu0 %v761
    %890 = vmatpush.msra.mxu0 %v759
    %891 = vmatpush.msra.mxu0 %v757
    %892 = vmatpush.msra.mxu0 %v755
    %893 = vmatpush.msra.mxu0 %v753
    %894 = vmatpush.msra.mxu0 %v751
    %895 = vmatmul.f32.gmra.mxu0 %v786
    %v896 = vpop.f32.mrf.mxu0
    %v897 = vadd.f32 0.0, %v896
    %898 = vmatmul.f32.gmra.mxu0 %v788
    %v899 = vpop.f32.mrf.mxu0
    %v900 = vadd.f32 0.0, %v899
    %901 = vmatmul.f32.gmra.mxu0 %v790
    %v902 = vpop.f32.mrf.mxu0
    %v903 = vadd.f32 0.0, %v902
    %904 = vmatmul.f32.gmra.mxu0 %v792
    %v905 = vpop.f32.mrf.mxu0
    %v906 = vadd.f32 0.0, %v905
    %907 = vmatmul.f32.gmra.mxu0 %v794
    %v908 = vpop.f32.mrf.mxu0
    %v909 = vadd.f32 0.0, %v908
    %910 = vmatmul.f32.gmra.mxu0 %v796
    %v911 = vpop.f32.mrf.mxu0
    %v912 = vadd.f32 0.0, %v911
    %913 = vmatmul.f32.gmra.mxu0 %v798
    %v914 = vpop.f32.mrf.mxu0
    %v915 = vadd.f32 0.0, %v914
    %916 = vmatmul.f32.gmra.mxu0 %v800
    %v917 = vpop.f32.mrf.mxu0
    %v918 = vadd.f32 0.0, %v917
    %919 = vmatmul.f32.gmra.mxu0 %v802
    %v920 = vpop.f32.mrf.mxu0
    %v921 = vadd.f32 0.0, %v920
    %922 = vmatmul.f32.gmra.mxu0 %v804
    %v923 = vpop.f32.mrf.mxu0
    %v924 = vadd.f32 0.0, %v923
    %925 = vmatmul.f32.gmra.mxu0 %v806
    %v926 = vpop.f32.mrf.mxu0
    %v927 = vadd.f32 0.0, %v926
    %928 = vmatmul.f32.gmra.mxu0 %v808
    %v929 = vpop.f32.mrf.mxu0
    %v930 = vadd.f32 0.0, %v929
    %931 = vmatmul.f32.gmra.mxu0 %v810
    %v932 = vpop.f32.mrf.mxu0
    %v933 = vadd.f32 0.0, %v932
    %934 = vmatmul.f32.gmra.mxu0 %v812
    %v935 = vpop.f32.mrf.mxu0
    %v936 = vadd.f32 0.0, %v935
    %937 = vmatmul.f32.gmra.mxu0 %v814
    %v938 = vpop.f32.mrf.mxu0
    %v939 = vadd.f32 0.0, %v938
    %940 = vmatmul.f32.gmra.mxu0 %v816
    %v941 = vpop.f32.mrf.mxu0
    %v942 = vadd.f32 0.0, %v941
    %943 = vmatmul.f32.gmra.mxu0 %v818
    %v944 = vpop.f32.mrf.mxu0
    %v945 = vadd.f32 0.0, %v944
    %946 = vmatmul.f32.gmra.mxu0 %v820
    %v947 = vpop.f32.mrf.mxu0
    %v948 = vadd.f32 0.0, %v947
    %949 = vmatmul.f32.gmra.mxu0 %v822
    %v950 = vpop.f32.mrf.mxu0
    %v951 = vadd.f32 0.0, %v950
    %952 = vmatmul.f32.gmra.mxu0 %v824
    %v953 = vpop.f32.mrf.mxu0
    %v954 = vadd.f32 0.0, %v953
    %955 = vmatmul.f32.gmra.mxu0 %v826
    %v956 = vpop.f32.mrf.mxu0
    %v957 = vadd.f32 0.0, %v956
    %958 = vmatmul.f32.gmra.mxu0 %v828
    %v959 = vpop.f32.mrf.mxu0
    %v960 = vadd.f32 0.0, %v959
    %961 = vmatmul.f32.gmra.mxu0 %v830
    %v962 = vpop.f32.mrf.mxu0
    %v963 = vadd.f32 0.0, %v962
    %964 = vmatmul.f32.gmra.mxu0 %v832
    %v965 = vpop.f32.mrf.mxu0
    %v966 = vadd.f32 0.0, %v965
    %967 = vmatmul.f32.gmra.mxu0 %v834
    %v968 = vpop.f32.mrf.mxu0
    %v969 = vadd.f32 0.0, %v968
    %970 = vmatmul.f32.gmra.mxu0 %v836
    %v971 = vpop.f32.mrf.mxu0
    %v972 = vadd.f32 0.0, %v971
    %973 = vmatmul.f32.gmra.mxu0 %v838
    %v974 = vpop.f32.mrf.mxu0
    %v975 = vadd.f32 0.0, %v974
    %976 = vmatmul.f32.gmra.mxu0 %v840
    %v977 = vpop.f32.mrf.mxu0
    %v978 = vadd.f32 0.0, %v977
    %979 = vmatmul.f32.gmra.mxu0 %v842
    %v980 = vpop.f32.mrf.mxu0
    %v981 = vadd.f32 0.0, %v980
    %982 = vmatmul.f32.gmra.mxu0 %v844
    %v983 = vpop.f32.mrf.mxu0
    %v984 = vadd.f32 0.0, %v983
    %985 = vmatmul.f32.gmra.mxu0 %v846
    %v986 = vpop.f32.mrf.mxu0
    %v987 = vadd.f32 0.0, %v986
    %988 = vmatmul.f32.gmra.mxu0 %v845
    %v989 = vpop.f32.mrf.mxu0
    %v990 = vadd.f32 0.0, %v989
    %991 = vdwg.mxu0
    %992 = vmatpush.msra.mxu0 %v782
    %993 = vmatpush.msra.mxu0 %v780
    %994 = vmatpush.msra.mxu0 %v778
    %995 = vmatpush.msra.mxu0 %v776
    %996 = vmatpush.msra.mxu0 %v774
    %997 = vmatpush.msra.mxu0 %v772
    %998 = vmatpush.msra.mxu0 %v770
    %999 = vmatpush.msra.mxu0 %v768
    %1000 = vmatpush.msra.mxu0 %v766
    %1001 = vmatpush.msra.mxu0 %v764
    %1002 = vmatpush.msra.mxu0 %v762
    %1003 = vmatpush.msra.mxu0 %v760
    %1004 = vmatpush.msra.mxu0 %v758
    %1005 = vmatpush.msra.mxu0 %v756
    %1006 = vmatpush.msra.mxu0 %v754
    %1007 = vmatpush.msra.mxu0 %v752
    %1008 = vmatmul.f32.gmra.mxu0 %v786
    %v1009 = vpop.f32.mrf.mxu0
    %v1010 = vadd.f32 0.0, %v1009
    %1011 = vmatmul.f32.gmra.mxu0 %v788
    %v1012 = vpop.f32.mrf.mxu0
    %v1013 = vadd.f32 0.0, %v1012
    %1014 = vmatmul.f32.gmra.mxu0 %v790
    %v1015 = vpop.f32.mrf.mxu0
    %v1016 = vadd.f32 0.0, %v1015
    %1017 = vmatmul.f32.gmra.mxu0 %v792
    %v1018 = vpop.f32.mrf.mxu0
    %v1019 = vadd.f32 0.0, %v1018
    %1020 = vmatmul.f32.gmra.mxu0 %v794
    %v1021 = vpop.f32.mrf.mxu0
    %v1022 = vadd.f32 0.0, %v1021
    %1023 = vmatmul.f32.gmra.mxu0 %v796
    %v1024 = vpop.f32.mrf.mxu0
    %v1025 = vadd.f32 0.0, %v1024
    %1026 = vmatmul.f32.gmra.mxu0 %v798
    %v1027 = vpop.f32.mrf.mxu0
    %v1028 = vadd.f32 0.0, %v1027
    %1029 = vmatmul.f32.gmra.mxu0 %v800
    %v1030 = vpop.f32.mrf.mxu0
    %v1031 = vadd.f32 0.0, %v1030
    %1032 = vmatmul.f32.gmra.mxu0 %v802
    %v1033 = vpop.f32.mrf.mxu0
    %v1034 = vadd.f32 0.0, %v1033
    %1035 = vmatmul.f32.gmra.mxu0 %v804
    %v1036 = vpop.f32.mrf.mxu0
    %v1037 = vadd.f32 0.0, %v1036
    %1038 = vmatmul.f32.gmra.mxu0 %v806
    %v1039 = vpop.f32.mrf.mxu0
    %v1040 = vadd.f32 0.0, %v1039
    %1041 = vmatmul.f32.gmra.mxu0 %v808
    %v1042 = vpop.f32.mrf.mxu0
    %v1043 = vadd.f32 0.0, %v1042
    %1044 = vmatmul.f32.gmra.mxu0 %v810
    %v1045 = vpop.f32.mrf.mxu0
    %v1046 = vadd.f32 0.0, %v1045
    %1047 = vmatmul.f32.gmra.mxu0 %v812
    %v1048 = vpop.f32.mrf.mxu0
    %v1049 = vadd.f32 0.0, %v1048
    %1050 = vmatmul.f32.gmra.mxu0 %v814
    %v1051 = vpop.f32.mrf.mxu0
    %v1052 = vadd.f32 0.0, %v1051
    %1053 = vmatmul.f32.gmra.mxu0 %v816
    %v1054 = vpop.f32.mrf.mxu0
    %v1055 = vadd.f32 0.0, %v1054
    %1056 = vmatmul.f32.gmra.mxu0 %v818
    %v1057 = vpop.f32.mrf.mxu0
    %v1058 = vadd.f32 0.0, %v1057
    %1059 = vmatmul.f32.gmra.mxu0 %v820
    %v1060 = vpop.f32.mrf.mxu0
    %v1061 = vadd.f32 0.0, %v1060
    %1062 = vmatmul.f32.gmra.mxu0 %v822
    %v1063 = vpop.f32.mrf.mxu0
    %v1064 = vadd.f32 0.0, %v1063
    %1065 = vmatmul.f32.gmra.mxu0 %v824
    %v1066 = vpop.f32.mrf.mxu0
    %v1067 = vadd.f32 0.0, %v1066
    %1068 = vmatmul.f32.gmra.mxu0 %v826
    %v1069 = vpop.f32.mrf.mxu0
    %v1070 = vadd.f32 0.0, %v1069
    %1071 = vmatmul.f32.gmra.mxu0 %v828
    %v1072 = vpop.f32.mrf.mxu0
    %v1073 = vadd.f32 0.0, %v1072
    %1074 = vmatmul.f32.gmra.mxu0 %v830
    %v1075 = vpop.f32.mrf.mxu0
    %v1076 = vadd.f32 0.0, %v1075
    %1077 = vmatmul.f32.gmra.mxu0 %v832
    %v1078 = vpop.f32.mrf.mxu0
    %v1079 = vadd.f32 0.0, %v1078
    %1080 = vmatmul.f32.gmra.mxu0 %v834
    %v1081 = vpop.f32.mrf.mxu0
    %v1082 = vadd.f32 0.0, %v1081
    %1083 = vmatmul.f32.gmra.mxu0 %v836
    %v1084 = vpop.f32.mrf.mxu0
    %v1085 = vadd.f32 0.0, %v1084
    %1086 = vmatmul.f32.gmra.mxu0 %v838
    %v1087 = vpop.f32.mrf.mxu0
    %v1088 = vadd.f32 0.0, %v1087
    %1089 = vmatmul.f32.gmra.mxu0 %v840
    %v1090 = vpop.f32.mrf.mxu0
    %v1091 = vadd.f32 0.0, %v1090
    %1092 = vmatmul.f32.gmra.mxu0 %v842
    %v1093 = vpop.f32.mrf.mxu0
    %v1094 = vadd.f32 0.0, %v1093
    %1095 = vmatmul.f32.gmra.mxu0 %v844
    %v1096 = vpop.f32.mrf.mxu0
    %v1097 = vadd.f32 0.0, %v1096
    %1098 = vmatmul.f32.gmra.mxu0 %v846
    %v1099 = vpop.f32.mrf.mxu0
    %v1100 = vadd.f32 0.0, %v1099
    %1101 = vmatmul.f32.gmra.mxu0 %v845
    %v1102 = vpop.f32.mrf.mxu0
    %v1103 = vadd.f32 0.0, %v1102
    %1104 = vdwg.mxu0
    %v1105 = vadd.f32 %v542, %v897
    %v1106 = vadd.f32 %v655, %v1010
    %v1107 = vadd.f32 %v545, %v900
    %v1108 = vadd.f32 %v658, %v1013
    %v1109 = vadd.f32 %v548, %v903
    %v1110 = vadd.f32 %v661, %v1016
    %v1111 = vadd.f32 %v551, %v906
    %v1112 = vadd.f32 %v664, %v1019
    %v1113 = vadd.f32 %v554, %v909
    %v1114 = vadd.f32 %v667, %v1022
    %v1115 = vadd.f32 %v557, %v912
    %v1116 = vadd.f32 %v670, %v1025
    %v1117 = vadd.f32 %v560, %v915
    %v1118 = vadd.f32 %v673, %v1028
    %v1119 = vadd.f32 %v563, %v918
    %v1120 = vadd.f32 %v676, %v1031
    %v1121 = vadd.f32 %v566, %v921
    %v1122 = vadd.f32 %v679, %v1034
    %v1123 = vadd.f32 %v569, %v924
    %v1124 = vadd.f32 %v682, %v1037
    %v1125 = vadd.f32 %v572, %v927
    %v1126 = vadd.f32 %v685, %v1040
    %v1127 = vadd.f32 %v575, %v930
    %v1128 = vadd.f32 %v688, %v1043
    %v1129 = vadd.f32 %v578, %v933
    %v1130 = vadd.f32 %v691, %v1046
    %v1131 = vadd.f32 %v581, %v936
    %v1132 = vadd.f32 %v694, %v1049
    %v1133 = vadd.f32 %v584, %v939
    %v1134 = vadd.f32 %v697, %v1052
    %v1135 = vadd.f32 %v587, %v942
    %v1136 = vadd.f32 %v700, %v1055
    %v1137 = vadd.f32 %v590, %v945
    %v1138 = vadd.f32 %v703, %v1058
    %v1139 = vadd.f32 %v593, %v948
    %v1140 = vadd.f32 %v706, %v1061
    %v1141 = vadd.f32 %v596, %v951
    %v1142 = vadd.f32 %v709, %v1064
    %v1143 = vadd.f32 %v599, %v954
    %v1144 = vadd.f32 %v712, %v1067
    %v1145 = vadd.f32 %v602, %v957
    %v1146 = vadd.f32 %v715, %v1070
    %v1147 = vadd.f32 %v605, %v960
    %v1148 = vadd.f32 %v718, %v1073
    %v1149 = vadd.f32 %v608, %v963
    %v1150 = vadd.f32 %v721, %v1076
    %v1151 = vadd.f32 %v611, %v966
    %v1152 = vadd.f32 %v724, %v1079
    %v1153 = vadd.f32 %v614, %v969
    %v1154 = vadd.f32 %v727, %v1082
    %v1155 = vadd.f32 %v617, %v972
    %v1156 = vadd.f32 %v730, %v1085
    %v1157 = vadd.f32 %v620, %v975
    %v1158 = vadd.f32 %v733, %v1088
    %v1159 = vadd.f32 %v623, %v978
    %v1160 = vadd.f32 %v736, %v1091
    %v1161 = vadd.f32 %v626, %v981
    %v1162 = vadd.f32 %v739, %v1094
    %v1163 = vadd.f32 %v629, %v984
    %v1164 = vadd.f32 %v742, %v1097
    %v1165 = vadd.f32 %v632, %v987
    %v1166 = vadd.f32 %v745, %v1100
    %v1167 = vadd.f32 %v635, %v990
    %v1168 = vadd.f32 %v748, %v1103
    %s1169 = scalar_lea.vmem [#allocation2], 768
    %v1170 = vld [vmem:[%s1169] sm:$0xff]
    %v1171 = vld [vmem:[%s1169 + $0x8] sm:$0xff]
    %v1172 = vld [vmem:[%s1169 + $0x10] sm:$0xff]
    %v1173 = vld [vmem:[%s1169 + $0x18] sm:$0xff]
    %v1174 = vld [vmem:[%s1169 + $0x20] sm:$0xff]
    %v1175 = vld [vmem:[%s1169 + $0x28] sm:$0xff]
    %v1176 = vld [vmem:[%s1169 + $0x30] sm:$0xff]
    %v1177 = vld [vmem:[%s1169 + $0x38] sm:$0xff]
    %v1178 = vld [vmem:[%s1169 + $0x40] sm:$0xff]
    %v1179 = vld [vmem:[%s1169 + $0x48] sm:$0xff]
    %v1180 = vld [vmem:[%s1169 + $0x50] sm:$0xff]
    %v1181 = vld [vmem:[%s1169 + $0x58] sm:$0xff]
    %v1182 = vld [vmem:[%s1169 + $0x60] sm:$0xff]
    %v1183 = vld [vmem:[%s1169 + $0x68] sm:$0xff]
    %v1184 = vld [vmem:[%s1169 + $0x70] sm:$0xff]
    %v1185 = vld [vmem:[%s1169 + $0x78] sm:$0xff]
    %v1186 = vld [vmem:[%s1169 + $0x80] sm:$0xff]
    %v1187 = vld [vmem:[%s1169 + $0x88] sm:$0xff]
    %v1188 = vld [vmem:[%s1169 + $0x90] sm:$0xff]
    %v1189 = vld [vmem:[%s1169 + $0x98] sm:$0xff]
    %v1190 = vld [vmem:[%s1169 + $0xa0] sm:$0xff]
    %v1191 = vld [vmem:[%s1169 + $0xa8] sm:$0xff]
    %v1192 = vld [vmem:[%s1169 + $0xb0] sm:$0xff]
    %v1193 = vld [vmem:[%s1169 + $0xb8] sm:$0xff]
    %v1194 = vld [vmem:[%s1169 + $0xc0] sm:$0xff]
    %v1195 = vld [vmem:[%s1169 + $0xc8] sm:$0xff]
    %v1196 = vld [vmem:[%s1169 + $0xd0] sm:$0xff]
    %v1197 = vld [vmem:[%s1169 + $0xd8] sm:$0xff]
    %v1198 = vld [vmem:[%s1169 + $0xe0] sm:$0xff]
    %v1199 = vld [vmem:[%s1169 + $0xe8] sm:$0xff]
    %v1200 = vld [vmem:[%s1169 + $0xf0] sm:$0xff]
    %v1201 = vld [vmem:[%s1169 + $0xf8] sm:$0xff]
    %vm1202 = vcmask 1044480
    %v1203 = vrot.slane %v73, 3
    %v1204 = vrot.slane %v74, 3
    %v1205 = vsel %vm1202, %v1203, %v1204
    %v1206 = vrot.slane %v75, 3
    %v1207 = vsel %vm1202, %v1204, %v1206
    %v1208 = vrot.slane %v76, 3
    %v1209 = vsel %vm1202, %v1206, %v1208
    %v1210 = vrot.slane %v77, 3
    %v1211 = vsel %vm1202, %v1208, %v1210
    %v1212 = vrot.slane %v78, 3
    %v1213 = vsel %vm1202, %v1210, %v1212
    %v1214 = vrot.slane %v79, 3
    %v1215 = vsel %vm1202, %v1212, %v1214
    %v1216 = vrot.slane %v80, 3
    %v1217 = vsel %vm1202, %v1214, %v1216
    %v1218 = vrot.slane %v81, 3
    %v1219 = vsel %vm1202, %v1216, %v1218
    %v1220 = vrot.slane %v82, 3
    %v1221 = vsel %vm1202, %v1218, %v1220
    %v1222 = vrot.slane %v83, 3
    %v1223 = vsel %vm1202, %v1220, %v1222
    %v1224 = vrot.slane %v84, 3
    %v1225 = vsel %vm1202, %v1222, %v1224
    %v1226 = vrot.slane %v85, 3
    %v1227 = vsel %vm1202, %v1224, %v1226
    %v1228 = vrot.slane %v86, 3
    %v1229 = vsel %vm1202, %v1226, %v1228
    %v1230 = vrot.slane %v87, 3
    %v1231 = vsel %vm1202, %v1228, %v1230
    %v1232 = vrot.slane %v88, 3
    %v1233 = vsel %vm1202, %v1230, %v1232
    %v1234 = vrot.slane %v89, 3
    %v1235 = vsel %vm1202, %v1232, %v1234
    %v1236 = vrot.slane %v90, 3
    %v1237 = vsel %vm1202, %v1234, %v1236
    %v1238 = vrot.slane %v91, 3
    %v1239 = vsel %vm1202, %v1236, %v1238
    %v1240 = vrot.slane %v92, 3
    %v1241 = vsel %vm1202, %v1238, %v1240
    %v1242 = vrot.slane %v93, 3
    %v1243 = vsel %vm1202, %v1240, %v1242
    %v1244 = vrot.slane %v94, 3
    %v1245 = vsel %vm1202, %v1242, %v1244
    %v1246 = vrot.slane %v95, 3
    %v1247 = vsel %vm1202, %v1244, %v1246
    %v1248 = vrot.slane %v96, 3
    %v1249 = vsel %vm1202, %v1246, %v1248
    %v1250 = vrot.slane %v97, 3
    %v1251 = vsel %vm1202, %v1248, %v1250
    %v1252 = vrot.slane %v98, 3
    %v1253 = vsel %vm1202, %v1250, %v1252
    %v1254 = vrot.slane %v99, 3
    %v1255 = vsel %vm1202, %v1252, %v1254
    %v1256 = vrot.slane %v100, 3
    %v1257 = vsel %vm1202, %v1254, %v1256
    %v1258 = vrot.slane %v101, 3
    %v1259 = vsel %vm1202, %v1256, %v1258
    %v1260 = vrot.slane %v102, 3
    %v1261 = vsel %vm1202, %v1258, %v1260
    %v1262 = vrot.slane %v103, 3
    %v1263 = vsel %vm1202, %v1260, %v1262
    %v1264 = vrot.slane %v104, 3
    %v1265 = vsel %vm1202, %v1262, %v1264
    %1298 = vmatpush.msra.mxu0 %v1200
    %1299 = vmatpush.msra.mxu0 %v1198
    %1300 = vmatpush.msra.mxu0 %v1196
    %1301 = vmatpush.msra.mxu0 %v1194
    %1302 = vmatpush.msra.mxu0 %v1192
    %1303 = vmatpush.msra.mxu0 %v1190
    %1304 = vmatpush.msra.mxu0 %v1188
    %1305 = vmatpush.msra.mxu0 %v1186
    %1306 = vmatpush.msra.mxu0 %v1184
    %1307 = vmatpush.msra.mxu0 %v1182
    %1308 = vmatpush.msra.mxu0 %v1180
    %1309 = vmatpush.msra.mxu0 %v1178
    %1310 = vmatpush.msra.mxu0 %v1176
    %1311 = vmatpush.msra.mxu0 %v1174
    %1312 = vmatpush.msra.mxu0 %v1172
    %1313 = vmatpush.msra.mxu0 %v1170
    %1314 = vmatmul.f32.gmra.mxu0 %v1205
    %v1315 = vpop.f32.mrf.mxu0
    %v1316 = vadd.f32 0.0, %v1315
    %1317 = vmatmul.f32.gmra.mxu0 %v1207
    %v1318 = vpop.f32.mrf.mxu0
    %v1319 = vadd.f32 0.0, %v1318
    %1320 = vmatmul.f32.gmra.mxu0 %v1209
    %v1321 = vpop.f32.mrf.mxu0
    %v1322 = vadd.f32 0.0, %v1321
    %1323 = vmatmul.f32.gmra.mxu0 %v1211
    %v1324 = vpop.f32.mrf.mxu0
    %v1325 = vadd.f32 0.0, %v1324
    %1326 = vmatmul.f32.gmra.mxu0 %v1213
    %v1327 = vpop.f32.mrf.mxu0
    %v1328 = vadd.f32 0.0, %v1327
    %1329 = vmatmul.f32.gmra.mxu0 %v1215
    %v1330 = vpop.f32.mrf.mxu0
    %v1331 = vadd.f32 0.0, %v1330
    %1332 = vmatmul.f32.gmra.mxu0 %v1217
    %v1333 = vpop.f32.mrf.mxu0
    %v1334 = vadd.f32 0.0, %v1333
    %1335 = vmatmul.f32.gmra.mxu0 %v1219
    %v1336 = vpop.f32.mrf.mxu0
    %v1337 = vadd.f32 0.0, %v1336
    %1338 = vmatmul.f32.gmra.mxu0 %v1221
    %v1339 = vpop.f32.mrf.mxu0
    %v1340 = vadd.f32 0.0, %v1339
    %1341 = vmatmul.f32.gmra.mxu0 %v1223
    %v1342 = vpop.f32.mrf.mxu0
    %v1343 = vadd.f32 0.0, %v1342
    %1344 = vmatmul.f32.gmra.mxu0 %v1225
    %v1345 = vpop.f32.mrf.mxu0
    %v1346 = vadd.f32 0.0, %v1345
    %1347 = vmatmul.f32.gmra.mxu0 %v1227
    %v1348 = vpop.f32.mrf.mxu0
    %v1349 = vadd.f32 0.0, %v1348
    %1350 = vmatmul.f32.gmra.mxu0 %v1229
    %v1351 = vpop.f32.mrf.mxu0
    %v1352 = vadd.f32 0.0, %v1351
    %1353 = vmatmul.f32.gmra.mxu0 %v1231
    %v1354 = vpop.f32.mrf.mxu0
    %v1355 = vadd.f32 0.0, %v1354
    %1356 = vmatmul.f32.gmra.mxu0 %v1233
    %v1357 = vpop.f32.mrf.mxu0
    %v1358 = vadd.f32 0.0, %v1357
    %1359 = vmatmul.f32.gmra.mxu0 %v1235
    %v1360 = vpop.f32.mrf.mxu0
    %v1361 = vadd.f32 0.0, %v1360
    %1362 = vmatmul.f32.gmra.mxu0 %v1237
    %v1363 = vpop.f32.mrf.mxu0
    %v1364 = vadd.f32 0.0, %v1363
    %1365 = vmatmul.f32.gmra.mxu0 %v1239
    %v1366 = vpop.f32.mrf.mxu0
    %v1367 = vadd.f32 0.0, %v1366
    %1368 = vmatmul.f32.gmra.mxu0 %v1241
    %v1369 = vpop.f32.mrf.mxu0
    %v1370 = vadd.f32 0.0, %v1369
    %1371 = vmatmul.f32.gmra.mxu0 %v1243
    %v1372 = vpop.f32.mrf.mxu0
    %v1373 = vadd.f32 0.0, %v1372
    %1374 = vmatmul.f32.gmra.mxu0 %v1245
    %v1375 = vpop.f32.mrf.mxu0
    %v1376 = vadd.f32 0.0, %v1375
    %1377 = vmatmul.f32.gmra.mxu0 %v1247
    %v1378 = vpop.f32.mrf.mxu0
    %v1379 = vadd.f32 0.0, %v1378
    %1380 = vmatmul.f32.gmra.mxu0 %v1249
    %v1381 = vpop.f32.mrf.mxu0
    %v1382 = vadd.f32 0.0, %v1381
    %1383 = vmatmul.f32.gmra.mxu0 %v1251
    %v1384 = vpop.f32.mrf.mxu0
    %v1385 = vadd.f32 0.0, %v1384
    %1386 = vmatmul.f32.gmra.mxu0 %v1253
    %v1387 = vpop.f32.mrf.mxu0
    %v1388 = vadd.f32 0.0, %v1387
    %1389 = vmatmul.f32.gmra.mxu0 %v1255
    %v1390 = vpop.f32.mrf.mxu0
    %v1391 = vadd.f32 0.0, %v1390
    %1392 = vmatmul.f32.gmra.mxu0 %v1257
    %v1393 = vpop.f32.mrf.mxu0
    %v1394 = vadd.f32 0.0, %v1393
    %1395 = vmatmul.f32.gmra.mxu0 %v1259
    %v1396 = vpop.f32.mrf.mxu0
    %v1397 = vadd.f32 0.0, %v1396
    %1398 = vmatmul.f32.gmra.mxu0 %v1261
    %v1399 = vpop.f32.mrf.mxu0
    %v1400 = vadd.f32 0.0, %v1399
    %1401 = vmatmul.f32.gmra.mxu0 %v1263
    %v1402 = vpop.f32.mrf.mxu0
    %v1403 = vadd.f32 0.0, %v1402
    %1404 = vmatmul.f32.gmra.mxu0 %v1265
    %v1405 = vpop.f32.mrf.mxu0
    %v1406 = vadd.f32 0.0, %v1405
    %1407 = vmatmul.f32.gmra.mxu0 %v1264
    %v1408 = vpop.f32.mrf.mxu0
    %v1409 = vadd.f32 0.0, %v1408
    %1410 = vdwg.mxu0
    %1411 = vmatpush.msra.mxu0 %v1201
    %1412 = vmatpush.msra.mxu0 %v1199
    %1413 = vmatpush.msra.mxu0 %v1197
    %1414 = vmatpush.msra.mxu0 %v1195
    %1415 = vmatpush.msra.mxu0 %v1193
    %1416 = vmatpush.msra.mxu0 %v1191
    %1417 = vmatpush.msra.mxu0 %v1189
    %1418 = vmatpush.msra.mxu0 %v1187
    %1419 = vmatpush.msra.mxu0 %v1185
    %1420 = vmatpush.msra.mxu0 %v1183
    %1421 = vmatpush.msra.mxu0 %v1181
    %1422 = vmatpush.msra.mxu0 %v1179
    %1423 = vmatpush.msra.mxu0 %v1177
    %1424 = vmatpush.msra.mxu0 %v1175
    %1425 = vmatpush.msra.mxu0 %v1173
    %1426 = vmatpush.msra.mxu0 %v1171
    %1427 = vmatmul.f32.gmra.mxu0 %v1205
    %v1428 = vpop.f32.mrf.mxu0
    %v1429 = vadd.f32 0.0, %v1428
    %1430 = vmatmul.f32.gmra.mxu0 %v1207
    %v1431 = vpop.f32.mrf.mxu0
    %v1432 = vadd.f32 0.0, %v1431
    %1433 = vmatmul.f32.gmra.mxu0 %v1209
    %v1434 = vpop.f32.mrf.mxu0
    %v1435 = vadd.f32 0.0, %v1434
    %1436 = vmatmul.f32.gmra.mxu0 %v1211
    %v1437 = vpop.f32.mrf.mxu0
    %v1438 = vadd.f32 0.0, %v1437
    %1439 = vmatmul.f32.gmra.mxu0 %v1213
    %v1440 = vpop.f32.mrf.mxu0
    %v1441 = vadd.f32 0.0, %v1440
    %1442 = vmatmul.f32.gmra.mxu0 %v1215
    %v1443 = vpop.f32.mrf.mxu0
    %v1444 = vadd.f32 0.0, %v1443
    %1445 = vmatmul.f32.gmra.mxu0 %v1217
    %v1446 = vpop.f32.mrf.mxu0
    %v1447 = vadd.f32 0.0, %v1446
    %1448 = vmatmul.f32.gmra.mxu0 %v1219
    %v1449 = vpop.f32.mrf.mxu0
    %v1450 = vadd.f32 0.0, %v1449
    %1451 = vmatmul.f32.gmra.mxu0 %v1221
    %v1452 = vpop.f32.mrf.mxu0
    %v1453 = vadd.f32 0.0, %v1452
    %1454 = vmatmul.f32.gmra.mxu0 %v1223
    %v1455 = vpop.f32.mrf.mxu0
    %v1456 = vadd.f32 0.0, %v1455
    %1457 = vmatmul.f32.gmra.mxu0 %v1225
    %v1458 = vpop.f32.mrf.mxu0
    %v1459 = vadd.f32 0.0, %v1458
    %1460 = vmatmul.f32.gmra.mxu0 %v1227
    %v1461 = vpop.f32.mrf.mxu0
    %v1462 = vadd.f32 0.0, %v1461
    %1463 = vmatmul.f32.gmra.mxu0 %v1229
    %v1464 = vpop.f32.mrf.mxu0
    %v1465 = vadd.f32 0.0, %v1464
    %1466 = vmatmul.f32.gmra.mxu0 %v1231
    %v1467 = vpop.f32.mrf.mxu0
    %v1468 = vadd.f32 0.0, %v1467
    %1469 = vmatmul.f32.gmra.mxu0 %v1233
    %v1470 = vpop.f32.mrf.mxu0
    %v1471 = vadd.f32 0.0, %v1470
    %1472 = vmatmul.f32.gmra.mxu0 %v1235
    %v1473 = vpop.f32.mrf.mxu0
    %v1474 = vadd.f32 0.0, %v1473
    %1475 = vmatmul.f32.gmra.mxu0 %v1237
    %v1476 = vpop.f32.mrf.mxu0
    %v1477 = vadd.f32 0.0, %v1476
    %1478 = vmatmul.f32.gmra.mxu0 %v1239
    %v1479 = vpop.f32.mrf.mxu0
    %v1480 = vadd.f32 0.0, %v1479
    %1481 = vmatmul.f32.gmra.mxu0 %v1241
    %v1482 = vpop.f32.mrf.mxu0
    %v1483 = vadd.f32 0.0, %v1482
    %1484 = vmatmul.f32.gmra.mxu0 %v1243
    %v1485 = vpop.f32.mrf.mxu0
    %v1486 = vadd.f32 0.0, %v1485
    %1487 = vmatmul.f32.gmra.mxu0 %v1245
    %v1488 = vpop.f32.mrf.mxu0
    %v1489 = vadd.f32 0.0, %v1488
    %1490 = vmatmul.f32.gmra.mxu0 %v1247
    %v1491 = vpop.f32.mrf.mxu0
    %v1492 = vadd.f32 0.0, %v1491
    %1493 = vmatmul.f32.gmra.mxu0 %v1249
    %v1494 = vpop.f32.mrf.mxu0
    %v1495 = vadd.f32 0.0, %v1494
    %1496 = vmatmul.f32.gmra.mxu0 %v1251
    %v1497 = vpop.f32.mrf.mxu0
    %v1498 = vadd.f32 0.0, %v1497
    %1499 = vmatmul.f32.gmra.mxu0 %v1253
    %v1500 = vpop.f32.mrf.mxu0
    %v1501 = vadd.f32 0.0, %v1500
    %1502 = vmatmul.f32.gmra.mxu0 %v1255
    %v1503 = vpop.f32.mrf.mxu0
    %v1504 = vadd.f32 0.0, %v1503
    %1505 = vmatmul.f32.gmra.mxu0 %v1257
    %v1506 = vpop.f32.mrf.mxu0
    %v1507 = vadd.f32 0.0, %v1506
    %1508 = vmatmul.f32.gmra.mxu0 %v1259
    %v1509 = vpop.f32.mrf.mxu0
    %v1510 = vadd.f32 0.0, %v1509
    %1511 = vmatmul.f32.gmra.mxu0 %v1261
    %v1512 = vpop.f32.mrf.mxu0
    %v1513 = vadd.f32 0.0, %v1512
    %1514 = vmatmul.f32.gmra.mxu0 %v1263
    %v1515 = vpop.f32.mrf.mxu0
    %v1516 = vadd.f32 0.0, %v1515
    %1517 = vmatmul.f32.gmra.mxu0 %v1265
    %v1518 = vpop.f32.mrf.mxu0
    %v1519 = vadd.f32 0.0, %v1518
    %1520 = vmatmul.f32.gmra.mxu0 %v1264
    %v1521 = vpop.f32.mrf.mxu0
    %v1522 = vadd.f32 0.0, %v1521
    %1523 = vdwg.mxu0
    %v1524 = vadd.f32 %v1105, %v1316
    %v1525 = vadd.f32 %v1106, %v1429
    %v1526 = vadd.f32 %v1107, %v1319
    %v1527 = vadd.f32 %v1108, %v1432
    %v1528 = vadd.f32 %v1109, %v1322
    %v1529 = vadd.f32 %v1110, %v1435
    %v1530 = vadd.f32 %v1111, %v1325
    %v1531 = vadd.f32 %v1112, %v1438
    %v1532 = vadd.f32 %v1113, %v1328
    %v1533 = vadd.f32 %v1114, %v1441
    %v1534 = vadd.f32 %v1115, %v1331
    %v1535 = vadd.f32 %v1116, %v1444
    %v1536 = vadd.f32 %v1117, %v1334
    %v1537 = vadd.f32 %v1118, %v1447
    %v1538 = vadd.f32 %v1119, %v1337
    %v1539 = vadd.f32 %v1120, %v1450
    %v1540 = vadd.f32 %v1121, %v1340
    %v1541 = vadd.f32 %v1122, %v1453
    %v1542 = vadd.f32 %v1123, %v1343
    %v1543 = vadd.f32 %v1124, %v1456
    %v1544 = vadd.f32 %v1125, %v1346
    %v1545 = vadd.f32 %v1126, %v1459
    %v1546 = vadd.f32 %v1127, %v1349
    %v1547 = vadd.f32 %v1128, %v1462
    %v1548 = vadd.f32 %v1129, %v1352
    %v1549 = vadd.f32 %v1130, %v1465
    %v1550 = vadd.f32 %v1131, %v1355
    %v1551 = vadd.f32 %v1132, %v1468
    %v1552 = vadd.f32 %v1133, %v1358
    %v1553 = vadd.f32 %v1134, %v1471
    %v1554 = vadd.f32 %v1135, %v1361
    %v1555 = vadd.f32 %v1136, %v1474
    %v1556 = vadd.f32 %v1137, %v1364
    %v1557 = vadd.f32 %v1138, %v1477
    %v1558 = vadd.f32 %v1139, %v1367
    %v1559 = vadd.f32 %v1140, %v1480
    %v1560 = vadd.f32 %v1141, %v1370
    %v1561 = vadd.f32 %v1142, %v1483
    %v1562 = vadd.f32 %v1143, %v1373
    %v1563 = vadd.f32 %v1144, %v1486
    %v1564 = vadd.f32 %v1145, %v1376
    %v1565 = vadd.f32 %v1146, %v1489
    %v1566 = vadd.f32 %v1147, %v1379
    %v1567 = vadd.f32 %v1148, %v1492
    %v1568 = vadd.f32 %v1149, %v1382
    %v1569 = vadd.f32 %v1150, %v1495
    %v1570 = vadd.f32 %v1151, %v1385
    %v1571 = vadd.f32 %v1152, %v1498
    %v1572 = vadd.f32 %v1153, %v1388
    %v1573 = vadd.f32 %v1154, %v1501
    %v1574 = vadd.f32 %v1155, %v1391
    %v1575 = vadd.f32 %v1156, %v1504
    %v1576 = vadd.f32 %v1157, %v1394
    %v1577 = vadd.f32 %v1158, %v1507
    %v1578 = vadd.f32 %v1159, %v1397
    %v1579 = vadd.f32 %v1160, %v1510
    %v1580 = vadd.f32 %v1161, %v1400
    %v1581 = vadd.f32 %v1162, %v1513
    %v1582 = vadd.f32 %v1163, %v1403
    %v1583 = vadd.f32 %v1164, %v1516
    %v1584 = vadd.f32 %v1165, %v1406
    %v1585 = vadd.f32 %v1166, %v1519
    %v1586 = vadd.f32 %v1167, %v1409
    %v1587 = vadd.f32 %v1168, %v1522
    %s1588 = scalar_lea.vmem [#allocation2], 1024
    %v1589 = vld [vmem:[%s1588] sm:$0xff]
    %v1590 = vld [vmem:[%s1588 + $0x8] sm:$0xff]
    %v1591 = vld [vmem:[%s1588 + $0x10] sm:$0xff]
    %v1592 = vld [vmem:[%s1588 + $0x18] sm:$0xff]
    %v1593 = vld [vmem:[%s1588 + $0x20] sm:$0xff]
    %v1594 = vld [vmem:[%s1588 + $0x28] sm:$0xff]
    %v1595 = vld [vmem:[%s1588 + $0x30] sm:$0xff]
    %v1596 = vld [vmem:[%s1588 + $0x38] sm:$0xff]
    %v1597 = vld [vmem:[%s1588 + $0x40] sm:$0xff]
    %v1598 = vld [vmem:[%s1588 + $0x48] sm:$0xff]
    %v1599 = vld [vmem:[%s1588 + $0x50] sm:$0xff]
    %v1600 = vld [vmem:[%s1588 + $0x58] sm:$0xff]
    %v1601 = vld [vmem:[%s1588 + $0x60] sm:$0xff]
    %v1602 = vld [vmem:[%s1588 + $0x68] sm:$0xff]
    %v1603 = vld [vmem:[%s1588 + $0x70] sm:$0xff]
    %v1604 = vld [vmem:[%s1588 + $0x78] sm:$0xff]
    %v1605 = vld [vmem:[%s1588 + $0x80] sm:$0xff]
    %v1606 = vld [vmem:[%s1588 + $0x88] sm:$0xff]
    %v1607 = vld [vmem:[%s1588 + $0x90] sm:$0xff]
    %v1608 = vld [vmem:[%s1588 + $0x98] sm:$0xff]
    %v1609 = vld [vmem:[%s1588 + $0xa0] sm:$0xff]
    %v1610 = vld [vmem:[%s1588 + $0xa8] sm:$0xff]
    %v1611 = vld [vmem:[%s1588 + $0xb0] sm:$0xff]
    %v1612 = vld [vmem:[%s1588 + $0xb8] sm:$0xff]
    %v1613 = vld [vmem:[%s1588 + $0xc0] sm:$0xff]
    %v1614 = vld [vmem:[%s1588 + $0xc8] sm:$0xff]
    %v1615 = vld [vmem:[%s1588 + $0xd0] sm:$0xff]
    %v1616 = vld [vmem:[%s1588 + $0xd8] sm:$0xff]
    %v1617 = vld [vmem:[%s1588 + $0xe0] sm:$0xff]
    %v1618 = vld [vmem:[%s1588 + $0xe8] sm:$0xff]
    %v1619 = vld [vmem:[%s1588 + $0xf0] sm:$0xff]
    %v1620 = vld [vmem:[%s1588 + $0xf8] sm:$0xff]
    %vm1621 = vcmask 1043456
    %v1622 = vrot.slane %v73, 4
    %v1623 = vrot.slane %v74, 4
    %v1624 = vsel %vm1621, %v1622, %v1623
    %v1625 = vrot.slane %v75, 4
    %v1626 = vsel %vm1621, %v1623, %v1625
    %v1627 = vrot.slane %v76, 4
    %v1628 = vsel %vm1621, %v1625, %v1627
    %v1629 = vrot.slane %v77, 4
    %v1630 = vsel %vm1621, %v1627, %v1629
    %v1631 = vrot.slane %v78, 4
    %v1632 = vsel %vm1621, %v1629, %v1631
    %v1633 = vrot.slane %v79, 4
    %v1634 = vsel %vm1621, %v1631, %v1633
    %v1635 = vrot.slane %v80, 4
    %v1636 = vsel %vm1621, %v1633, %v1635
    %v1637 = vrot.slane %v81, 4
    %v1638 = vsel %vm1621, %v1635, %v1637
    %v1639 = vrot.slane %v82, 4
    %v1640 = vsel %vm1621, %v1637, %v1639
    %v1641 = vrot.slane %v83, 4
    %v1642 = vsel %vm1621, %v1639, %v1641
    %v1643 = vrot.slane %v84, 4
    %v1644 = vsel %vm1621, %v1641, %v1643
    %v1645 = vrot.slane %v85, 4
    %v1646 = vsel %vm1621, %v1643, %v1645
    %v1647 = vrot.slane %v86, 4
    %v1648 = vsel %vm1621, %v1645, %v1647
    %v1649 = vrot.slane %v87, 4
    %v1650 = vsel %vm1621, %v1647, %v1649
    %v1651 = vrot.slane %v88, 4
    %v1652 = vsel %vm1621, %v1649, %v1651
    %v1653 = vrot.slane %v89, 4
    %v1654 = vsel %vm1621, %v1651, %v1653
    %v1655 = vrot.slane %v90, 4
    %v1656 = vsel %vm1621, %v1653, %v1655
    %v1657 = vrot.slane %v91, 4
    %v1658 = vsel %vm1621, %v1655, %v1657
    %v1659 = vrot.slane %v92, 4
    %v1660 = vsel %vm1621, %v1657, %v1659
    %v1661 = vrot.slane %v93, 4
    %v1662 = vsel %vm1621, %v1659, %v1661
    %v1663 = vrot.slane %v94, 4
    %v1664 = vsel %vm1621, %v1661, %v1663
    %v1665 = vrot.slane %v95, 4
    %v1666 = vsel %vm1621, %v1663, %v1665
    %v1667 = vrot.slane %v96, 4
    %v1668 = vsel %vm1621, %v1665, %v1667
    %v1669 = vrot.slane %v97, 4
    %v1670 = vsel %vm1621, %v1667, %v1669
    %v1671 = vrot.slane %v98, 4
    %v1672 = vsel %vm1621, %v1669, %v1671
    %v1673 = vrot.slane %v99, 4
    %v1674 = vsel %vm1621, %v1671, %v1673
    %v1675 = vrot.slane %v100, 4
    %v1676 = vsel %vm1621, %v1673, %v1675
    %v1677 = vrot.slane %v101, 4
    %v1678 = vsel %vm1621, %v1675, %v1677
    %v1679 = vrot.slane %v102, 4
    %v1680 = vsel %vm1621, %v1677, %v1679
    %v1681 = vrot.slane %v103, 4
    %v1682 = vsel %vm1621, %v1679, %v1681
    %v1683 = vrot.slane %v104, 4
    %v1684 = vsel %vm1621, %v1681, %v1683
    %1717 = vmatpush.msra.mxu0 %v1619
    %1718 = vmatpush.msra.mxu0 %v1617
    %1719 = vmatpush.msra.mxu0 %v1615
    %1720 = vmatpush.msra.mxu0 %v1613
    %1721 = vmatpush.msra.mxu0 %v1611
    %1722 = vmatpush.msra.mxu0 %v1609
    %1723 = vmatpush.msra.mxu0 %v1607
    %1724 = vmatpush.msra.mxu0 %v1605
    %1725 = vmatpush.msra.mxu0 %v1603
    %1726 = vmatpush.msra.mxu0 %v1601
    %1727 = vmatpush.msra.mxu0 %v1599
    %1728 = vmatpush.msra.mxu0 %v1597
    %1729 = vmatpush.msra.mxu0 %v1595
    %1730 = vmatpush.msra.mxu0 %v1593
    %1731 = vmatpush.msra.mxu0 %v1591
    %1732 = vmatpush.msra.mxu0 %v1589
    %1733 = vmatmul.f32.gmra.mxu0 %v1624
    %v1734 = vpop.f32.mrf.mxu0
    %v1735 = vadd.f32 0.0, %v1734
    %1736 = vmatmul.f32.gmra.mxu0 %v1626
    %v1737 = vpop.f32.mrf.mxu0
    %v1738 = vadd.f32 0.0, %v1737
    %1739 = vmatmul.f32.gmra.mxu0 %v1628
    %v1740 = vpop.f32.mrf.mxu0
    %v1741 = vadd.f32 0.0, %v1740
    %1742 = vmatmul.f32.gmra.mxu0 %v1630
    %v1743 = vpop.f32.mrf.mxu0
    %v1744 = vadd.f32 0.0, %v1743
    %1745 = vmatmul.f32.gmra.mxu0 %v1632
    %v1746 = vpop.f32.mrf.mxu0
    %v1747 = vadd.f32 0.0, %v1746
    %1748 = vmatmul.f32.gmra.mxu0 %v1634
    %v1749 = vpop.f32.mrf.mxu0
    %v1750 = vadd.f32 0.0, %v1749
    %1751 = vmatmul.f32.gmra.mxu0 %v1636
    %v1752 = vpop.f32.mrf.mxu0
    %v1753 = vadd.f32 0.0, %v1752
    %1754 = vmatmul.f32.gmra.mxu0 %v1638
    %v1755 = vpop.f32.mrf.mxu0
    %v1756 = vadd.f32 0.0, %v1755
    %1757 = vmatmul.f32.gmra.mxu0 %v1640
    %v1758 = vpop.f32.mrf.mxu0
    %v1759 = vadd.f32 0.0, %v1758
    %1760 = vmatmul.f32.gmra.mxu0 %v1642
    %v1761 = vpop.f32.mrf.mxu0
    %v1762 = vadd.f32 0.0, %v1761
    %1763 = vmatmul.f32.gmra.mxu0 %v1644
    %v1764 = vpop.f32.mrf.mxu0
    %v1765 = vadd.f32 0.0, %v1764
    %1766 = vmatmul.f32.gmra.mxu0 %v1646
    %v1767 = vpop.f32.mrf.mxu0
    %v1768 = vadd.f32 0.0, %v1767
    %1769 = vmatmul.f32.gmra.mxu0 %v1648
    %v1770 = vpop.f32.mrf.mxu0
    %v1771 = vadd.f32 0.0, %v1770
    %1772 = vmatmul.f32.gmra.mxu0 %v1650
    %v1773 = vpop.f32.mrf.mxu0
    %v1774 = vadd.f32 0.0, %v1773
    %1775 = vmatmul.f32.gmra.mxu0 %v1652
    %v1776 = vpop.f32.mrf.mxu0
    %v1777 = vadd.f32 0.0, %v1776
    %1778 = vmatmul.f32.gmra.mxu0 %v1654
    %v1779 = vpop.f32.mrf.mxu0
    %v1780 = vadd.f32 0.0, %v1779
    %1781 = vmatmul.f32.gmra.mxu0 %v1656
    %v1782 = vpop.f32.mrf.mxu0
    %v1783 = vadd.f32 0.0, %v1782
    %1784 = vmatmul.f32.gmra.mxu0 %v1658
    %v1785 = vpop.f32.mrf.mxu0
    %v1786 = vadd.f32 0.0, %v1785
    %1787 = vmatmul.f32.gmra.mxu0 %v1660
    %v1788 = vpop.f32.mrf.mxu0
    %v1789 = vadd.f32 0.0, %v1788
    %1790 = vmatmul.f32.gmra.mxu0 %v1662
    %v1791 = vpop.f32.mrf.mxu0
    %v1792 = vadd.f32 0.0, %v1791
    %1793 = vmatmul.f32.gmra.mxu0 %v1664
    %v1794 = vpop.f32.mrf.mxu0
    %v1795 = vadd.f32 0.0, %v1794
    %1796 = vmatmul.f32.gmra.mxu0 %v1666
    %v1797 = vpop.f32.mrf.mxu0
    %v1798 = vadd.f32 0.0, %v1797
    %1799 = vmatmul.f32.gmra.mxu0 %v1668
    %v1800 = vpop.f32.mrf.mxu0
    %v1801 = vadd.f32 0.0, %v1800
    %1802 = vmatmul.f32.gmra.mxu0 %v1670
    %v1803 = vpop.f32.mrf.mxu0
    %v1804 = vadd.f32 0.0, %v1803
    %1805 = vmatmul.f32.gmra.mxu0 %v1672
    %v1806 = vpop.f32.mrf.mxu0
    %v1807 = vadd.f32 0.0, %v1806
    %1808 = vmatmul.f32.gmra.mxu0 %v1674
    %v1809 = vpop.f32.mrf.mxu0
    %v1810 = vadd.f32 0.0, %v1809
    %1811 = vmatmul.f32.gmra.mxu0 %v1676
    %v1812 = vpop.f32.mrf.mxu0
    %v1813 = vadd.f32 0.0, %v1812
    %1814 = vmatmul.f32.gmra.mxu0 %v1678
    %v1815 = vpop.f32.mrf.mxu0
    %v1816 = vadd.f32 0.0, %v1815
    %1817 = vmatmul.f32.gmra.mxu0 %v1680
    %v1818 = vpop.f32.mrf.mxu0
    %v1819 = vadd.f32 0.0, %v1818
    %1820 = vmatmul.f32.gmra.mxu0 %v1682
    %v1821 = vpop.f32.mrf.mxu0
    %v1822 = vadd.f32 0.0, %v1821
    %1823 = vmatmul.f32.gmra.mxu0 %v1684
    %v1824 = vpop.f32.mrf.mxu0
    %v1825 = vadd.f32 0.0, %v1824
    %1826 = vmatmul.f32.gmra.mxu0 %v1683
    %v1827 = vpop.f32.mrf.mxu0
    %v1828 = vadd.f32 0.0, %v1827
    %1829 = vdwg.mxu0
    %1830 = vmatpush.msra.mxu0 %v1620
    %1831 = vmatpush.msra.mxu0 %v1618
    %1832 = vmatpush.msra.mxu0 %v1616
    %1833 = vmatpush.msra.mxu0 %v1614
    %1834 = vmatpush.msra.mxu0 %v1612
    %1835 = vmatpush.msra.mxu0 %v1610
    %1836 = vmatpush.msra.mxu0 %v1608
    %1837 = vmatpush.msra.mxu0 %v1606
    %1838 = vmatpush.msra.mxu0 %v1604
    %1839 = vmatpush.msra.mxu0 %v1602
    %1840 = vmatpush.msra.mxu0 %v1600
    %1841 = vmatpush.msra.mxu0 %v1598
    %1842 = vmatpush.msra.mxu0 %v1596
    %1843 = vmatpush.msra.mxu0 %v1594
    %1844 = vmatpush.msra.mxu0 %v1592
    %1845 = vmatpush.msra.mxu0 %v1590
    %1846 = vmatmul.f32.gmra.mxu0 %v1624
    %v1847 = vpop.f32.mrf.mxu0
    %v1848 = vadd.f32 0.0, %v1847
    %1849 = vmatmul.f32.gmra.mxu0 %v1626
    %v1850 = vpop.f32.mrf.mxu0
    %v1851 = vadd.f32 0.0, %v1850
    %1852 = vmatmul.f32.gmra.mxu0 %v1628
    %v1853 = vpop.f32.mrf.mxu0
    %v1854 = vadd.f32 0.0, %v1853
    %1855 = vmatmul.f32.gmra.mxu0 %v1630
    %v1856 = vpop.f32.mrf.mxu0
    %v1857 = vadd.f32 0.0, %v1856
    %1858 = vmatmul.f32.gmra.mxu0 %v1632
    %v1859 = vpop.f32.mrf.mxu0
    %v1860 = vadd.f32 0.0, %v1859
    %1861 = vmatmul.f32.gmra.mxu0 %v1634
    %v1862 = vpop.f32.mrf.mxu0
    %v1863 = vadd.f32 0.0, %v1862
    %1864 = vmatmul.f32.gmra.mxu0 %v1636
    %v1865 = vpop.f32.mrf.mxu0
    %v1866 = vadd.f32 0.0, %v1865
    %1867 = vmatmul.f32.gmra.mxu0 %v1638
    %v1868 = vpop.f32.mrf.mxu0
    %v1869 = vadd.f32 0.0, %v1868
    %1870 = vmatmul.f32.gmra.mxu0 %v1640
    %v1871 = vpop.f32.mrf.mxu0
    %v1872 = vadd.f32 0.0, %v1871
    %1873 = vmatmul.f32.gmra.mxu0 %v1642
    %v1874 = vpop.f32.mrf.mxu0
    %v1875 = vadd.f32 0.0, %v1874
    %1876 = vmatmul.f32.gmra.mxu0 %v1644
    %v1877 = vpop.f32.mrf.mxu0
    %v1878 = vadd.f32 0.0, %v1877
    %1879 = vmatmul.f32.gmra.mxu0 %v1646
    %v1880 = vpop.f32.mrf.mxu0
    %v1881 = vadd.f32 0.0, %v1880
    %1882 = vmatmul.f32.gmra.mxu0 %v1648
    %v1883 = vpop.f32.mrf.mxu0
    %v1884 = vadd.f32 0.0, %v1883
    %1885 = vmatmul.f32.gmra.mxu0 %v1650
    %v1886 = vpop.f32.mrf.mxu0
    %v1887 = vadd.f32 0.0, %v1886
    %1888 = vmatmul.f32.gmra.mxu0 %v1652
    %v1889 = vpop.f32.mrf.mxu0
    %v1890 = vadd.f32 0.0, %v1889
    %1891 = vmatmul.f32.gmra.mxu0 %v1654
    %v1892 = vpop.f32.mrf.mxu0
    %v1893 = vadd.f32 0.0, %v1892
    %1894 = vmatmul.f32.gmra.mxu0 %v1656
    %v1895 = vpop.f32.mrf.mxu0
    %v1896 = vadd.f32 0.0, %v1895
    %1897 = vmatmul.f32.gmra.mxu0 %v1658
    %v1898 = vpop.f32.mrf.mxu0
    %v1899 = vadd.f32 0.0, %v1898
    %1900 = vmatmul.f32.gmra.mxu0 %v1660
    %v1901 = vpop.f32.mrf.mxu0
    %v1902 = vadd.f32 0.0, %v1901
    %1903 = vmatmul.f32.gmra.mxu0 %v1662
    %v1904 = vpop.f32.mrf.mxu0
    %v1905 = vadd.f32 0.0, %v1904
    %1906 = vmatmul.f32.gmra.mxu0 %v1664
    %v1907 = vpop.f32.mrf.mxu0
    %v1908 = vadd.f32 0.0, %v1907
    %1909 = vmatmul.f32.gmra.mxu0 %v1666
    %v1910 = vpop.f32.mrf.mxu0
    %v1911 = vadd.f32 0.0, %v1910
    %1912 = vmatmul.f32.gmra.mxu0 %v1668
    %v1913 = vpop.f32.mrf.mxu0
    %v1914 = vadd.f32 0.0, %v1913
    %1915 = vmatmul.f32.gmra.mxu0 %v1670
    %v1916 = vpop.f32.mrf.mxu0
    %v1917 = vadd.f32 0.0, %v1916
    %1918 = vmatmul.f32.gmra.mxu0 %v1672
    %v1919 = vpop.f32.mrf.mxu0
    %v1920 = vadd.f32 0.0, %v1919
    %1921 = vmatmul.f32.gmra.mxu0 %v1674
    %v1922 = vpop.f32.mrf.mxu0
    %v1923 = vadd.f32 0.0, %v1922
    %1924 = vmatmul.f32.gmra.mxu0 %v1676
    %v1925 = vpop.f32.mrf.mxu0
    %v1926 = vadd.f32 0.0, %v1925
    %1927 = vmatmul.f32.gmra.mxu0 %v1678
    %v1928 = vpop.f32.mrf.mxu0
    %v1929 = vadd.f32 0.0, %v1928
    %1930 = vmatmul.f32.gmra.mxu0 %v1680
    %v1931 = vpop.f32.mrf.mxu0
    %v1932 = vadd.f32 0.0, %v1931
    %1933 = vmatmul.f32.gmra.mxu0 %v1682
    %v1934 = vpop.f32.mrf.mxu0
    %v1935 = vadd.f32 0.0, %v1934
    %1936 = vmatmul.f32.gmra.mxu0 %v1684
    %v1937 = vpop.f32.mrf.mxu0
    %v1938 = vadd.f32 0.0, %v1937
    %1939 = vmatmul.f32.gmra.mxu0 %v1683
    %v1940 = vpop.f32.mrf.mxu0
    %v1941 = vadd.f32 0.0, %v1940
    %1942 = vdwg.mxu0
    %v1943 = vadd.f32 %v1524, %v1735
    %v1944 = vadd.f32 %v1525, %v1848
    %v1945 = vadd.f32 %v1526, %v1738
    %v1946 = vadd.f32 %v1527, %v1851
    %v1947 = vadd.f32 %v1528, %v1741
    %v1948 = vadd.f32 %v1529, %v1854
    %v1949 = vadd.f32 %v1530, %v1744
    %v1950 = vadd.f32 %v1531, %v1857
    %v1951 = vadd.f32 %v1532, %v1747
    %v1952 = vadd.f32 %v1533, %v1860
    %v1953 = vadd.f32 %v1534, %v1750
    %v1954 = vadd.f32 %v1535, %v1863
    %v1955 = vadd.f32 %v1536, %v1753
    %v1956 = vadd.f32 %v1537, %v1866
    %v1957 = vadd.f32 %v1538, %v1756
    %v1958 = vadd.f32 %v1539, %v1869
    %v1959 = vadd.f32 %v1540, %v1759
    %v1960 = vadd.f32 %v1541, %v1872
    %v1961 = vadd.f32 %v1542, %v1762
    %v1962 = vadd.f32 %v1543, %v1875
    %v1963 = vadd.f32 %v1544, %v1765
    %v1964 = vadd.f32 %v1545, %v1878
    %v1965 = vadd.f32 %v1546, %v1768
    %v1966 = vadd.f32 %v1547, %v1881
    %v1967 = vadd.f32 %v1548, %v1771
    %v1968 = vadd.f32 %v1549, %v1884
    %v1969 = vadd.f32 %v1550, %v1774
    %v1970 = vadd.f32 %v1551, %v1887
    %v1971 = vadd.f32 %v1552, %v1777
    %v1972 = vadd.f32 %v1553, %v1890
    %v1973 = vadd.f32 %v1554, %v1780
    %v1974 = vadd.f32 %v1555, %v1893
    %v1975 = vadd.f32 %v1556, %v1783
    %v1976 = vadd.f32 %v1557, %v1896
    %v1977 = vadd.f32 %v1558, %v1786
    %v1978 = vadd.f32 %v1559, %v1899
    %v1979 = vadd.f32 %v1560, %v1789
    %v1980 = vadd.f32 %v1561, %v1902
    %v1981 = vadd.f32 %v1562, %v1792
    %v1982 = vadd.f32 %v1563, %v1905
    %v1983 = vadd.f32 %v1564, %v1795
    %v1984 = vadd.f32 %v1565, %v1908
    %v1985 = vadd.f32 %v1566, %v1798
    %v1986 = vadd.f32 %v1567, %v1911
    %v1987 = vadd.f32 %v1568, %v1801
    %v1988 = vadd.f32 %v1569, %v1914
    %v1989 = vadd.f32 %v1570, %v1804
    %v1990 = vadd.f32 %v1571, %v1917
    %v1991 = vadd.f32 %v1572, %v1807
    %v1992 = vadd.f32 %v1573, %v1920
    %v1993 = vadd.f32 %v1574, %v1810
    %v1994 = vadd.f32 %v1575, %v1923
    %v1995 = vadd.f32 %v1576, %v1813
    %v1996 = vadd.f32 %v1577, %v1926
    %v1997 = vadd.f32 %v1578, %v1816
    %v1998 = vadd.f32 %v1579, %v1929
    %v1999 = vadd.f32 %v1580, %v1819
    %v2000 = vadd.f32 %v1581, %v1932
    %v2001 = vadd.f32 %v1582, %v1822
    %v2002 = vadd.f32 %v1583, %v1935
    %v2003 = vadd.f32 %v1584, %v1825
    %v2004 = vadd.f32 %v1585, %v1938
    %v2005 = vadd.f32 %v1586, %v1828
    %v2006 = vadd.f32 %v1587, %v1941
    %v2007 = vmax.f32 %v1943, %v1944
    %v2008 = vmax.f32 %v1945, %v1946
    %v2009 = vmax.f32 %v1947, %v1948
    %v2010 = vmax.f32 %v1949, %v1950
    %v2011 = vmax.f32 %v1951, %v1952
    %v2012 = vmax.f32 %v1953, %v1954
    %v2013 = vmax.f32 %v1955, %v1956
    %v2014 = vmax.f32 %v1957, %v1958
    %v2015 = vmax.f32 %v1959, %v1960
    %v2016 = vmax.f32 %v1961, %v1962
    %v2017 = vmax.f32 %v1963, %v1964
    %v2018 = vmax.f32 %v1965, %v1966
    %v2019 = vmax.f32 %v1967, %v1968
    %v2020 = vmax.f32 %v1969, %v1970
    %v2021 = vmax.f32 %v1971, %v1972
    %v2022 = vmax.f32 %v1973, %v1974
    %v2023 = vmax.f32 %v1975, %v1976
    %v2024 = vmax.f32 %v1977, %v1978
    %v2025 = vmax.f32 %v1979, %v1980
    %v2026 = vmax.f32 %v1981, %v1982
    %v2027 = vmax.f32 %v1983, %v1984
    %v2028 = vmax.f32 %v1985, %v1986
    %v2029 = vmax.f32 %v1987, %v1988
    %v2030 = vmax.f32 %v1989, %v1990
    %v2031 = vmax.f32 %v1991, %v1992
    %v2032 = vmax.f32 %v1993, %v1994
    %v2033 = vmax.f32 %v1995, %v1996
    %v2034 = vmax.f32 %v1997, %v1998
    %v2035 = vmax.f32 %v1999, %v2000
    %v2036 = vmax.f32 %v2001, %v2002
    %v2037 = vmax.f32 %v2003, %v2004
    %v2038 = vmax.f32 %v2005, %v2006
    %v2039 = vld [vmem:[%s3] sm:$0x1]
    %v2041 = vperm.slane %v2039, 0
    %v2043 = vadd.f32 %v2007, %v2041
    %v2044 = vadd.f32 %v2008, %v2041
    %v2045 = vadd.f32 %v2009, %v2041
    %v2046 = vadd.f32 %v2010, %v2041
    %v2047 = vadd.f32 %v2011, %v2041
    %v2048 = vadd.f32 %v2012, %v2041
    %v2049 = vadd.f32 %v2013, %v2041
    %v2050 = vadd.f32 %v2014, %v2041
    %v2051 = vadd.f32 %v2015, %v2041
    %v2052 = vadd.f32 %v2016, %v2041
    %v2053 = vadd.f32 %v2017, %v2041
    %v2054 = vadd.f32 %v2018, %v2041
    %v2055 = vadd.f32 %v2019, %v2041
    %v2056 = vadd.f32 %v2020, %v2041
    %v2057 = vadd.f32 %v2021, %v2041
    %v2058 = vadd.f32 %v2022, %v2041
    %v2059 = vadd.f32 %v2023, %v2041
    %v2060 = vadd.f32 %v2024, %v2041
    %v2061 = vadd.f32 %v2025, %v2041
    %v2062 = vadd.f32 %v2026, %v2041
    %v2063 = vadd.f32 %v2027, %v2041
    %v2064 = vadd.f32 %v2028, %v2041
    %v2065 = vadd.f32 %v2029, %v2041
    %v2066 = vadd.f32 %v2030, %v2041
    %v2067 = vadd.f32 %v2031, %v2041
    %v2068 = vadd.f32 %v2032, %v2041
    %v2069 = vadd.f32 %v2033, %v2041
    %v2070 = vadd.f32 %v2034, %v2041
    %v2071 = vadd.f32 %v2035, %v2041
    %v2072 = vadd.f32 %v2036, %v2041
    %v2073 = vadd.f32 %v2037, %v2041
    %v2074 = vadd.f32 %v2038, %v2041
    %v2075 = vmax.f32 %v2043, 0.0
    %v2076 = vmax.f32 %v2044, 0.0
    %v2077 = vmax.f32 %v2045, 0.0
    %v2078 = vmax.f32 %v2046, 0.0
    %v2079 = vmax.f32 %v2047, 0.0
    %v2080 = vmax.f32 %v2048, 0.0
    %v2081 = vmax.f32 %v2049, 0.0
    %v2082 = vmax.f32 %v2050, 0.0
    %v2083 = vmax.f32 %v2051, 0.0
    %v2084 = vmax.f32 %v2052, 0.0
    %v2085 = vmax.f32 %v2053, 0.0
    %v2086 = vmax.f32 %v2054, 0.0
    %v2087 = vmax.f32 %v2055, 0.0
    %v2088 = vmax.f32 %v2056, 0.0
    %v2089 = vmax.f32 %v2057, 0.0
    %v2090 = vmax.f32 %v2058, 0.0
    %v2091 = vmax.f32 %v2059, 0.0
    %v2092 = vmax.f32 %v2060, 0.0
    %v2093 = vmax.f32 %v2061, 0.0
    %v2094 = vmax.f32 %v2062, 0.0
    %v2095 = vmax.f32 %v2063, 0.0
    %v2096 = vmax.f32 %v2064, 0.0
    %v2097 = vmax.f32 %v2065, 0.0
    %v2098 = vmax.f32 %v2066, 0.0
    %v2099 = vmax.f32 %v2067, 0.0
    %v2100 = vmax.f32 %v2068, 0.0
    %v2101 = vmax.f32 %v2069, 0.0
    %v2102 = vmax.f32 %v2070, 0.0
    %v2103 = vmax.f32 %v2071, 0.0
    %v2104 = vmax.f32 %v2072, 0.0
    %v2105 = vmax.f32 %v2073, 0.0
    %v2106 = vmax.f32 %v2074, 0.0
    %v2139 = vrot.slane %v2075, 1
    %v2140 = vrot.slane %v2076, 1
    %v2141 = vsel %vm202, %v2139, %v2140
    %v2142 = vrot.slane %v2077, 1
    %v2143 = vsel %vm202, %v2140, %v2142
    %v2144 = vrot.slane %v2078, 1
    %v2145 = vsel %vm202, %v2142, %v2144
    %v2146 = vrot.slane %v2079, 1
    %v2147 = vsel %vm202, %v2144, %v2146
    %v2148 = vrot.slane %v2080, 1
    %v2149 = vsel %vm202, %v2146, %v2148
    %v2150 = vrot.slane %v2081, 1
    %v2151 = vsel %vm202, %v2148, %v2150
    %v2152 = vrot.slane %v2082, 1
    %v2153 = vsel %vm202, %v2150, %v2152
    %v2154 = vrot.slane %v2083, 1
    %v2155 = vsel %vm202, %v2152, %v2154
    %v2156 = vrot.slane %v2084, 1
    %v2157 = vsel %vm202, %v2154, %v2156
    %v2158 = vrot.slane %v2085, 1
    %v2159 = vsel %vm202, %v2156, %v2158
    %v2160 = vrot.slane %v2086, 1
    %v2161 = vsel %vm202, %v2158, %v2160
    %v2162 = vrot.slane %v2087, 1
    %v2163 = vsel %vm202, %v2160, %v2162
    %v2164 = vrot.slane %v2088, 1
    %v2165 = vsel %vm202, %v2162, %v2164
    %v2166 = vrot.slane %v2089, 1
    %v2167 = vsel %vm202, %v2164, %v2166
    %v2168 = vrot.slane %v2090, 1
    %v2169 = vsel %vm202, %v2166, %v2168
    %v2170 = vrot.slane %v2091, 1
    %v2171 = vsel %vm202, %v2168, %v2170
    %v2172 = vrot.slane %v2092, 1
    %v2173 = vsel %vm202, %v2170, %v2172
    %v2174 = vrot.slane %v2093, 1
    %v2175 = vsel %vm202, %v2172, %v2174
    %v2176 = vrot.slane %v2094, 1
    %v2177 = vsel %vm202, %v2174, %v2176
    %v2178 = vrot.slane %v2095, 1
    %v2179 = vsel %vm202, %v2176, %v2178
    %v2180 = vrot.slane %v2096, 1
    %v2181 = vsel %vm202, %v2178, %v2180
    %v2182 = vrot.slane %v2097, 1
    %v2183 = vsel %vm202, %v2180, %v2182
    %v2184 = vrot.slane %v2098, 1
    %v2185 = vsel %vm202, %v2182, %v2184
    %v2186 = vrot.slane %v2099, 1
    %v2187 = vsel %vm202, %v2184, %v2186
    %v2188 = vrot.slane %v2100, 1
    %v2189 = vsel %vm202, %v2186, %v2188
    %v2190 = vrot.slane %v2101, 1
    %v2191 = vsel %vm202, %v2188, %v2190
    %v2192 = vrot.slane %v2102, 1
    %v2193 = vsel %vm202, %v2190, %v2192
    %v2194 = vrot.slane %v2103, 1
    %v2195 = vsel %vm202, %v2192, %v2194
    %v2196 = vrot.slane %v2104, 1
    %v2197 = vsel %vm202, %v2194, %v2196
    %v2198 = vrot.slane %v2105, 1
    %v2199 = vsel %vm202, %v2196, %v2198
    %v2200 = vrot.slane %v2106, 1
    %v2201 = vsel %vm202, %v2198, %v2200
    %v2234 = vmax.f32 %v2075, %v2141
    %v2235 = vmax.f32 %v2076, %v2143
    %v2236 = vmax.f32 %v2077, %v2145
    %v2237 = vmax.f32 %v2078, %v2147
    %v2238 = vmax.f32 %v2079, %v2149
    %v2239 = vmax.f32 %v2080, %v2151
    %v2240 = vmax.f32 %v2081, %v2153
    %v2241 = vmax.f32 %v2082, %v2155
    %v2242 = vmax.f32 %v2083, %v2157
    %v2243 = vmax.f32 %v2084, %v2159
    %v2244 = vmax.f32 %v2085, %v2161
    %v2245 = vmax.f32 %v2086, %v2163
    %v2246 = vmax.f32 %v2087, %v2165
    %v2247 = vmax.f32 %v2088, %v2167
    %v2248 = vmax.f32 %v2089, %v2169
    %v2249 = vmax.f32 %v2090, %v2171
    %v2250 = vmax.f32 %v2091, %v2173
    %v2251 = vmax.f32 %v2092, %v2175
    %v2252 = vmax.f32 %v2093, %v2177
    %v2253 = vmax.f32 %v2094, %v2179
    %v2254 = vmax.f32 %v2095, %v2181
    %v2255 = vmax.f32 %v2096, %v2183
    %v2256 = vmax.f32 %v2097, %v2185
    %v2257 = vmax.f32 %v2098, %v2187
    %v2258 = vmax.f32 %v2099, %v2189
    %v2259 = vmax.f32 %v2100, %v2191
    %v2260 = vmax.f32 %v2101, %v2193
    %v2261 = vmax.f32 %v2102, %v2195
    %v2262 = vmax.f32 %v2103, %v2197
    %v2263 = vmax.f32 %v2104, %v2199
    %v2264 = vmax.f32 %v2105, %v2201
    %v2265 = vmax.f32 %v2106, %v2200
    %v2266 = vld [vmem:[#allocation4] sm:$0xff]
    %v2267 = vld [vmem:[#allocation4 + $0x8] sm:$0xff]
    %v2268 = vld [vmem:[#allocation4 + $0x10] sm:$0xff]
    %v2269 = vld [vmem:[#allocation4 + $0x18] sm:$0xff]
    %v2270 = vld [vmem:[#allocation4 + $0x20] sm:$0xff]
    %v2271 = vld [vmem:[#allocation4 + $0x28] sm:$0xff]
    %v2272 = vld [vmem:[#allocation4 + $0x30] sm:$0xff]
    %v2273 = vld [vmem:[#allocation4 + $0x38] sm:$0xff]
    %v2274 = vld [vmem:[#allocation4 + $0x40] sm:$0xff]
    %v2275 = vld [vmem:[#allocation4 + $0x48] sm:$0xff]
    %v2276 = vld [vmem:[#allocation4 + $0x50] sm:$0xff]
    %v2277 = vld [vmem:[#allocation4 + $0x58] sm:$0xff]
    %v2278 = vld [vmem:[#allocation4 + $0x60] sm:$0xff]
    %v2279 = vld [vmem:[#allocation4 + $0x68] sm:$0xff]
    %v2280 = vld [vmem:[#allocation4 + $0x70] sm:$0xff]
    %v2281 = vld [vmem:[#allocation4 + $0x78] sm:$0xff]
    %v2282 = vld [vmem:[#allocation4 + $0x80] sm:$0xff]
    %v2283 = vld [vmem:[#allocation4 + $0x88] sm:$0xff]
    %v2284 = vld [vmem:[#allocation4 + $0x90] sm:$0xff]
    %v2285 = vld [vmem:[#allocation4 + $0x98] sm:$0xff]
    %v2286 = vld [vmem:[#allocation4 + $0xa0] sm:$0xff]
    %v2287 = vld [vmem:[#allocation4 + $0xa8] sm:$0xff]
    %v2288 = vld [vmem:[#allocation4 + $0xb0] sm:$0xff]
    %v2289 = vld [vmem:[#allocation4 + $0xb8] sm:$0xff]
    %v2290 = vld [vmem:[#allocation4 + $0xc0] sm:$0xff]
    %v2291 = vld [vmem:[#allocation4 + $0xc8] sm:$0xff]
    %v2292 = vld [vmem:[#allocation4 + $0xd0] sm:$0xff]
    %v2293 = vld [vmem:[#allocation4 + $0xd8] sm:$0xff]
    %v2294 = vld [vmem:[#allocation4 + $0xe0] sm:$0xff]
    %v2295 = vld [vmem:[#allocation4 + $0xe8] sm:$0xff]
    %v2296 = vld [vmem:[#allocation4 + $0xf0] sm:$0xff]
    %v2297 = vld [vmem:[#allocation4 + $0xf8] sm:$0xff]
    %s2298 = scalar_lea.vmem [#allocation4], 256
    %v2299 = vld [vmem:[%s2298] sm:$0xff]
    %v2300 = vld [vmem:[%s2298 + $0x8] sm:$0xff]
    %v2301 = vld [vmem:[%s2298 + $0x10] sm:$0xff]
    %v2302 = vld [vmem:[%s2298 + $0x18] sm:$0xff]
    %v2303 = vld [vmem:[%s2298 + $0x20] sm:$0xff]
    %v2304 = vld [vmem:[%s2298 + $0x28] sm:$0xff]
    %v2305 = vld [vmem:[%s2298 + $0x30] sm:$0xff]
    %v2306 = vld [vmem:[%s2298 + $0x38] sm:$0xff]
    %v2307 = vld [vmem:[%s2298 + $0x40] sm:$0xff]
    %v2308 = vld [vmem:[%s2298 + $0x48] sm:$0xff]
    %v2309 = vld [vmem:[%s2298 + $0x50] sm:$0xff]
    %v2310 = vld [vmem:[%s2298 + $0x58] sm:$0xff]
    %v2311 = vld [vmem:[%s2298 + $0x60] sm:$0xff]
    %v2312 = vld [vmem:[%s2298 + $0x68] sm:$0xff]
    %v2313 = vld [vmem:[%s2298 + $0x70] sm:$0xff]
    %v2314 = vld [vmem:[%s2298 + $0x78] sm:$0xff]
    %v2315 = vld [vmem:[%s2298 + $0x80] sm:$0xff]
    %v2316 = vld [vmem:[%s2298 + $0x88] sm:$0xff]
    %v2317 = vld [vmem:[%s2298 + $0x90] sm:$0xff]
    %v2318 = vld [vmem:[%s2298 + $0x98] sm:$0xff]
    %v2319 = vld [vmem:[%s2298 + $0xa0] sm:$0xff]
    %v2320 = vld [vmem:[%s2298 + $0xa8] sm:$0xff]
    %v2321 = vld [vmem:[%s2298 + $0xb0] sm:$0xff]
    %v2322 = vld [vmem:[%s2298 + $0xb8] sm:$0xff]
    %v2323 = vld [vmem:[%s2298 + $0xc0] sm:$0xff]
    %v2324 = vld [vmem:[%s2298 + $0xc8] sm:$0xff]
    %v2325 = vld [vmem:[%s2298 + $0xd0] sm:$0xff]
    %v2326 = vld [vmem:[%s2298 + $0xd8] sm:$0xff]
    %v2327 = vld [vmem:[%s2298 + $0xe0] sm:$0xff]
    %v2328 = vld [vmem:[%s2298 + $0xe8] sm:$0xff]
    %v2329 = vld [vmem:[%s2298 + $0xf0] sm:$0xff]
    %v2330 = vld [vmem:[%s2298 + $0xf8] sm:$0xff]
    %v2362 = vrot.slane %v2234, 2
    %v2363 = vrot.slane %v2235, 2
    %v2364 = vsel %vm783, %v2362, %v2363
    %v2365 = vrot.slane %v2236, 2
    %v2366 = vsel %vm783, %v2363, %v2365
    %v2367 = vrot.slane %v2237, 2
    %v2368 = vsel %vm783, %v2365, %v2367
    %v2369 = vrot.slane %v2238, 2
    %v2370 = vsel %vm783, %v2367, %v2369
    %v2371 = vrot.slane %v2239, 2
    %v2372 = vsel %vm783, %v2369, %v2371
    %v2373 = vrot.slane %v2240, 2
    %v2374 = vsel %vm783, %v2371, %v2373
    %v2375 = vrot.slane %v2241, 2
    %v2376 = vsel %vm783, %v2373, %v2375
    %v2377 = vrot.slane %v2242, 2
    %v2378 = vsel %vm783, %v2375, %v2377
    %v2379 = vrot.slane %v2243, 2
    %v2380 = vsel %vm783, %v2377, %v2379
    %v2381 = vrot.slane %v2244, 2
    %v2382 = vsel %vm783, %v2379, %v2381
    %v2383 = vrot.slane %v2245, 2
    %v2384 = vsel %vm783, %v2381, %v2383
    %v2385 = vrot.slane %v2246, 2
    %v2386 = vsel %vm783, %v2383, %v2385
    %v2387 = vrot.slane %v2247, 2
    %v2388 = vsel %vm783, %v2385, %v2387
    %v2389 = vrot.slane %v2248, 2
    %v2390 = vsel %vm783, %v2387, %v2389
    %v2391 = vrot.slane %v2249, 2
    %v2392 = vsel %vm783, %v2389, %v2391
    %v2393 = vrot.slane %v2250, 2
    %v2394 = vsel %vm783, %v2391, %v2393
    %v2395 = vrot.slane %v2251, 2
    %v2396 = vsel %vm783, %v2393, %v2395
    %v2397 = vrot.slane %v2252, 2
    %v2398 = vsel %vm783, %v2395, %v2397
    %v2399 = vrot.slane %v2253, 2
    %v2400 = vsel %vm783, %v2397, %v2399
    %v2401 = vrot.slane %v2254, 2
    %v2402 = vsel %vm783, %v2399, %v2401
    %v2403 = vrot.slane %v2255, 2
    %v2404 = vsel %vm783, %v2401, %v2403
    %v2405 = vrot.slane %v2256, 2
    %v2406 = vsel %vm783, %v2403, %v2405
    %v2407 = vrot.slane %v2257, 2
    %v2408 = vsel %vm783, %v2405, %v2407
    %v2409 = vrot.slane %v2258, 2
    %v2410 = vsel %vm783, %v2407, %v2409
    %v2411 = vrot.slane %v2259, 2
    %v2412 = vsel %vm783, %v2409, %v2411
    %v2413 = vrot.slane %v2260, 2
    %v2414 = vsel %vm783, %v2411, %v2413
    %v2415 = vrot.slane %v2261, 2
    %v2416 = vsel %vm783, %v2413, %v2415
    %v2417 = vrot.slane %v2262, 2
    %v2418 = vsel %vm783, %v2415, %v2417
    %v2419 = vrot.slane %v2263, 2
    %v2420 = vsel %vm783, %v2417, %v2419
    %v2421 = vrot.slane %v2264, 2
    %v2422 = vsel %vm783, %v2419, %v2421
    %2454 = vmatpush.msra.mxu0 %v2329
    %2455 = vmatpush.msra.mxu0 %v2327
    %2456 = vmatpush.msra.mxu0 %v2325
    %2457 = vmatpush.msra.mxu0 %v2323
    %2458 = vmatpush.msra.mxu0 %v2321
    %2459 = vmatpush.msra.mxu0 %v2319
    %2460 = vmatpush.msra.mxu0 %v2317
    %2461 = vmatpush.msra.mxu0 %v2315
    %2462 = vmatpush.msra.mxu0 %v2313
    %2463 = vmatpush.msra.mxu0 %v2311
    %2464 = vmatpush.msra.mxu0 %v2309
    %2465 = vmatpush.msra.mxu0 %v2307
    %2466 = vmatpush.msra.mxu0 %v2305
    %2467 = vmatpush.msra.mxu0 %v2303
    %2468 = vmatpush.msra.mxu0 %v2301
    %2469 = vmatpush.msra.mxu0 %v2299
    %2470 = vmatmul.f32.gmra.mxu0 %v2364
    %v2471 = vpop.f32.mrf.mxu0
    %v2472 = vadd.f32 0.0, %v2471
    %2473 = vmatmul.f32.gmra.mxu0 %v2366
    %v2474 = vpop.f32.mrf.mxu0
    %v2475 = vadd.f32 0.0, %v2474
    %2476 = vmatmul.f32.gmra.mxu0 %v2368
    %v2477 = vpop.f32.mrf.mxu0
    %v2478 = vadd.f32 0.0, %v2477
    %2479 = vmatmul.f32.gmra.mxu0 %v2370
    %v2480 = vpop.f32.mrf.mxu0
    %v2481 = vadd.f32 0.0, %v2480
    %2482 = vmatmul.f32.gmra.mxu0 %v2372
    %v2483 = vpop.f32.mrf.mxu0
    %v2484 = vadd.f32 0.0, %v2483
    %2485 = vmatmul.f32.gmra.mxu0 %v2374
    %v2486 = vpop.f32.mrf.mxu0
    %v2487 = vadd.f32 0.0, %v2486
    %2488 = vmatmul.f32.gmra.mxu0 %v2376
    %v2489 = vpop.f32.mrf.mxu0
    %v2490 = vadd.f32 0.0, %v2489
    %2491 = vmatmul.f32.gmra.mxu0 %v2378
    %v2492 = vpop.f32.mrf.mxu0
    %v2493 = vadd.f32 0.0, %v2492
    %2494 = vmatmul.f32.gmra.mxu0 %v2380
    %v2495 = vpop.f32.mrf.mxu0
    %v2496 = vadd.f32 0.0, %v2495
    %2497 = vmatmul.f32.gmra.mxu0 %v2382
    %v2498 = vpop.f32.mrf.mxu0
    %v2499 = vadd.f32 0.0, %v2498
    %2500 = vmatmul.f32.gmra.mxu0 %v2384
    %v2501 = vpop.f32.mrf.mxu0
    %v2502 = vadd.f32 0.0, %v2501
    %2503 = vmatmul.f32.gmra.mxu0 %v2386
    %v2504 = vpop.f32.mrf.mxu0
    %v2505 = vadd.f32 0.0, %v2504
    %2506 = vmatmul.f32.gmra.mxu0 %v2388
    %v2507 = vpop.f32.mrf.mxu0
    %v2508 = vadd.f32 0.0, %v2507
    %2509 = vmatmul.f32.gmra.mxu0 %v2390
    %v2510 = vpop.f32.mrf.mxu0
    %v2511 = vadd.f32 0.0, %v2510
    %2512 = vmatmul.f32.gmra.mxu0 %v2392
    %v2513 = vpop.f32.mrf.mxu0
    %v2514 = vadd.f32 0.0, %v2513
    %2515 = vmatmul.f32.gmra.mxu0 %v2394
    %v2516 = vpop.f32.mrf.mxu0
    %v2517 = vadd.f32 0.0, %v2516
    %2518 = vmatmul.f32.gmra.mxu0 %v2396
    %v2519 = vpop.f32.mrf.mxu0
    %v2520 = vadd.f32 0.0, %v2519
    %2521 = vmatmul.f32.gmra.mxu0 %v2398
    %v2522 = vpop.f32.mrf.mxu0
    %v2523 = vadd.f32 0.0, %v2522
    %2524 = vmatmul.f32.gmra.mxu0 %v2400
    %v2525 = vpop.f32.mrf.mxu0
    %v2526 = vadd.f32 0.0, %v2525
    %2527 = vmatmul.f32.gmra.mxu0 %v2402
    %v2528 = vpop.f32.mrf.mxu0
    %v2529 = vadd.f32 0.0, %v2528
    %2530 = vmatmul.f32.gmra.mxu0 %v2404
    %v2531 = vpop.f32.mrf.mxu0
    %v2532 = vadd.f32 0.0, %v2531
    %2533 = vmatmul.f32.gmra.mxu0 %v2406
    %v2534 = vpop.f32.mrf.mxu0
    %v2535 = vadd.f32 0.0, %v2534
    %2536 = vmatmul.f32.gmra.mxu0 %v2408
    %v2537 = vpop.f32.mrf.mxu0
    %v2538 = vadd.f32 0.0, %v2537
    %2539 = vmatmul.f32.gmra.mxu0 %v2410
    %v2540 = vpop.f32.mrf.mxu0
    %v2541 = vadd.f32 0.0, %v2540
    %2542 = vmatmul.f32.gmra.mxu0 %v2412
    %v2543 = vpop.f32.mrf.mxu0
    %v2544 = vadd.f32 0.0, %v2543
    %2545 = vmatmul.f32.gmra.mxu0 %v2414
    %v2546 = vpop.f32.mrf.mxu0
    %v2547 = vadd.f32 0.0, %v2546
    %2548 = vmatmul.f32.gmra.mxu0 %v2416
    %v2549 = vpop.f32.mrf.mxu0
    %v2550 = vadd.f32 0.0, %v2549
    %2551 = vmatmul.f32.gmra.mxu0 %v2418
    %v2552 = vpop.f32.mrf.mxu0
    %v2553 = vadd.f32 0.0, %v2552
    %2554 = vmatmul.f32.gmra.mxu0 %v2420
    %v2555 = vpop.f32.mrf.mxu0
    %v2556 = vadd.f32 0.0, %v2555
    %2557 = vmatmul.f32.gmra.mxu0 %v2422
    %v2558 = vpop.f32.mrf.mxu0
    %v2559 = vadd.f32 0.0, %v2558
    %2560 = vmatmul.f32.gmra.mxu0 %v2421
    %v2561 = vpop.f32.mrf.mxu0
    %v2562 = vadd.f32 0.0, %v2561
    %2563 = vdwg.mxu0
    %2564 = vmatpush.msra.mxu0 %v2330
    %2565 = vmatpush.msra.mxu0 %v2328
    %2566 = vmatpush.msra.mxu0 %v2326
    %2567 = vmatpush.msra.mxu0 %v2324
    %2568 = vmatpush.msra.mxu0 %v2322
    %2569 = vmatpush.msra.mxu0 %v2320
    %2570 = vmatpush.msra.mxu0 %v2318
    %2571 = vmatpush.msra.mxu0 %v2316
    %2572 = vmatpush.msra.mxu0 %v2314
    %2573 = vmatpush.msra.mxu0 %v2312
    %2574 = vmatpush.msra.mxu0 %v2310
    %2575 = vmatpush.msra.mxu0 %v2308
    %2576 = vmatpush.msra.mxu0 %v2306
    %2577 = vmatpush.msra.mxu0 %v2304
    %2578 = vmatpush.msra.mxu0 %v2302
    %2579 = vmatpush.msra.mxu0 %v2300
    %2580 = vmatmul.f32.gmra.mxu0 %v2364
    %v2581 = vpop.f32.mrf.mxu0
    %v2582 = vadd.f32 0.0, %v2581
    %2583 = vmatmul.f32.gmra.mxu0 %v2366
    %v2584 = vpop.f32.mrf.mxu0
    %v2585 = vadd.f32 0.0, %v2584
    %2586 = vmatmul.f32.gmra.mxu0 %v2368
    %v2587 = vpop.f32.mrf.mxu0
    %v2588 = vadd.f32 0.0, %v2587
    %2589 = vmatmul.f32.gmra.mxu0 %v2370
    %v2590 = vpop.f32.mrf.mxu0
    %v2591 = vadd.f32 0.0, %v2590
    %2592 = vmatmul.f32.gmra.mxu0 %v2372
    %v2593 = vpop.f32.mrf.mxu0
    %v2594 = vadd.f32 0.0, %v2593
    %2595 = vmatmul.f32.gmra.mxu0 %v2374
    %v2596 = vpop.f32.mrf.mxu0
    %v2597 = vadd.f32 0.0, %v2596
    %2598 = vmatmul.f32.gmra.mxu0 %v2376
    %v2599 = vpop.f32.mrf.mxu0
    %v2600 = vadd.f32 0.0, %v2599
    %2601 = vmatmul.f32.gmra.mxu0 %v2378
    %v2602 = vpop.f32.mrf.mxu0
    %v2603 = vadd.f32 0.0, %v2602
    %2604 = vmatmul.f32.gmra.mxu0 %v2380
    %v2605 = vpop.f32.mrf.mxu0
    %v2606 = vadd.f32 0.0, %v2605
    %2607 = vmatmul.f32.gmra.mxu0 %v2382
    %v2608 = vpop.f32.mrf.mxu0
    %v2609 = vadd.f32 0.0, %v2608
    %2610 = vmatmul.f32.gmra.mxu0 %v2384
    %v2611 = vpop.f32.mrf.mxu0
    %v2612 = vadd.f32 0.0, %v2611
    %2613 = vmatmul.f32.gmra.mxu0 %v2386
    %v2614 = vpop.f32.mrf.mxu0
    %v2615 = vadd.f32 0.0, %v2614
    %2616 = vmatmul.f32.gmra.mxu0 %v2388
    %v2617 = vpop.f32.mrf.mxu0
    %v2618 = vadd.f32 0.0, %v2617
    %2619 = vmatmul.f32.gmra.mxu0 %v2390
    %v2620 = vpop.f32.mrf.mxu0
    %v2621 = vadd.f32 0.0, %v2620
    %2622 = vmatmul.f32.gmra.mxu0 %v2392
    %v2623 = vpop.f32.mrf.mxu0
    %v2624 = vadd.f32 0.0, %v2623
    %2625 = vmatmul.f32.gmra.mxu0 %v2394
    %v2626 = vpop.f32.mrf.mxu0
    %v2627 = vadd.f32 0.0, %v2626
    %2628 = vmatmul.f32.gmra.mxu0 %v2396
    %v2629 = vpop.f32.mrf.mxu0
    %v2630 = vadd.f32 0.0, %v2629
    %2631 = vmatmul.f32.gmra.mxu0 %v2398
    %v2632 = vpop.f32.mrf.mxu0
    %v2633 = vadd.f32 0.0, %v2632
    %2634 = vmatmul.f32.gmra.mxu0 %v2400
    %v2635 = vpop.f32.mrf.mxu0
    %v2636 = vadd.f32 0.0, %v2635
    %2637 = vmatmul.f32.gmra.mxu0 %v2402
    %v2638 = vpop.f32.mrf.mxu0
    %v2639 = vadd.f32 0.0, %v2638
    %2640 = vmatmul.f32.gmra.mxu0 %v2404
    %v2641 = vpop.f32.mrf.mxu0
    %v2642 = vadd.f32 0.0, %v2641
    %2643 = vmatmul.f32.gmra.mxu0 %v2406
    %v2644 = vpop.f32.mrf.mxu0
    %v2645 = vadd.f32 0.0, %v2644
    %2646 = vmatmul.f32.gmra.mxu0 %v2408
    %v2647 = vpop.f32.mrf.mxu0
    %v2648 = vadd.f32 0.0, %v2647
    %2649 = vmatmul.f32.gmra.mxu0 %v2410
    %v2650 = vpop.f32.mrf.mxu0
    %v2651 = vadd.f32 0.0, %v2650
    %2652 = vmatmul.f32.gmra.mxu0 %v2412
    %v2653 = vpop.f32.mrf.mxu0
    %v2654 = vadd.f32 0.0, %v2653
    %2655 = vmatmul.f32.gmra.mxu0 %v2414
    %v2656 = vpop.f32.mrf.mxu0
    %v2657 = vadd.f32 0.0, %v2656
    %2658 = vmatmul.f32.gmra.mxu0 %v2416
    %v2659 = vpop.f32.mrf.mxu0
    %v2660 = vadd.f32 0.0, %v2659
    %2661 = vmatmul.f32.gmra.mxu0 %v2418
    %v2662 = vpop.f32.mrf.mxu0
    %v2663 = vadd.f32 0.0, %v2662
    %2664 = vmatmul.f32.gmra.mxu0 %v2420
    %v2665 = vpop.f32.mrf.mxu0
    %v2666 = vadd.f32 0.0, %v2665
    %2667 = vmatmul.f32.gmra.mxu0 %v2422
    %v2668 = vpop.f32.mrf.mxu0
    %v2669 = vadd.f32 0.0, %v2668
    %2670 = vmatmul.f32.gmra.mxu0 %v2421
    %v2671 = vpop.f32.mrf.mxu0
    %v2672 = vadd.f32 0.0, %v2671
    %2673 = vdwg.mxu0
    %2674 = vmatpush.msra.mxu0 %v2296
    %2675 = vmatpush.msra.mxu0 %v2294
    %2676 = vmatpush.msra.mxu0 %v2292
    %2677 = vmatpush.msra.mxu0 %v2290
    %2678 = vmatpush.msra.mxu0 %v2288
    %2679 = vmatpush.msra.mxu0 %v2286
    %2680 = vmatpush.msra.mxu0 %v2284
    %2681 = vmatpush.msra.mxu0 %v2282
    %2682 = vmatpush.msra.mxu0 %v2280
    %2683 = vmatpush.msra.mxu0 %v2278
    %2684 = vmatpush.msra.mxu0 %v2276
    %2685 = vmatpush.msra.mxu0 %v2274
    %2686 = vmatpush.msra.mxu0 %v2272
    %2687 = vmatpush.msra.mxu0 %v2270
    %2688 = vmatpush.msra.mxu0 %v2268
    %2689 = vmatpush.msra.mxu0 %v2266
    %2690 = vmatmul.f32.gmra.mxu0 %v2234
    %v2691 = vpop.f32.mrf.mxu0
    %v2692 = vadd.f32 %v2472, %v2691
    %2693 = vmatmul.f32.gmra.mxu0 %v2235
    %v2694 = vpop.f32.mrf.mxu0
    %v2695 = vadd.f32 %v2475, %v2694
    %2696 = vmatmul.f32.gmra.mxu0 %v2236
    %v2697 = vpop.f32.mrf.mxu0
    %v2698 = vadd.f32 %v2478, %v2697
    %2699 = vmatmul.f32.gmra.mxu0 %v2237
    %v2700 = vpop.f32.mrf.mxu0
    %v2701 = vadd.f32 %v2481, %v2700
    %2702 = vmatmul.f32.gmra.mxu0 %v2238
    %v2703 = vpop.f32.mrf.mxu0
    %v2704 = vadd.f32 %v2484, %v2703
    %2705 = vmatmul.f32.gmra.mxu0 %v2239
    %v2706 = vpop.f32.mrf.mxu0
    %v2707 = vadd.f32 %v2487, %v2706
    %2708 = vmatmul.f32.gmra.mxu0 %v2240
    %v2709 = vpop.f32.mrf.mxu0
    %v2710 = vadd.f32 %v2490, %v2709
    %2711 = vmatmul.f32.gmra.mxu0 %v2241
    %v2712 = vpop.f32.mrf.mxu0
    %v2713 = vadd.f32 %v2493, %v2712
    %2714 = vmatmul.f32.gmra.mxu0 %v2242
    %v2715 = vpop.f32.mrf.mxu0
    %v2716 = vadd.f32 %v2496, %v2715
    %2717 = vmatmul.f32.gmra.mxu0 %v2243
    %v2718 = vpop.f32.mrf.mxu0
    %v2719 = vadd.f32 %v2499, %v2718
    %2720 = vmatmul.f32.gmra.mxu0 %v2244
    %v2721 = vpop.f32.mrf.mxu0
    %v2722 = vadd.f32 %v2502, %v2721
    %2723 = vmatmul.f32.gmra.mxu0 %v2245
    %v2724 = vpop.f32.mrf.mxu0
    %v2725 = vadd.f32 %v2505, %v2724
    %2726 = vmatmul.f32.gmra.mxu0 %v2246
    %v2727 = vpop.f32.mrf.mxu0
    %v2728 = vadd.f32 %v2508, %v2727
    %2729 = vmatmul.f32.gmra.mxu0 %v2247
    %v2730 = vpop.f32.mrf.mxu0
    %v2731 = vadd.f32 %v2511, %v2730
    %2732 = vmatmul.f32.gmra.mxu0 %v2248
    %v2733 = vpop.f32.mrf.mxu0
    %v2734 = vadd.f32 %v2514, %v2733
    %2735 = vmatmul.f32.gmra.mxu0 %v2249
    %v2736 = vpop.f32.mrf.mxu0
    %v2737 = vadd.f32 %v2517, %v2736
    %2738 = vmatmul.f32.gmra.mxu0 %v2250
    %v2739 = vpop.f32.mrf.mxu0
    %v2740 = vadd.f32 %v2520, %v2739
    %2741 = vmatmul.f32.gmra.mxu0 %v2251
    %v2742 = vpop.f32.mrf.mxu0
    %v2743 = vadd.f32 %v2523, %v2742
    %2744 = vmatmul.f32.gmra.mxu0 %v2252
    %v2745 = vpop.f32.mrf.mxu0
    %v2746 = vadd.f32 %v2526, %v2745
    %2747 = vmatmul.f32.gmra.mxu0 %v2253
    %v2748 = vpop.f32.mrf.mxu0
    %v2749 = vadd.f32 %v2529, %v2748
    %2750 = vmatmul.f32.gmra.mxu0 %v2254
    %v2751 = vpop.f32.mrf.mxu0
    %v2752 = vadd.f32 %v2532, %v2751
    %2753 = vmatmul.f32.gmra.mxu0 %v2255
    %v2754 = vpop.f32.mrf.mxu0
    %v2755 = vadd.f32 %v2535, %v2754
    %2756 = vmatmul.f32.gmra.mxu0 %v2256
    %v2757 = vpop.f32.mrf.mxu0
    %v2758 = vadd.f32 %v2538, %v2757
    %2759 = vmatmul.f32.gmra.mxu0 %v2257
    %v2760 = vpop.f32.mrf.mxu0
    %v2761 = vadd.f32 %v2541, %v2760
    %2762 = vmatmul.f32.gmra.mxu0 %v2258
    %v2763 = vpop.f32.mrf.mxu0
    %v2764 = vadd.f32 %v2544, %v2763
    %2765 = vmatmul.f32.gmra.mxu0 %v2259
    %v2766 = vpop.f32.mrf.mxu0
    %v2767 = vadd.f32 %v2547, %v2766
    %2768 = vmatmul.f32.gmra.mxu0 %v2260
    %v2769 = vpop.f32.mrf.mxu0
    %v2770 = vadd.f32 %v2550, %v2769
    %2771 = vmatmul.f32.gmra.mxu0 %v2261
    %v2772 = vpop.f32.mrf.mxu0
    %v2773 = vadd.f32 %v2553, %v2772
    %2774 = vmatmul.f32.gmra.mxu0 %v2262
    %v2775 = vpop.f32.mrf.mxu0
    %v2776 = vadd.f32 %v2556, %v2775
    %2777 = vmatmul.f32.gmra.mxu0 %v2263
    %v2778 = vpop.f32.mrf.mxu0
    %v2779 = vadd.f32 %v2559, %v2778
    %2780 = vmatmul.f32.gmra.mxu0 %v2264
    %v2781 = vpop.f32.mrf.mxu0
    %v2782 = vadd.f32 %v2562, %v2781
    %2783 = vdwg.mxu0
    %2784 = vmatpush.msra.mxu0 %v2297
    %2785 = vmatpush.msra.mxu0 %v2295
    %2786 = vmatpush.msra.mxu0 %v2293
    %2787 = vmatpush.msra.mxu0 %v2291
    %2788 = vmatpush.msra.mxu0 %v2289
    %2789 = vmatpush.msra.mxu0 %v2287
    %2790 = vmatpush.msra.mxu0 %v2285
    %2791 = vmatpush.msra.mxu0 %v2283
    %2792 = vmatpush.msra.mxu0 %v2281
    %2793 = vmatpush.msra.mxu0 %v2279
    %2794 = vmatpush.msra.mxu0 %v2277
    %2795 = vmatpush.msra.mxu0 %v2275
    %2796 = vmatpush.msra.mxu0 %v2273
    %2797 = vmatpush.msra.mxu0 %v2271
    %2798 = vmatpush.msra.mxu0 %v2269
    %2799 = vmatpush.msra.mxu0 %v2267
    %2800 = vmatmul.f32.gmra.mxu0 %v2234
    %v2801 = vpop.f32.mrf.mxu0
    %v2802 = vadd.f32 %v2582, %v2801
    %2803 = vmatmul.f32.gmra.mxu0 %v2235
    %v2804 = vpop.f32.mrf.mxu0
    %v2805 = vadd.f32 %v2585, %v2804
    %2806 = vmatmul.f32.gmra.mxu0 %v2236
    %v2807 = vpop.f32.mrf.mxu0
    %v2808 = vadd.f32 %v2588, %v2807
    %2809 = vmatmul.f32.gmra.mxu0 %v2237
    %v2810 = vpop.f32.mrf.mxu0
    %v2811 = vadd.f32 %v2591, %v2810
    %2812 = vmatmul.f32.gmra.mxu0 %v2238
    %v2813 = vpop.f32.mrf.mxu0
    %v2814 = vadd.f32 %v2594, %v2813
    %2815 = vmatmul.f32.gmra.mxu0 %v2239
    %v2816 = vpop.f32.mrf.mxu0
    %v2817 = vadd.f32 %v2597, %v2816
    %2818 = vmatmul.f32.gmra.mxu0 %v2240
    %v2819 = vpop.f32.mrf.mxu0
    %v2820 = vadd.f32 %v2600, %v2819
    %2821 = vmatmul.f32.gmra.mxu0 %v2241
    %v2822 = vpop.f32.mrf.mxu0
    %v2823 = vadd.f32 %v2603, %v2822
    %2824 = vmatmul.f32.gmra.mxu0 %v2242
    %v2825 = vpop.f32.mrf.mxu0
    %v2826 = vadd.f32 %v2606, %v2825
    %2827 = vmatmul.f32.gmra.mxu0 %v2243
    %v2828 = vpop.f32.mrf.mxu0
    %v2829 = vadd.f32 %v2609, %v2828
    %2830 = vmatmul.f32.gmra.mxu0 %v2244
    %v2831 = vpop.f32.mrf.mxu0
    %v2832 = vadd.f32 %v2612, %v2831
    %2833 = vmatmul.f32.gmra.mxu0 %v2245
    %v2834 = vpop.f32.mrf.mxu0
    %v2835 = vadd.f32 %v2615, %v2834
    %2836 = vmatmul.f32.gmra.mxu0 %v2246
    %v2837 = vpop.f32.mrf.mxu0
    %v2838 = vadd.f32 %v2618, %v2837
    %2839 = vmatmul.f32.gmra.mxu0 %v2247
    %v2840 = vpop.f32.mrf.mxu0
    %v2841 = vadd.f32 %v2621, %v2840
    %2842 = vmatmul.f32.gmra.mxu0 %v2248
    %v2843 = vpop.f32.mrf.mxu0
    %v2844 = vadd.f32 %v2624, %v2843
    %2845 = vmatmul.f32.gmra.mxu0 %v2249
    %v2846 = vpop.f32.mrf.mxu0
    %v2847 = vadd.f32 %v2627, %v2846
    %2848 = vmatmul.f32.gmra.mxu0 %v2250
    %v2849 = vpop.f32.mrf.mxu0
    %v2850 = vadd.f32 %v2630, %v2849
    %2851 = vmatmul.f32.gmra.mxu0 %v2251
    %v2852 = vpop.f32.mrf.mxu0
    %v2853 = vadd.f32 %v2633, %v2852
    %2854 = vmatmul.f32.gmra.mxu0 %v2252
    %v2855 = vpop.f32.mrf.mxu0
    %v2856 = vadd.f32 %v2636, %v2855
    %2857 = vmatmul.f32.gmra.mxu0 %v2253
    %v2858 = vpop.f32.mrf.mxu0
    %v2859 = vadd.f32 %v2639, %v2858
    %2860 = vmatmul.f32.gmra.mxu0 %v2254
    %v2861 = vpop.f32.mrf.mxu0
    %v2862 = vadd.f32 %v2642, %v2861
    %2863 = vmatmul.f32.gmra.mxu0 %v2255
    %v2864 = vpop.f32.mrf.mxu0
    %v2865 = vadd.f32 %v2645, %v2864
    %2866 = vmatmul.f32.gmra.mxu0 %v2256
    %v2867 = vpop.f32.mrf.mxu0
    %v2868 = vadd.f32 %v2648, %v2867
    %2869 = vmatmul.f32.gmra.mxu0 %v2257
    %v2870 = vpop.f32.mrf.mxu0
    %v2871 = vadd.f32 %v2651, %v2870
    %2872 = vmatmul.f32.gmra.mxu0 %v2258
    %v2873 = vpop.f32.mrf.mxu0
    %v2874 = vadd.f32 %v2654, %v2873
    %2875 = vmatmul.f32.gmra.mxu0 %v2259
    %v2876 = vpop.f32.mrf.mxu0
    %v2877 = vadd.f32 %v2657, %v2876
    %2878 = vmatmul.f32.gmra.mxu0 %v2260
    %v2879 = vpop.f32.mrf.mxu0
    %v2880 = vadd.f32 %v2660, %v2879
    %2881 = vmatmul.f32.gmra.mxu0 %v2261
    %v2882 = vpop.f32.mrf.mxu0
    %v2883 = vadd.f32 %v2663, %v2882
    %2884 = vmatmul.f32.gmra.mxu0 %v2262
    %v2885 = vpop.f32.mrf.mxu0
    %v2886 = vadd.f32 %v2666, %v2885
    %2887 = vmatmul.f32.gmra.mxu0 %v2263
    %v2888 = vpop.f32.mrf.mxu0
    %v2889 = vadd.f32 %v2669, %v2888
    %2890 = vmatmul.f32.gmra.mxu0 %v2264
    %v2891 = vpop.f32.mrf.mxu0
    %v2892 = vadd.f32 %v2672, %v2891
    %2893 = vdwg.mxu0
    %s2894 = scalar_lea.vmem [#allocation4], 512
    %v2895 = vld [vmem:[%s2894] sm:$0xff]
    %v2896 = vld [vmem:[%s2894 + $0x8] sm:$0xff]
    %v2897 = vld [vmem:[%s2894 + $0x10] sm:$0xff]
    %v2898 = vld [vmem:[%s2894 + $0x18] sm:$0xff]
    %v2899 = vld [vmem:[%s2894 + $0x20] sm:$0xff]
    %v2900 = vld [vmem:[%s2894 + $0x28] sm:$0xff]
    %v2901 = vld [vmem:[%s2894 + $0x30] sm:$0xff]
    %v2902 = vld [vmem:[%s2894 + $0x38] sm:$0xff]
    %v2903 = vld [vmem:[%s2894 + $0x40] sm:$0xff]
    %v2904 = vld [vmem:[%s2894 + $0x48] sm:$0xff]
    %v2905 = vld [vmem:[%s2894 + $0x50] sm:$0xff]
    %v2906 = vld [vmem:[%s2894 + $0x58] sm:$0xff]
    %v2907 = vld [vmem:[%s2894 + $0x60] sm:$0xff]
    %v2908 = vld [vmem:[%s2894 + $0x68] sm:$0xff]
    %v2909 = vld [vmem:[%s2894 + $0x70] sm:$0xff]
    %v2910 = vld [vmem:[%s2894 + $0x78] sm:$0xff]
    %v2911 = vld [vmem:[%s2894 + $0x80] sm:$0xff]
    %v2912 = vld [vmem:[%s2894 + $0x88] sm:$0xff]
    %v2913 = vld [vmem:[%s2894 + $0x90] sm:$0xff]
    %v2914 = vld [vmem:[%s2894 + $0x98] sm:$0xff]
    %v2915 = vld [vmem:[%s2894 + $0xa0] sm:$0xff]
    %v2916 = vld [vmem:[%s2894 + $0xa8] sm:$0xff]
    %v2917 = vld [vmem:[%s2894 + $0xb0] sm:$0xff]
    %v2918 = vld [vmem:[%s2894 + $0xb8] sm:$0xff]
    %v2919 = vld [vmem:[%s2894 + $0xc0] sm:$0xff]
    %v2920 = vld [vmem:[%s2894 + $0xc8] sm:$0xff]
    %v2921 = vld [vmem:[%s2894 + $0xd0] sm:$0xff]
    %v2922 = vld [vmem:[%s2894 + $0xd8] sm:$0xff]
    %v2923 = vld [vmem:[%s2894 + $0xe0] sm:$0xff]
    %v2924 = vld [vmem:[%s2894 + $0xe8] sm:$0xff]
    %v2925 = vld [vmem:[%s2894 + $0xf0] sm:$0xff]
    %v2926 = vld [vmem:[%s2894 + $0xf8] sm:$0xff]
    %v2927 = vrot.slane %v2234, 4
    %v2928 = vrot.slane %v2235, 4
    %v2929 = vsel %vm1621, %v2927, %v2928
    %v2930 = vrot.slane %v2236, 4
    %v2931 = vsel %vm1621, %v2928, %v2930
    %v2932 = vrot.slane %v2237, 4
    %v2933 = vsel %vm1621, %v2930, %v2932
    %v2934 = vrot.slane %v2238, 4
    %v2935 = vsel %vm1621, %v2932, %v2934
    %v2936 = vrot.slane %v2239, 4
    %v2937 = vsel %vm1621, %v2934, %v2936
    %v2938 = vrot.slane %v2240, 4
    %v2939 = vsel %vm1621, %v2936, %v2938
    %v2940 = vrot.slane %v2241, 4
    %v2941 = vsel %vm1621, %v2938, %v2940
    %v2942 = vrot.slane %v2242, 4
    %v2943 = vsel %vm1621, %v2940, %v2942
    %v2944 = vrot.slane %v2243, 4
    %v2945 = vsel %vm1621, %v2942, %v2944
    %v2946 = vrot.slane %v2244, 4
    %v2947 = vsel %vm1621, %v2944, %v2946
    %v2948 = vrot.slane %v2245, 4
    %v2949 = vsel %vm1621, %v2946, %v2948
    %v2950 = vrot.slane %v2246, 4
    %v2951 = vsel %vm1621, %v2948, %v2950
    %v2952 = vrot.slane %v2247, 4
    %v2953 = vsel %vm1621, %v2950, %v2952
    %v2954 = vrot.slane %v2248, 4
    %v2955 = vsel %vm1621, %v2952, %v2954
    %v2956 = vrot.slane %v2249, 4
    %v2957 = vsel %vm1621, %v2954, %v2956
    %v2958 = vrot.slane %v2250, 4
    %v2959 = vsel %vm1621, %v2956, %v2958
    %v2960 = vrot.slane %v2251, 4
    %v2961 = vsel %vm1621, %v2958, %v2960
    %v2962 = vrot.slane %v2252, 4
    %v2963 = vsel %vm1621, %v2960, %v2962
    %v2964 = vrot.slane %v2253, 4
    %v2965 = vsel %vm1621, %v2962, %v2964
    %v2966 = vrot.slane %v2254, 4
    %v2967 = vsel %vm1621, %v2964, %v2966
    %v2968 = vrot.slane %v2255, 4
    %v2969 = vsel %vm1621, %v2966, %v2968
    %v2970 = vrot.slane %v2256, 4
    %v2971 = vsel %vm1621, %v2968, %v2970
    %v2972 = vrot.slane %v2257, 4
    %v2973 = vsel %vm1621, %v2970, %v2972
    %v2974 = vrot.slane %v2258, 4
    %v2975 = vsel %vm1621, %v2972, %v2974
    %v2976 = vrot.slane %v2259, 4
    %v2977 = vsel %vm1621, %v2974, %v2976
    %v2978 = vrot.slane %v2260, 4
    %v2979 = vsel %vm1621, %v2976, %v2978
    %v2980 = vrot.slane %v2261, 4
    %v2981 = vsel %vm1621, %v2978, %v2980
    %v2982 = vrot.slane %v2262, 4
    %v2983 = vsel %vm1621, %v2980, %v2982
    %v2984 = vrot.slane %v2263, 4
    %v2985 = vsel %vm1621, %v2982, %v2984
    %v2986 = vrot.slane %v2264, 4
    %v2987 = vsel %vm1621, %v2984, %v2986
    %3019 = vmatpush.msra.mxu0 %v2925
    %3020 = vmatpush.msra.mxu0 %v2923
    %3021 = vmatpush.msra.mxu0 %v2921
    %3022 = vmatpush.msra.mxu0 %v2919
    %3023 = vmatpush.msra.mxu0 %v2917
    %3024 = vmatpush.msra.mxu0 %v2915
    %3025 = vmatpush.msra.mxu0 %v2913
    %3026 = vmatpush.msra.mxu0 %v2911
    %3027 = vmatpush.msra.mxu0 %v2909
    %3028 = vmatpush.msra.mxu0 %v2907
    %3029 = vmatpush.msra.mxu0 %v2905
    %3030 = vmatpush.msra.mxu0 %v2903
    %3031 = vmatpush.msra.mxu0 %v2901
    %3032 = vmatpush.msra.mxu0 %v2899
    %3033 = vmatpush.msra.mxu0 %v2897
    %3034 = vmatpush.msra.mxu0 %v2895
    %3035 = vmatmul.f32.gmra.mxu0 %v2929
    %v3036 = vpop.f32.mrf.mxu0
    %v3037 = vadd.f32 0.0, %v3036
    %3038 = vmatmul.f32.gmra.mxu0 %v2931
    %v3039 = vpop.f32.mrf.mxu0
    %v3040 = vadd.f32 0.0, %v3039
    %3041 = vmatmul.f32.gmra.mxu0 %v2933
    %v3042 = vpop.f32.mrf.mxu0
    %v3043 = vadd.f32 0.0, %v3042
    %3044 = vmatmul.f32.gmra.mxu0 %v2935
    %v3045 = vpop.f32.mrf.mxu0
    %v3046 = vadd.f32 0.0, %v3045
    %3047 = vmatmul.f32.gmra.mxu0 %v2937
    %v3048 = vpop.f32.mrf.mxu0
    %v3049 = vadd.f32 0.0, %v3048
    %3050 = vmatmul.f32.gmra.mxu0 %v2939
    %v3051 = vpop.f32.mrf.mxu0
    %v3052 = vadd.f32 0.0, %v3051
    %3053 = vmatmul.f32.gmra.mxu0 %v2941
    %v3054 = vpop.f32.mrf.mxu0
    %v3055 = vadd.f32 0.0, %v3054
    %3056 = vmatmul.f32.gmra.mxu0 %v2943
    %v3057 = vpop.f32.mrf.mxu0
    %v3058 = vadd.f32 0.0, %v3057
    %3059 = vmatmul.f32.gmra.mxu0 %v2945
    %v3060 = vpop.f32.mrf.mxu0
    %v3061 = vadd.f32 0.0, %v3060
    %3062 = vmatmul.f32.gmra.mxu0 %v2947
    %v3063 = vpop.f32.mrf.mxu0
    %v3064 = vadd.f32 0.0, %v3063
    %3065 = vmatmul.f32.gmra.mxu0 %v2949
    %v3066 = vpop.f32.mrf.mxu0
    %v3067 = vadd.f32 0.0, %v3066
    %3068 = vmatmul.f32.gmra.mxu0 %v2951
    %v3069 = vpop.f32.mrf.mxu0
    %v3070 = vadd.f32 0.0, %v3069
    %3071 = vmatmul.f32.gmra.mxu0 %v2953
    %v3072 = vpop.f32.mrf.mxu0
    %v3073 = vadd.f32 0.0, %v3072
    %3074 = vmatmul.f32.gmra.mxu0 %v2955
    %v3075 = vpop.f32.mrf.mxu0
    %v3076 = vadd.f32 0.0, %v3075
    %3077 = vmatmul.f32.gmra.mxu0 %v2957
    %v3078 = vpop.f32.mrf.mxu0
    %v3079 = vadd.f32 0.0, %v3078
    %3080 = vmatmul.f32.gmra.mxu0 %v2959
    %v3081 = vpop.f32.mrf.mxu0
    %v3082 = vadd.f32 0.0, %v3081
    %3083 = vmatmul.f32.gmra.mxu0 %v2961
    %v3084 = vpop.f32.mrf.mxu0
    %v3085 = vadd.f32 0.0, %v3084
    %3086 = vmatmul.f32.gmra.mxu0 %v2963
    %v3087 = vpop.f32.mrf.mxu0
    %v3088 = vadd.f32 0.0, %v3087
    %3089 = vmatmul.f32.gmra.mxu0 %v2965
    %v3090 = vpop.f32.mrf.mxu0
    %v3091 = vadd.f32 0.0, %v3090
    %3092 = vmatmul.f32.gmra.mxu0 %v2967
    %v3093 = vpop.f32.mrf.mxu0
    %v3094 = vadd.f32 0.0, %v3093
    %3095 = vmatmul.f32.gmra.mxu0 %v2969
    %v3096 = vpop.f32.mrf.mxu0
    %v3097 = vadd.f32 0.0, %v3096
    %3098 = vmatmul.f32.gmra.mxu0 %v2971
    %v3099 = vpop.f32.mrf.mxu0
    %v3100 = vadd.f32 0.0, %v3099
    %3101 = vmatmul.f32.gmra.mxu0 %v2973
    %v3102 = vpop.f32.mrf.mxu0
    %v3103 = vadd.f32 0.0, %v3102
    %3104 = vmatmul.f32.gmra.mxu0 %v2975
    %v3105 = vpop.f32.mrf.mxu0
    %v3106 = vadd.f32 0.0, %v3105
    %3107 = vmatmul.f32.gmra.mxu0 %v2977
    %v3108 = vpop.f32.mrf.mxu0
    %v3109 = vadd.f32 0.0, %v3108
    %3110 = vmatmul.f32.gmra.mxu0 %v2979
    %v3111 = vpop.f32.mrf.mxu0
    %v3112 = vadd.f32 0.0, %v3111
    %3113 = vmatmul.f32.gmra.mxu0 %v2981
    %v3114 = vpop.f32.mrf.mxu0
    %v3115 = vadd.f32 0.0, %v3114
    %3116 = vmatmul.f32.gmra.mxu0 %v2983
    %v3117 = vpop.f32.mrf.mxu0
    %v3118 = vadd.f32 0.0, %v3117
    %3119 = vmatmul.f32.gmra.mxu0 %v2985
    %v3120 = vpop.f32.mrf.mxu0
    %v3121 = vadd.f32 0.0, %v3120
    %3122 = vmatmul.f32.gmra.mxu0 %v2987
    %v3123 = vpop.f32.mrf.mxu0
    %v3124 = vadd.f32 0.0, %v3123
    %3125 = vmatmul.f32.gmra.mxu0 %v2986
    %v3126 = vpop.f32.mrf.mxu0
    %v3127 = vadd.f32 0.0, %v3126
    %3128 = vdwg.mxu0
    %3129 = vmatpush.msra.mxu0 %v2926
    %3130 = vmatpush.msra.mxu0 %v2924
    %3131 = vmatpush.msra.mxu0 %v2922
    %3132 = vmatpush.msra.mxu0 %v2920
    %3133 = vmatpush.msra.mxu0 %v2918
    %3134 = vmatpush.msra.mxu0 %v2916
    %3135 = vmatpush.msra.mxu0 %v2914
    %3136 = vmatpush.msra.mxu0 %v2912
    %3137 = vmatpush.msra.mxu0 %v2910
    %3138 = vmatpush.msra.mxu0 %v2908
    %3139 = vmatpush.msra.mxu0 %v2906
    %3140 = vmatpush.msra.mxu0 %v2904
    %3141 = vmatpush.msra.mxu0 %v2902
    %3142 = vmatpush.msra.mxu0 %v2900
    %3143 = vmatpush.msra.mxu0 %v2898
    %3144 = vmatpush.msra.mxu0 %v2896
    %3145 = vmatmul.f32.gmra.mxu0 %v2929
    %v3146 = vpop.f32.mrf.mxu0
    %v3147 = vadd.f32 0.0, %v3146
    %3148 = vmatmul.f32.gmra.mxu0 %v2931
    %v3149 = vpop.f32.mrf.mxu0
    %v3150 = vadd.f32 0.0, %v3149
    %3151 = vmatmul.f32.gmra.mxu0 %v2933
    %v3152 = vpop.f32.mrf.mxu0
    %v3153 = vadd.f32 0.0, %v3152
    %3154 = vmatmul.f32.gmra.mxu0 %v2935
    %v3155 = vpop.f32.mrf.mxu0
    %v3156 = vadd.f32 0.0, %v3155
    %3157 = vmatmul.f32.gmra.mxu0 %v2937
    %v3158 = vpop.f32.mrf.mxu0
    %v3159 = vadd.f32 0.0, %v3158
    %3160 = vmatmul.f32.gmra.mxu0 %v2939
    %v3161 = vpop.f32.mrf.mxu0
    %v3162 = vadd.f32 0.0, %v3161
    %3163 = vmatmul.f32.gmra.mxu0 %v2941
    %v3164 = vpop.f32.mrf.mxu0
    %v3165 = vadd.f32 0.0, %v3164
    %3166 = vmatmul.f32.gmra.mxu0 %v2943
    %v3167 = vpop.f32.mrf.mxu0
    %v3168 = vadd.f32 0.0, %v3167
    %3169 = vmatmul.f32.gmra.mxu0 %v2945
    %v3170 = vpop.f32.mrf.mxu0
    %v3171 = vadd.f32 0.0, %v3170
    %3172 = vmatmul.f32.gmra.mxu0 %v2947
    %v3173 = vpop.f32.mrf.mxu0
    %v3174 = vadd.f32 0.0, %v3173
    %3175 = vmatmul.f32.gmra.mxu0 %v2949
    %v3176 = vpop.f32.mrf.mxu0
    %v3177 = vadd.f32 0.0, %v3176
    %3178 = vmatmul.f32.gmra.mxu0 %v2951
    %v3179 = vpop.f32.mrf.mxu0
    %v3180 = vadd.f32 0.0, %v3179
    %3181 = vmatmul.f32.gmra.mxu0 %v2953
    %v3182 = vpop.f32.mrf.mxu0
    %v3183 = vadd.f32 0.0, %v3182
    %3184 = vmatmul.f32.gmra.mxu0 %v2955
    %v3185 = vpop.f32.mrf.mxu0
    %v3186 = vadd.f32 0.0, %v3185
    %3187 = vmatmul.f32.gmra.mxu0 %v2957
    %v3188 = vpop.f32.mrf.mxu0
    %v3189 = vadd.f32 0.0, %v3188
    %3190 = vmatmul.f32.gmra.mxu0 %v2959
    %v3191 = vpop.f32.mrf.mxu0
    %v3192 = vadd.f32 0.0, %v3191
    %3193 = vmatmul.f32.gmra.mxu0 %v2961
    %v3194 = vpop.f32.mrf.mxu0
    %v3195 = vadd.f32 0.0, %v3194
    %3196 = vmatmul.f32.gmra.mxu0 %v2963
    %v3197 = vpop.f32.mrf.mxu0
    %v3198 = vadd.f32 0.0, %v3197
    %3199 = vmatmul.f32.gmra.mxu0 %v2965
    %v3200 = vpop.f32.mrf.mxu0
    %v3201 = vadd.f32 0.0, %v3200
    %3202 = vmatmul.f32.gmra.mxu0 %v2967
    %v3203 = vpop.f32.mrf.mxu0
    %v3204 = vadd.f32 0.0, %v3203
    %3205 = vmatmul.f32.gmra.mxu0 %v2969
    %v3206 = vpop.f32.mrf.mxu0
    %v3207 = vadd.f32 0.0, %v3206
    %3208 = vmatmul.f32.gmra.mxu0 %v2971
    %v3209 = vpop.f32.mrf.mxu0
    %v3210 = vadd.f32 0.0, %v3209
    %3211 = vmatmul.f32.gmra.mxu0 %v2973
    %v3212 = vpop.f32.mrf.mxu0
    %v3213 = vadd.f32 0.0, %v3212
    %3214 = vmatmul.f32.gmra.mxu0 %v2975
    %v3215 = vpop.f32.mrf.mxu0
    %v3216 = vadd.f32 0.0, %v3215
    %3217 = vmatmul.f32.gmra.mxu0 %v2977
    %v3218 = vpop.f32.mrf.mxu0
    %v3219 = vadd.f32 0.0, %v3218
    %3220 = vmatmul.f32.gmra.mxu0 %v2979
    %v3221 = vpop.f32.mrf.mxu0
    %v3222 = vadd.f32 0.0, %v3221
    %3223 = vmatmul.f32.gmra.mxu0 %v2981
    %v3224 = vpop.f32.mrf.mxu0
    %v3225 = vadd.f32 0.0, %v3224
    %3226 = vmatmul.f32.gmra.mxu0 %v2983
    %v3227 = vpop.f32.mrf.mxu0
    %v3228 = vadd.f32 0.0, %v3227
    %3229 = vmatmul.f32.gmra.mxu0 %v2985
    %v3230 = vpop.f32.mrf.mxu0
    %v3231 = vadd.f32 0.0, %v3230
    %3232 = vmatmul.f32.gmra.mxu0 %v2987
    %v3233 = vpop.f32.mrf.mxu0
    %v3234 = vadd.f32 0.0, %v3233
    %3235 = vmatmul.f32.gmra.mxu0 %v2986
    %v3236 = vpop.f32.mrf.mxu0
    %v3237 = vadd.f32 0.0, %v3236
    %3238 = vdwg.mxu0
    %v3239 = vadd.f32 %v2692, %v3037
    %v3240 = vadd.f32 %v2802, %v3147
    %v3241 = vadd.f32 %v2695, %v3040
    %v3242 = vadd.f32 %v2805, %v3150
    %v3243 = vadd.f32 %v2698, %v3043
    %v3244 = vadd.f32 %v2808, %v3153
    %v3245 = vadd.f32 %v2701, %v3046
    %v3246 = vadd.f32 %v2811, %v3156
    %v3247 = vadd.f32 %v2704, %v3049
    %v3248 = vadd.f32 %v2814, %v3159
    %v3249 = vadd.f32 %v2707, %v3052
    %v3250 = vadd.f32 %v2817, %v3162
    %v3251 = vadd.f32 %v2710, %v3055
    %v3252 = vadd.f32 %v2820, %v3165
    %v3253 = vadd.f32 %v2713, %v3058
    %v3254 = vadd.f32 %v2823, %v3168
    %v3255 = vadd.f32 %v2716, %v3061
    %v3256 = vadd.f32 %v2826, %v3171
    %v3257 = vadd.f32 %v2719, %v3064
    %v3258 = vadd.f32 %v2829, %v3174
    %v3259 = vadd.f32 %v2722, %v3067
    %v3260 = vadd.f32 %v2832, %v3177
    %v3261 = vadd.f32 %v2725, %v3070
    %v3262 = vadd.f32 %v2835, %v3180
    %v3263 = vadd.f32 %v2728, %v3073
    %v3264 = vadd.f32 %v2838, %v3183
    %v3265 = vadd.f32 %v2731, %v3076
    %v3266 = vadd.f32 %v2841, %v3186
    %v3267 = vadd.f32 %v2734, %v3079
    %v3268 = vadd.f32 %v2844, %v3189
    %v3269 = vadd.f32 %v2737, %v3082
    %v3270 = vadd.f32 %v2847, %v3192
    %v3271 = vadd.f32 %v2740, %v3085
    %v3272 = vadd.f32 %v2850, %v3195
    %v3273 = vadd.f32 %v2743, %v3088
    %v3274 = vadd.f32 %v2853, %v3198
    %v3275 = vadd.f32 %v2746, %v3091
    %v3276 = vadd.f32 %v2856, %v3201
    %v3277 = vadd.f32 %v2749, %v3094
    %v3278 = vadd.f32 %v2859, %v3204
    %v3279 = vadd.f32 %v2752, %v3097
    %v3280 = vadd.f32 %v2862, %v3207
    %v3281 = vadd.f32 %v2755, %v3100
    %v3282 = vadd.f32 %v2865, %v3210
    %v3283 = vadd.f32 %v2758, %v3103
    %v3284 = vadd.f32 %v2868, %v3213
    %v3285 = vadd.f32 %v2761, %v3106
    %v3286 = vadd.f32 %v2871, %v3216
    %v3287 = vadd.f32 %v2764, %v3109
    %v3288 = vadd.f32 %v2874, %v3219
    %v3289 = vadd.f32 %v2767, %v3112
    %v3290 = vadd.f32 %v2877, %v3222
    %v3291 = vadd.f32 %v2770, %v3115
    %v3292 = vadd.f32 %v2880, %v3225
    %v3293 = vadd.f32 %v2773, %v3118
    %v3294 = vadd.f32 %v2883, %v3228
    %v3295 = vadd.f32 %v2776, %v3121
    %v3296 = vadd.f32 %v2886, %v3231
    %v3297 = vadd.f32 %v2779, %v3124
    %v3298 = vadd.f32 %v2889, %v3234
    %v3299 = vadd.f32 %v2782, %v3127
    %v3300 = vadd.f32 %v2892, %v3237
    %s3301 = scalar_lea.vmem [#allocation4], 768
    %v3302 = vld [vmem:[%s3301] sm:$0xff]
    %v3303 = vld [vmem:[%s3301 + $0x8] sm:$0xff]
    %v3304 = vld [vmem:[%s3301 + $0x10] sm:$0xff]
    %v3305 = vld [vmem:[%s3301 + $0x18] sm:$0xff]
    %v3306 = vld [vmem:[%s3301 + $0x20] sm:$0xff]
    %v3307 = vld [vmem:[%s3301 + $0x28] sm:$0xff]
    %v3308 = vld [vmem:[%s3301 + $0x30] sm:$0xff]
    %v3309 = vld [vmem:[%s3301 + $0x38] sm:$0xff]
    %v3310 = vld [vmem:[%s3301 + $0x40] sm:$0xff]
    %v3311 = vld [vmem:[%s3301 + $0x48] sm:$0xff]
    %v3312 = vld [vmem:[%s3301 + $0x50] sm:$0xff]
    %v3313 = vld [vmem:[%s3301 + $0x58] sm:$0xff]
    %v3314 = vld [vmem:[%s3301 + $0x60] sm:$0xff]
    %v3315 = vld [vmem:[%s3301 + $0x68] sm:$0xff]
    %v3316 = vld [vmem:[%s3301 + $0x70] sm:$0xff]
    %v3317 = vld [vmem:[%s3301 + $0x78] sm:$0xff]
    %v3318 = vld [vmem:[%s3301 + $0x80] sm:$0xff]
    %v3319 = vld [vmem:[%s3301 + $0x88] sm:$0xff]
    %v3320 = vld [vmem:[%s3301 + $0x90] sm:$0xff]
    %v3321 = vld [vmem:[%s3301 + $0x98] sm:$0xff]
    %v3322 = vld [vmem:[%s3301 + $0xa0] sm:$0xff]
    %v3323 = vld [vmem:[%s3301 + $0xa8] sm:$0xff]
    %v3324 = vld [vmem:[%s3301 + $0xb0] sm:$0xff]
    %v3325 = vld [vmem:[%s3301 + $0xb8] sm:$0xff]
    %v3326 = vld [vmem:[%s3301 + $0xc0] sm:$0xff]
    %v3327 = vld [vmem:[%s3301 + $0xc8] sm:$0xff]
    %v3328 = vld [vmem:[%s3301 + $0xd0] sm:$0xff]
    %v3329 = vld [vmem:[%s3301 + $0xd8] sm:$0xff]
    %v3330 = vld [vmem:[%s3301 + $0xe0] sm:$0xff]
    %v3331 = vld [vmem:[%s3301 + $0xe8] sm:$0xff]
    %v3332 = vld [vmem:[%s3301 + $0xf0] sm:$0xff]
    %v3333 = vld [vmem:[%s3301 + $0xf8] sm:$0xff]
    %vm3335 = vcmask 1041408
    %v3336 = vrot.slane %v2234, 6
    %v3337 = vrot.slane %v2235, 6
    %v3338 = vsel %vm3335, %v3336, %v3337
    %v3339 = vrot.slane %v2236, 6
    %v3340 = vsel %vm3335, %v3337, %v3339
    %v3341 = vrot.slane %v2237, 6
    %v3342 = vsel %vm3335, %v3339, %v3341
    %v3343 = vrot.slane %v2238, 6
    %v3344 = vsel %vm3335, %v3341, %v3343
    %v3345 = vrot.slane %v2239, 6
    %v3346 = vsel %vm3335, %v3343, %v3345
    %v3347 = vrot.slane %v2240, 6
    %v3348 = vsel %vm3335, %v3345, %v3347
    %v3349 = vrot.slane %v2241, 6
    %v3350 = vsel %vm3335, %v3347, %v3349
    %v3351 = vrot.slane %v2242, 6
    %v3352 = vsel %vm3335, %v3349, %v3351
    %v3353 = vrot.slane %v2243, 6
    %v3354 = vsel %vm3335, %v3351, %v3353
    %v3355 = vrot.slane %v2244, 6
    %v3356 = vsel %vm3335, %v3353, %v3355
    %v3357 = vrot.slane %v2245, 6
    %v3358 = vsel %vm3335, %v3355, %v3357
    %v3359 = vrot.slane %v2246, 6
    %v3360 = vsel %vm3335, %v3357, %v3359
    %v3361 = vrot.slane %v2247, 6
    %v3362 = vsel %vm3335, %v3359, %v3361
    %v3363 = vrot.slane %v2248, 6
    %v3364 = vsel %vm3335, %v3361, %v3363
    %v3365 = vrot.slane %v2249, 6
    %v3366 = vsel %vm3335, %v3363, %v3365
    %v3367 = vrot.slane %v2250, 6
    %v3368 = vsel %vm3335, %v3365, %v3367
    %v3369 = vrot.slane %v2251, 6
    %v3370 = vsel %vm3335, %v3367, %v3369
    %v3371 = vrot.slane %v2252, 6
    %v3372 = vsel %vm3335, %v3369, %v3371
    %v3373 = vrot.slane %v2253, 6
    %v3374 = vsel %vm3335, %v3371, %v3373
    %v3375 = vrot.slane %v2254, 6
    %v3376 = vsel %vm3335, %v3373, %v3375
    %v3377 = vrot.slane %v2255, 6
    %v3378 = vsel %vm3335, %v3375, %v3377
    %v3379 = vrot.slane %v2256, 6
    %v3380 = vsel %vm3335, %v3377, %v3379
    %v3381 = vrot.slane %v2257, 6
    %v3382 = vsel %vm3335, %v3379, %v3381
    %v3383 = vrot.slane %v2258, 6
    %v3384 = vsel %vm3335, %v3381, %v3383
    %v3385 = vrot.slane %v2259, 6
    %v3386 = vsel %vm3335, %v3383, %v3385
    %v3387 = vrot.slane %v2260, 6
    %v3388 = vsel %vm3335, %v3385, %v3387
    %v3389 = vrot.slane %v2261, 6
    %v3390 = vsel %vm3335, %v3387, %v3389
    %v3391 = vrot.slane %v2262, 6
    %v3392 = vsel %vm3335, %v3389, %v3391
    %v3393 = vrot.slane %v2263, 6
    %v3394 = vsel %vm3335, %v3391, %v3393
    %v3395 = vrot.slane %v2264, 6
    %v3396 = vsel %vm3335, %v3393, %v3395
    %v3397 = vrot.slane %v2265, 6
    %v3398 = vsel %vm3335, %v3395, %v3397
    %3430 = vmatpush.msra.mxu0 %v3332
    %3431 = vmatpush.msra.mxu0 %v3330
    %3432 = vmatpush.msra.mxu0 %v3328
    %3433 = vmatpush.msra.mxu0 %v3326
    %3434 = vmatpush.msra.mxu0 %v3324
    %3435 = vmatpush.msra.mxu0 %v3322
    %3436 = vmatpush.msra.mxu0 %v3320
    %3437 = vmatpush.msra.mxu0 %v3318
    %3438 = vmatpush.msra.mxu0 %v3316
    %3439 = vmatpush.msra.mxu0 %v3314
    %3440 = vmatpush.msra.mxu0 %v3312
    %3441 = vmatpush.msra.mxu0 %v3310
    %3442 = vmatpush.msra.mxu0 %v3308
    %3443 = vmatpush.msra.mxu0 %v3306
    %3444 = vmatpush.msra.mxu0 %v3304
    %3445 = vmatpush.msra.mxu0 %v3302
    %3446 = vmatmul.f32.gmra.mxu0 %v3338
    %v3447 = vpop.f32.mrf.mxu0
    %v3448 = vadd.f32 0.0, %v3447
    %3449 = vmatmul.f32.gmra.mxu0 %v3340
    %v3450 = vpop.f32.mrf.mxu0
    %v3451 = vadd.f32 0.0, %v3450
    %3452 = vmatmul.f32.gmra.mxu0 %v3342
    %v3453 = vpop.f32.mrf.mxu0
    %v3454 = vadd.f32 0.0, %v3453
    %3455 = vmatmul.f32.gmra.mxu0 %v3344
    %v3456 = vpop.f32.mrf.mxu0
    %v3457 = vadd.f32 0.0, %v3456
    %3458 = vmatmul.f32.gmra.mxu0 %v3346
    %v3459 = vpop.f32.mrf.mxu0
    %v3460 = vadd.f32 0.0, %v3459
    %3461 = vmatmul.f32.gmra.mxu0 %v3348
    %v3462 = vpop.f32.mrf.mxu0
    %v3463 = vadd.f32 0.0, %v3462
    %3464 = vmatmul.f32.gmra.mxu0 %v3350
    %v3465 = vpop.f32.mrf.mxu0
    %v3466 = vadd.f32 0.0, %v3465
    %3467 = vmatmul.f32.gmra.mxu0 %v3352
    %v3468 = vpop.f32.mrf.mxu0
    %v3469 = vadd.f32 0.0, %v3468
    %3470 = vmatmul.f32.gmra.mxu0 %v3354
    %v3471 = vpop.f32.mrf.mxu0
    %v3472 = vadd.f32 0.0, %v3471
    %3473 = vmatmul.f32.gmra.mxu0 %v3356
    %v3474 = vpop.f32.mrf.mxu0
    %v3475 = vadd.f32 0.0, %v3474
    %3476 = vmatmul.f32.gmra.mxu0 %v3358
    %v3477 = vpop.f32.mrf.mxu0
    %v3478 = vadd.f32 0.0, %v3477
    %3479 = vmatmul.f32.gmra.mxu0 %v3360
    %v3480 = vpop.f32.mrf.mxu0
    %v3481 = vadd.f32 0.0, %v3480
    %3482 = vmatmul.f32.gmra.mxu0 %v3362
    %v3483 = vpop.f32.mrf.mxu0
    %v3484 = vadd.f32 0.0, %v3483
    %3485 = vmatmul.f32.gmra.mxu0 %v3364
    %v3486 = vpop.f32.mrf.mxu0
    %v3487 = vadd.f32 0.0, %v3486
    %3488 = vmatmul.f32.gmra.mxu0 %v3366
    %v3489 = vpop.f32.mrf.mxu0
    %v3490 = vadd.f32 0.0, %v3489
    %3491 = vmatmul.f32.gmra.mxu0 %v3368
    %v3492 = vpop.f32.mrf.mxu0
    %v3493 = vadd.f32 0.0, %v3492
    %3494 = vmatmul.f32.gmra.mxu0 %v3370
    %v3495 = vpop.f32.mrf.mxu0
    %v3496 = vadd.f32 0.0, %v3495
    %3497 = vmatmul.f32.gmra.mxu0 %v3372
    %v3498 = vpop.f32.mrf.mxu0
    %v3499 = vadd.f32 0.0, %v3498
    %3500 = vmatmul.f32.gmra.mxu0 %v3374
    %v3501 = vpop.f32.mrf.mxu0
    %v3502 = vadd.f32 0.0, %v3501
    %3503 = vmatmul.f32.gmra.mxu0 %v3376
    %v3504 = vpop.f32.mrf.mxu0
    %v3505 = vadd.f32 0.0, %v3504
    %3506 = vmatmul.f32.gmra.mxu0 %v3378
    %v3507 = vpop.f32.mrf.mxu0
    %v3508 = vadd.f32 0.0, %v3507
    %3509 = vmatmul.f32.gmra.mxu0 %v3380
    %v3510 = vpop.f32.mrf.mxu0
    %v3511 = vadd.f32 0.0, %v3510
    %3512 = vmatmul.f32.gmra.mxu0 %v3382
    %v3513 = vpop.f32.mrf.mxu0
    %v3514 = vadd.f32 0.0, %v3513
    %3515 = vmatmul.f32.gmra.mxu0 %v3384
    %v3516 = vpop.f32.mrf.mxu0
    %v3517 = vadd.f32 0.0, %v3516
    %3518 = vmatmul.f32.gmra.mxu0 %v3386
    %v3519 = vpop.f32.mrf.mxu0
    %v3520 = vadd.f32 0.0, %v3519
    %3521 = vmatmul.f32.gmra.mxu0 %v3388
    %v3522 = vpop.f32.mrf.mxu0
    %v3523 = vadd.f32 0.0, %v3522
    %3524 = vmatmul.f32.gmra.mxu0 %v3390
    %v3525 = vpop.f32.mrf.mxu0
    %v3526 = vadd.f32 0.0, %v3525
    %3527 = vmatmul.f32.gmra.mxu0 %v3392
    %v3528 = vpop.f32.mrf.mxu0
    %v3529 = vadd.f32 0.0, %v3528
    %3530 = vmatmul.f32.gmra.mxu0 %v3394
    %v3531 = vpop.f32.mrf.mxu0
    %v3532 = vadd.f32 0.0, %v3531
    %3533 = vmatmul.f32.gmra.mxu0 %v3396
    %v3534 = vpop.f32.mrf.mxu0
    %v3535 = vadd.f32 0.0, %v3534
    %3536 = vmatmul.f32.gmra.mxu0 %v3398
    %v3537 = vpop.f32.mrf.mxu0
    %v3538 = vadd.f32 0.0, %v3537
    %3539 = vdwg.mxu0
    %3540 = vmatpush.msra.mxu0 %v3333
    %3541 = vmatpush.msra.mxu0 %v3331
    %3542 = vmatpush.msra.mxu0 %v3329
    %3543 = vmatpush.msra.mxu0 %v3327
    %3544 = vmatpush.msra.mxu0 %v3325
    %3545 = vmatpush.msra.mxu0 %v3323
    %3546 = vmatpush.msra.mxu0 %v3321
    %3547 = vmatpush.msra.mxu0 %v3319
    %3548 = vmatpush.msra.mxu0 %v3317
    %3549 = vmatpush.msra.mxu0 %v3315
    %3550 = vmatpush.msra.mxu0 %v3313
    %3551 = vmatpush.msra.mxu0 %v3311
    %3552 = vmatpush.msra.mxu0 %v3309
    %3553 = vmatpush.msra.mxu0 %v3307
    %3554 = vmatpush.msra.mxu0 %v3305
    %3555 = vmatpush.msra.mxu0 %v3303
    %3556 = vmatmul.f32.gmra.mxu0 %v3338
    %v3557 = vpop.f32.mrf.mxu0
    %v3558 = vadd.f32 0.0, %v3557
    %3559 = vmatmul.f32.gmra.mxu0 %v3340
    %v3560 = vpop.f32.mrf.mxu0
    %v3561 = vadd.f32 0.0, %v3560
    %3562 = vmatmul.f32.gmra.mxu0 %v3342
    %v3563 = vpop.f32.mrf.mxu0
    %v3564 = vadd.f32 0.0, %v3563
    %3565 = vmatmul.f32.gmra.mxu0 %v3344
    %v3566 = vpop.f32.mrf.mxu0
    %v3567 = vadd.f32 0.0, %v3566
    %3568 = vmatmul.f32.gmra.mxu0 %v3346
    %v3569 = vpop.f32.mrf.mxu0
    %v3570 = vadd.f32 0.0, %v3569
    %3571 = vmatmul.f32.gmra.mxu0 %v3348
    %v3572 = vpop.f32.mrf.mxu0
    %v3573 = vadd.f32 0.0, %v3572
    %3574 = vmatmul.f32.gmra.mxu0 %v3350
    %v3575 = vpop.f32.mrf.mxu0
    %v3576 = vadd.f32 0.0, %v3575
    %3577 = vmatmul.f32.gmra.mxu0 %v3352
    %v3578 = vpop.f32.mrf.mxu0
    %v3579 = vadd.f32 0.0, %v3578
    %3580 = vmatmul.f32.gmra.mxu0 %v3354
    %v3581 = vpop.f32.mrf.mxu0
    %v3582 = vadd.f32 0.0, %v3581
    %3583 = vmatmul.f32.gmra.mxu0 %v3356
    %v3584 = vpop.f32.mrf.mxu0
    %v3585 = vadd.f32 0.0, %v3584
    %3586 = vmatmul.f32.gmra.mxu0 %v3358
    %v3587 = vpop.f32.mrf.mxu0
    %v3588 = vadd.f32 0.0, %v3587
    %3589 = vmatmul.f32.gmra.mxu0 %v3360
    %v3590 = vpop.f32.mrf.mxu0
    %v3591 = vadd.f32 0.0, %v3590
    %3592 = vmatmul.f32.gmra.mxu0 %v3362
    %v3593 = vpop.f32.mrf.mxu0
    %v3594 = vadd.f32 0.0, %v3593
    %3595 = vmatmul.f32.gmra.mxu0 %v3364
    %v3596 = vpop.f32.mrf.mxu0
    %v3597 = vadd.f32 0.0, %v3596
    %3598 = vmatmul.f32.gmra.mxu0 %v3366
    %v3599 = vpop.f32.mrf.mxu0
    %v3600 = vadd.f32 0.0, %v3599
    %3601 = vmatmul.f32.gmra.mxu0 %v3368
    %v3602 = vpop.f32.mrf.mxu0
    %v3603 = vadd.f32 0.0, %v3602
    %3604 = vmatmul.f32.gmra.mxu0 %v3370
    %v3605 = vpop.f32.mrf.mxu0
    %v3606 = vadd.f32 0.0, %v3605
    %3607 = vmatmul.f32.gmra.mxu0 %v3372
    %v3608 = vpop.f32.mrf.mxu0
    %v3609 = vadd.f32 0.0, %v3608
    %3610 = vmatmul.f32.gmra.mxu0 %v3374
    %v3611 = vpop.f32.mrf.mxu0
    %v3612 = vadd.f32 0.0, %v3611
    %3613 = vmatmul.f32.gmra.mxu0 %v3376
    %v3614 = vpop.f32.mrf.mxu0
    %v3615 = vadd.f32 0.0, %v3614
    %3616 = vmatmul.f32.gmra.mxu0 %v3378
    %v3617 = vpop.f32.mrf.mxu0
    %v3618 = vadd.f32 0.0, %v3617
    %3619 = vmatmul.f32.gmra.mxu0 %v3380
    %v3620 = vpop.f32.mrf.mxu0
    %v3621 = vadd.f32 0.0, %v3620
    %3622 = vmatmul.f32.gmra.mxu0 %v3382
    %v3623 = vpop.f32.mrf.mxu0
    %v3624 = vadd.f32 0.0, %v3623
    %3625 = vmatmul.f32.gmra.mxu0 %v3384
    %v3626 = vpop.f32.mrf.mxu0
    %v3627 = vadd.f32 0.0, %v3626
    %3628 = vmatmul.f32.gmra.mxu0 %v3386
    %v3629 = vpop.f32.mrf.mxu0
    %v3630 = vadd.f32 0.0, %v3629
    %3631 = vmatmul.f32.gmra.mxu0 %v3388
    %v3632 = vpop.f32.mrf.mxu0
    %v3633 = vadd.f32 0.0, %v3632
    %3634 = vmatmul.f32.gmra.mxu0 %v3390
    %v3635 = vpop.f32.mrf.mxu0
    %v3636 = vadd.f32 0.0, %v3635
    %3637 = vmatmul.f32.gmra.mxu0 %v3392
    %v3638 = vpop.f32.mrf.mxu0
    %v3639 = vadd.f32 0.0, %v3638
    %3640 = vmatmul.f32.gmra.mxu0 %v3394
    %v3641 = vpop.f32.mrf.mxu0
    %v3642 = vadd.f32 0.0, %v3641
    %3643 = vmatmul.f32.gmra.mxu0 %v3396
    %v3644 = vpop.f32.mrf.mxu0
    %v3645 = vadd.f32 0.0, %v3644
    %3646 = vmatmul.f32.gmra.mxu0 %v3398
    %v3647 = vpop.f32.mrf.mxu0
    %v3648 = vadd.f32 0.0, %v3647
    %3649 = vdwg.mxu0
    %v3650 = vadd.f32 %v3239, %v3448
    %v3651 = vadd.f32 %v3240, %v3558
    %v3652 = vadd.f32 %v3241, %v3451
    %v3653 = vadd.f32 %v3242, %v3561
    %v3654 = vadd.f32 %v3243, %v3454
    %v3655 = vadd.f32 %v3244, %v3564
    %v3656 = vadd.f32 %v3245, %v3457
    %v3657 = vadd.f32 %v3246, %v3567
    %v3658 = vadd.f32 %v3247, %v3460
    %v3659 = vadd.f32 %v3248, %v3570
    %v3660 = vadd.f32 %v3249, %v3463
    %v3661 = vadd.f32 %v3250, %v3573
    %v3662 = vadd.f32 %v3251, %v3466
    %v3663 = vadd.f32 %v3252, %v3576
    %v3664 = vadd.f32 %v3253, %v3469
    %v3665 = vadd.f32 %v3254, %v3579
    %v3666 = vadd.f32 %v3255, %v3472
    %v3667 = vadd.f32 %v3256, %v3582
    %v3668 = vadd.f32 %v3257, %v3475
    %v3669 = vadd.f32 %v3258, %v3585
    %v3670 = vadd.f32 %v3259, %v3478
    %v3671 = vadd.f32 %v3260, %v3588
    %v3672 = vadd.f32 %v3261, %v3481
    %v3673 = vadd.f32 %v3262, %v3591
    %v3674 = vadd.f32 %v3263, %v3484
    %v3675 = vadd.f32 %v3264, %v3594
    %v3676 = vadd.f32 %v3265, %v3487
    %v3677 = vadd.f32 %v3266, %v3597
    %v3678 = vadd.f32 %v3267, %v3490
    %v3679 = vadd.f32 %v3268, %v3600
    %v3680 = vadd.f32 %v3269, %v3493
    %v3681 = vadd.f32 %v3270, %v3603
    %v3682 = vadd.f32 %v3271, %v3496
    %v3683 = vadd.f32 %v3272, %v3606
    %v3684 = vadd.f32 %v3273, %v3499
    %v3685 = vadd.f32 %v3274, %v3609
    %v3686 = vadd.f32 %v3275, %v3502
    %v3687 = vadd.f32 %v3276, %v3612
    %v3688 = vadd.f32 %v3277, %v3505
    %v3689 = vadd.f32 %v3278, %v3615
    %v3690 = vadd.f32 %v3279, %v3508
    %v3691 = vadd.f32 %v3280, %v3618
    %v3692 = vadd.f32 %v3281, %v3511
    %v3693 = vadd.f32 %v3282, %v3621
    %v3694 = vadd.f32 %v3283, %v3514
    %v3695 = vadd.f32 %v3284, %v3624
    %v3696 = vadd.f32 %v3285, %v3517
    %v3697 = vadd.f32 %v3286, %v3627
    %v3698 = vadd.f32 %v3287, %v3520
    %v3699 = vadd.f32 %v3288, %v3630
    %v3700 = vadd.f32 %v3289, %v3523
    %v3701 = vadd.f32 %v3290, %v3633
    %v3702 = vadd.f32 %v3291, %v3526
    %v3703 = vadd.f32 %v3292, %v3636
    %v3704 = vadd.f32 %v3293, %v3529
    %v3705 = vadd.f32 %v3294, %v3639
    %v3706 = vadd.f32 %v3295, %v3532
    %v3707 = vadd.f32 %v3296, %v3642
    %v3708 = vadd.f32 %v3297, %v3535
    %v3709 = vadd.f32 %v3298, %v3645
    %v3710 = vadd.f32 %v3299, %v3538
    %v3711 = vadd.f32 %v3300, %v3648
    %s3712 = scalar_lea.vmem [#allocation4], 1024
    %v3713 = vld [vmem:[%s3712] sm:$0xff]
    %v3714 = vld [vmem:[%s3712 + $0x8] sm:$0xff]
    %v3715 = vld [vmem:[%s3712 + $0x10] sm:$0xff]
    %v3716 = vld [vmem:[%s3712 + $0x18] sm:$0xff]
    %v3717 = vld [vmem:[%s3712 + $0x20] sm:$0xff]
    %v3718 = vld [vmem:[%s3712 + $0x28] sm:$0xff]
    %v3719 = vld [vmem:[%s3712 + $0x30] sm:$0xff]
    %v3720 = vld [vmem:[%s3712 + $0x38] sm:$0xff]
    %v3721 = vld [vmem:[%s3712 + $0x40] sm:$0xff]
    %v3722 = vld [vmem:[%s3712 + $0x48] sm:$0xff]
    %v3723 = vld [vmem:[%s3712 + $0x50] sm:$0xff]
    %v3724 = vld [vmem:[%s3712 + $0x58] sm:$0xff]
    %v3725 = vld [vmem:[%s3712 + $0x60] sm:$0xff]
    %v3726 = vld [vmem:[%s3712 + $0x68] sm:$0xff]
    %v3727 = vld [vmem:[%s3712 + $0x70] sm:$0xff]
    %v3728 = vld [vmem:[%s3712 + $0x78] sm:$0xff]
    %v3729 = vld [vmem:[%s3712 + $0x80] sm:$0xff]
    %v3730 = vld [vmem:[%s3712 + $0x88] sm:$0xff]
    %v3731 = vld [vmem:[%s3712 + $0x90] sm:$0xff]
    %v3732 = vld [vmem:[%s3712 + $0x98] sm:$0xff]
    %v3733 = vld [vmem:[%s3712 + $0xa0] sm:$0xff]
    %v3734 = vld [vmem:[%s3712 + $0xa8] sm:$0xff]
    %v3735 = vld [vmem:[%s3712 + $0xb0] sm:$0xff]
    %v3736 = vld [vmem:[%s3712 + $0xb8] sm:$0xff]
    %v3737 = vld [vmem:[%s3712 + $0xc0] sm:$0xff]
    %v3738 = vld [vmem:[%s3712 + $0xc8] sm:$0xff]
    %v3739 = vld [vmem:[%s3712 + $0xd0] sm:$0xff]
    %v3740 = vld [vmem:[%s3712 + $0xd8] sm:$0xff]
    %v3741 = vld [vmem:[%s3712 + $0xe0] sm:$0xff]
    %v3742 = vld [vmem:[%s3712 + $0xe8] sm:$0xff]
    %v3743 = vld [vmem:[%s3712 + $0xf0] sm:$0xff]
    %v3744 = vld [vmem:[%s3712 + $0xf8] sm:$0xff]
    %3745 = vmatpush.msra.mxu0 %v3743
    %3746 = vmatpush.msra.mxu0 %v3741
    %3747 = vmatpush.msra.mxu0 %v3739
    %3748 = vmatpush.msra.mxu0 %v3737
    %3749 = vmatpush.msra.mxu0 %v3735
    %3750 = vmatpush.msra.mxu0 %v3733
    %3751 = vmatpush.msra.mxu0 %v3731
    %3752 = vmatpush.msra.mxu0 %v3729
    %3753 = vmatpush.msra.mxu0 %v3727
    %3754 = vmatpush.msra.mxu0 %v3725
    %3755 = vmatpush.msra.mxu0 %v3723
    %3756 = vmatpush.msra.mxu0 %v3721
    %3757 = vmatpush.msra.mxu0 %v3719
    %3758 = vmatpush.msra.mxu0 %v3717
    %3759 = vmatpush.msra.mxu0 %v3715
    %3760 = vmatpush.msra.mxu0 %v3713
    %3761 = vmatmul.f32.gmra.mxu0 %v2235
    %v3762 = vpop.f32.mrf.mxu0
    %v3763 = vadd.f32 0.0, %v3762
    %3764 = vmatmul.f32.gmra.mxu0 %v2236
    %v3765 = vpop.f32.mrf.mxu0
    %v3766 = vadd.f32 0.0, %v3765
    %3767 = vmatmul.f32.gmra.mxu0 %v2237
    %v3768 = vpop.f32.mrf.mxu0
    %v3769 = vadd.f32 0.0, %v3768
    %3770 = vmatmul.f32.gmra.mxu0 %v2238
    %v3771 = vpop.f32.mrf.mxu0
    %v3772 = vadd.f32 0.0, %v3771
    %3773 = vmatmul.f32.gmra.mxu0 %v2239
    %v3774 = vpop.f32.mrf.mxu0
    %v3775 = vadd.f32 0.0, %v3774
    %3776 = vmatmul.f32.gmra.mxu0 %v2240
    %v3777 = vpop.f32.mrf.mxu0
    %v3778 = vadd.f32 0.0, %v3777
    %3779 = vmatmul.f32.gmra.mxu0 %v2241
    %v3780 = vpop.f32.mrf.mxu0
    %v3781 = vadd.f32 0.0, %v3780
    %3782 = vmatmul.f32.gmra.mxu0 %v2242
    %v3783 = vpop.f32.mrf.mxu0
    %v3784 = vadd.f32 0.0, %v3783
    %3785 = vmatmul.f32.gmra.mxu0 %v2243
    %v3786 = vpop.f32.mrf.mxu0
    %v3787 = vadd.f32 0.0, %v3786
    %3788 = vmatmul.f32.gmra.mxu0 %v2244
    %v3789 = vpop.f32.mrf.mxu0
    %v3790 = vadd.f32 0.0, %v3789
    %3791 = vmatmul.f32.gmra.mxu0 %v2245
    %v3792 = vpop.f32.mrf.mxu0
    %v3793 = vadd.f32 0.0, %v3792
    %3794 = vmatmul.f32.gmra.mxu0 %v2246
    %v3795 = vpop.f32.mrf.mxu0
    %v3796 = vadd.f32 0.0, %v3795
    %3797 = vmatmul.f32.gmra.mxu0 %v2247
    %v3798 = vpop.f32.mrf.mxu0
    %v3799 = vadd.f32 0.0, %v3798
    %3800 = vmatmul.f32.gmra.mxu0 %v2248
    %v3801 = vpop.f32.mrf.mxu0
    %v3802 = vadd.f32 0.0, %v3801
    %3803 = vmatmul.f32.gmra.mxu0 %v2249
    %v3804 = vpop.f32.mrf.mxu0
    %v3805 = vadd.f32 0.0, %v3804
    %3806 = vmatmul.f32.gmra.mxu0 %v2250
    %v3807 = vpop.f32.mrf.mxu0
    %v3808 = vadd.f32 0.0, %v3807
    %3809 = vmatmul.f32.gmra.mxu0 %v2251
    %v3810 = vpop.f32.mrf.mxu0
    %v3811 = vadd.f32 0.0, %v3810
    %3812 = vmatmul.f32.gmra.mxu0 %v2252
    %v3813 = vpop.f32.mrf.mxu0
    %v3814 = vadd.f32 0.0, %v3813
    %3815 = vmatmul.f32.gmra.mxu0 %v2253
    %v3816 = vpop.f32.mrf.mxu0
    %v3817 = vadd.f32 0.0, %v3816
    %3818 = vmatmul.f32.gmra.mxu0 %v2254
    %v3819 = vpop.f32.mrf.mxu0
    %v3820 = vadd.f32 0.0, %v3819
    %3821 = vmatmul.f32.gmra.mxu0 %v2255
    %v3822 = vpop.f32.mrf.mxu0
    %v3823 = vadd.f32 0.0, %v3822
    %3824 = vmatmul.f32.gmra.mxu0 %v2256
    %v3825 = vpop.f32.mrf.mxu0
    %v3826 = vadd.f32 0.0, %v3825
    %3827 = vmatmul.f32.gmra.mxu0 %v2257
    %v3828 = vpop.f32.mrf.mxu0
    %v3829 = vadd.f32 0.0, %v3828
    %3830 = vmatmul.f32.gmra.mxu0 %v2258
    %v3831 = vpop.f32.mrf.mxu0
    %v3832 = vadd.f32 0.0, %v3831
    %3833 = vmatmul.f32.gmra.mxu0 %v2259
    %v3834 = vpop.f32.mrf.mxu0
    %v3835 = vadd.f32 0.0, %v3834
    %3836 = vmatmul.f32.gmra.mxu0 %v2260
    %v3837 = vpop.f32.mrf.mxu0
    %v3838 = vadd.f32 0.0, %v3837
    %3839 = vmatmul.f32.gmra.mxu0 %v2261
    %v3840 = vpop.f32.mrf.mxu0
    %v3841 = vadd.f32 0.0, %v3840
    %3842 = vmatmul.f32.gmra.mxu0 %v2262
    %v3843 = vpop.f32.mrf.mxu0
    %v3844 = vadd.f32 0.0, %v3843
    %3845 = vmatmul.f32.gmra.mxu0 %v2263
    %v3846 = vpop.f32.mrf.mxu0
    %v3847 = vadd.f32 0.0, %v3846
    %3848 = vmatmul.f32.gmra.mxu0 %v2264
    %v3849 = vpop.f32.mrf.mxu0
    %v3850 = vadd.f32 0.0, %v3849
    %3851 = vmatmul.f32.gmra.mxu0 %v2265
    %v3852 = vpop.f32.mrf.mxu0
    %v3853 = vadd.f32 0.0, %v3852
    %3854 = vdwg.mxu0
    %3855 = vmatpush.msra.mxu0 %v3744
    %3856 = vmatpush.msra.mxu0 %v3742
    %3857 = vmatpush.msra.mxu0 %v3740
    %3858 = vmatpush.msra.mxu0 %v3738
    %3859 = vmatpush.msra.mxu0 %v3736
    %3860 = vmatpush.msra.mxu0 %v3734
    %3861 = vmatpush.msra.mxu0 %v3732
    %3862 = vmatpush.msra.mxu0 %v3730
    %3863 = vmatpush.msra.mxu0 %v3728
    %3864 = vmatpush.msra.mxu0 %v3726
    %3865 = vmatpush.msra.mxu0 %v3724
    %3866 = vmatpush.msra.mxu0 %v3722
    %3867 = vmatpush.msra.mxu0 %v3720
    %3868 = vmatpush.msra.mxu0 %v3718
    %3869 = vmatpush.msra.mxu0 %v3716
    %3870 = vmatpush.msra.mxu0 %v3714
    %3871 = vmatmul.f32.gmra.mxu0 %v2235
    %v3872 = vpop.f32.mrf.mxu0
    %v3873 = vadd.f32 0.0, %v3872
    %3874 = vmatmul.f32.gmra.mxu0 %v2236
    %v3875 = vpop.f32.mrf.mxu0
    %v3876 = vadd.f32 0.0, %v3875
    %3877 = vmatmul.f32.gmra.mxu0 %v2237
    %v3878 = vpop.f32.mrf.mxu0
    %v3879 = vadd.f32 0.0, %v3878
    %3880 = vmatmul.f32.gmra.mxu0 %v2238
    %v3881 = vpop.f32.mrf.mxu0
    %v3882 = vadd.f32 0.0, %v3881
    %3883 = vmatmul.f32.gmra.mxu0 %v2239
    %v3884 = vpop.f32.mrf.mxu0
    %v3885 = vadd.f32 0.0, %v3884
    %3886 = vmatmul.f32.gmra.mxu0 %v2240
    %v3887 = vpop.f32.mrf.mxu0
    %v3888 = vadd.f32 0.0, %v3887
    %3889 = vmatmul.f32.gmra.mxu0 %v2241
    %v3890 = vpop.f32.mrf.mxu0
    %v3891 = vadd.f32 0.0, %v3890
    %3892 = vmatmul.f32.gmra.mxu0 %v2242
    %v3893 = vpop.f32.mrf.mxu0
    %v3894 = vadd.f32 0.0, %v3893
    %3895 = vmatmul.f32.gmra.mxu0 %v2243
    %v3896 = vpop.f32.mrf.mxu0
    %v3897 = vadd.f32 0.0, %v3896
    %3898 = vmatmul.f32.gmra.mxu0 %v2244
    %v3899 = vpop.f32.mrf.mxu0
    %v3900 = vadd.f32 0.0, %v3899
    %3901 = vmatmul.f32.gmra.mxu0 %v2245
    %v3902 = vpop.f32.mrf.mxu0
    %v3903 = vadd.f32 0.0, %v3902
    %3904 = vmatmul.f32.gmra.mxu0 %v2246
    %v3905 = vpop.f32.mrf.mxu0
    %v3906 = vadd.f32 0.0, %v3905
    %3907 = vmatmul.f32.gmra.mxu0 %v2247
    %v3908 = vpop.f32.mrf.mxu0
    %v3909 = vadd.f32 0.0, %v3908
    %3910 = vmatmul.f32.gmra.mxu0 %v2248
    %v3911 = vpop.f32.mrf.mxu0
    %v3912 = vadd.f32 0.0, %v3911
    %3913 = vmatmul.f32.gmra.mxu0 %v2249
    %v3914 = vpop.f32.mrf.mxu0
    %v3915 = vadd.f32 0.0, %v3914
    %3916 = vmatmul.f32.gmra.mxu0 %v2250
    %v3917 = vpop.f32.mrf.mxu0
    %v3918 = vadd.f32 0.0, %v3917
    %3919 = vmatmul.f32.gmra.mxu0 %v2251
    %v3920 = vpop.f32.mrf.mxu0
    %v3921 = vadd.f32 0.0, %v3920
    %3922 = vmatmul.f32.gmra.mxu0 %v2252
    %v3923 = vpop.f32.mrf.mxu0
    %v3924 = vadd.f32 0.0, %v3923
    %3925 = vmatmul.f32.gmra.mxu0 %v2253
    %v3926 = vpop.f32.mrf.mxu0
    %v3927 = vadd.f32 0.0, %v3926
    %3928 = vmatmul.f32.gmra.mxu0 %v2254
    %v3929 = vpop.f32.mrf.mxu0
    %v3930 = vadd.f32 0.0, %v3929
    %3931 = vmatmul.f32.gmra.mxu0 %v2255
    %v3932 = vpop.f32.mrf.mxu0
    %v3933 = vadd.f32 0.0, %v3932
    %3934 = vmatmul.f32.gmra.mxu0 %v2256
    %v3935 = vpop.f32.mrf.mxu0
    %v3936 = vadd.f32 0.0, %v3935
    %3937 = vmatmul.f32.gmra.mxu0 %v2257
    %v3938 = vpop.f32.mrf.mxu0
    %v3939 = vadd.f32 0.0, %v3938
    %3940 = vmatmul.f32.gmra.mxu0 %v2258
    %v3941 = vpop.f32.mrf.mxu0
    %v3942 = vadd.f32 0.0, %v3941
    %3943 = vmatmul.f32.gmra.mxu0 %v2259
    %v3944 = vpop.f32.mrf.mxu0
    %v3945 = vadd.f32 0.0, %v3944
    %3946 = vmatmul.f32.gmra.mxu0 %v2260
    %v3947 = vpop.f32.mrf.mxu0
    %v3948 = vadd.f32 0.0, %v3947
    %3949 = vmatmul.f32.gmra.mxu0 %v2261
    %v3950 = vpop.f32.mrf.mxu0
    %v3951 = vadd.f32 0.0, %v3950
    %3952 = vmatmul.f32.gmra.mxu0 %v2262
    %v3953 = vpop.f32.mrf.mxu0
    %v3954 = vadd.f32 0.0, %v3953
    %3955 = vmatmul.f32.gmra.mxu0 %v2263
    %v3956 = vpop.f32.mrf.mxu0
    %v3957 = vadd.f32 0.0, %v3956
    %3958 = vmatmul.f32.gmra.mxu0 %v2264
    %v3959 = vpop.f32.mrf.mxu0
    %v3960 = vadd.f32 0.0, %v3959
    %3961 = vmatmul.f32.gmra.mxu0 %v2265
    %v3962 = vpop.f32.mrf.mxu0
    %v3963 = vadd.f32 0.0, %v3962
    %3964 = vdwg.mxu0
    %v3965 = vadd.f32 %v3650, %v3763
    %v3966 = vadd.f32 %v3651, %v3873
    %v3967 = vadd.f32 %v3652, %v3766
    %v3968 = vadd.f32 %v3653, %v3876
    %v3969 = vadd.f32 %v3654, %v3769
    %v3970 = vadd.f32 %v3655, %v3879
    %v3971 = vadd.f32 %v3656, %v3772
    %v3972 = vadd.f32 %v3657, %v3882
    %v3973 = vadd.f32 %v3658, %v3775
    %v3974 = vadd.f32 %v3659, %v3885
    %v3975 = vadd.f32 %v3660, %v3778
    %v3976 = vadd.f32 %v3661, %v3888
    %v3977 = vadd.f32 %v3662, %v3781
    %v3978 = vadd.f32 %v3663, %v3891
    %v3979 = vadd.f32 %v3664, %v3784
    %v3980 = vadd.f32 %v3665, %v3894
    %v3981 = vadd.f32 %v3666, %v3787
    %v3982 = vadd.f32 %v3667, %v3897
    %v3983 = vadd.f32 %v3668, %v3790
    %v3984 = vadd.f32 %v3669, %v3900
    %v3985 = vadd.f32 %v3670, %v3793
    %v3986 = vadd.f32 %v3671, %v3903
    %v3987 = vadd.f32 %v3672, %v3796
    %v3988 = vadd.f32 %v3673, %v3906
    %v3989 = vadd.f32 %v3674, %v3799
    %v3990 = vadd.f32 %v3675, %v3909
    %v3991 = vadd.f32 %v3676, %v3802
    %v3992 = vadd.f32 %v3677, %v3912
    %v3993 = vadd.f32 %v3678, %v3805
    %v3994 = vadd.f32 %v3679, %v3915
    %v3995 = vadd.f32 %v3680, %v3808
    %v3996 = vadd.f32 %v3681, %v3918
    %v3997 = vadd.f32 %v3682, %v3811
    %v3998 = vadd.f32 %v3683, %v3921
    %v3999 = vadd.f32 %v3684, %v3814
    %v4000 = vadd.f32 %v3685, %v3924
    %v4001 = vadd.f32 %v3686, %v3817
    %v4002 = vadd.f32 %v3687, %v3927
    %v4003 = vadd.f32 %v3688, %v3820
    %v4004 = vadd.f32 %v3689, %v3930
    %v4005 = vadd.f32 %v3690, %v3823
    %v4006 = vadd.f32 %v3691, %v3933
    %v4007 = vadd.f32 %v3692, %v3826
    %v4008 = vadd.f32 %v3693, %v3936
    %v4009 = vadd.f32 %v3694, %v3829
    %v4010 = vadd.f32 %v3695, %v3939
    %v4011 = vadd.f32 %v3696, %v3832
    %v4012 = vadd.f32 %v3697, %v3942
    %v4013 = vadd.f32 %v3698, %v3835
    %v4014 = vadd.f32 %v3699, %v3945
    %v4015 = vadd.f32 %v3700, %v3838
    %v4016 = vadd.f32 %v3701, %v3948
    %v4017 = vadd.f32 %v3702, %v3841
    %v4018 = vadd.f32 %v3703, %v3951
    %v4019 = vadd.f32 %v3704, %v3844
    %v4020 = vadd.f32 %v3705, %v3954
    %v4021 = vadd.f32 %v3706, %v3847
    %v4022 = vadd.f32 %v3707, %v3957
    %v4023 = vadd.f32 %v3708, %v3850
    %v4024 = vadd.f32 %v3709, %v3960
    %v4025 = vadd.f32 %v3710, %v3853
    %v4026 = vadd.f32 %v3711, %v3963
    %v4027 = vmax.f32 %v3965, %v3966
    %v4028 = vmax.f32 %v3967, %v3968
    %v4029 = vmax.f32 %v3969, %v3970
    %v4030 = vmax.f32 %v3971, %v3972
    %v4031 = vmax.f32 %v3973, %v3974
    %v4032 = vmax.f32 %v3975, %v3976
    %v4033 = vmax.f32 %v3977, %v3978
    %v4034 = vmax.f32 %v3979, %v3980
    %v4035 = vmax.f32 %v3981, %v3982
    %v4036 = vmax.f32 %v3983, %v3984
    %v4037 = vmax.f32 %v3985, %v3986
    %v4038 = vmax.f32 %v3987, %v3988
    %v4039 = vmax.f32 %v3989, %v3990
    %v4040 = vmax.f32 %v3991, %v3992
    %v4041 = vmax.f32 %v3993, %v3994
    %v4042 = vmax.f32 %v3995, %v3996
    %v4043 = vmax.f32 %v3997, %v3998
    %v4044 = vmax.f32 %v3999, %v4000
    %v4045 = vmax.f32 %v4001, %v4002
    %v4046 = vmax.f32 %v4003, %v4004
    %v4047 = vmax.f32 %v4005, %v4006
    %v4048 = vmax.f32 %v4007, %v4008
    %v4049 = vmax.f32 %v4009, %v4010
    %v4050 = vmax.f32 %v4011, %v4012
    %v4051 = vmax.f32 %v4013, %v4014
    %v4052 = vmax.f32 %v4015, %v4016
    %v4053 = vmax.f32 %v4017, %v4018
    %v4054 = vmax.f32 %v4019, %v4020
    %v4055 = vmax.f32 %v4021, %v4022
    %v4056 = vmax.f32 %v4023, %v4024
    %v4057 = vmax.f32 %v4025, %v4026
    %v4058 = vld [vmem:[%s5] sm:$0x1]
    %v4060 = vperm.slane %v4058, 0
    %v4062 = vadd.f32 %v4027, %v4060
    %v4063 = vadd.f32 %v4028, %v4060
    %v4064 = vadd.f32 %v4029, %v4060
    %v4065 = vadd.f32 %v4030, %v4060
    %v4066 = vadd.f32 %v4031, %v4060
    %v4067 = vadd.f32 %v4032, %v4060
    %v4068 = vadd.f32 %v4033, %v4060
    %v4069 = vadd.f32 %v4034, %v4060
    %v4070 = vadd.f32 %v4035, %v4060
    %v4071 = vadd.f32 %v4036, %v4060
    %v4072 = vadd.f32 %v4037, %v4060
    %v4073 = vadd.f32 %v4038, %v4060
    %v4074 = vadd.f32 %v4039, %v4060
    %v4075 = vadd.f32 %v4040, %v4060
    %v4076 = vadd.f32 %v4041, %v4060
    %v4077 = vadd.f32 %v4042, %v4060
    %v4078 = vadd.f32 %v4043, %v4060
    %v4079 = vadd.f32 %v4044, %v4060
    %v4080 = vadd.f32 %v4045, %v4060
    %v4081 = vadd.f32 %v4046, %v4060
    %v4082 = vadd.f32 %v4047, %v4060
    %v4083 = vadd.f32 %v4048, %v4060
    %v4084 = vadd.f32 %v4049, %v4060
    %v4085 = vadd.f32 %v4050, %v4060
    %v4086 = vadd.f32 %v4051, %v4060
    %v4087 = vadd.f32 %v4052, %v4060
    %v4088 = vadd.f32 %v4053, %v4060
    %v4089 = vadd.f32 %v4054, %v4060
    %v4090 = vadd.f32 %v4055, %v4060
    %v4091 = vadd.f32 %v4056, %v4060
    %v4092 = vadd.f32 %v4057, %v4060
    %v4093 = vmax.f32 %v4062, 0.0
    %v4094 = vmax.f32 %v4063, 0.0
    %v4095 = vmax.f32 %v4064, 0.0
    %v4096 = vmax.f32 %v4065, 0.0
    %v4097 = vmax.f32 %v4066, 0.0
    %v4098 = vmax.f32 %v4067, 0.0
    %v4099 = vmax.f32 %v4068, 0.0
    %v4100 = vmax.f32 %v4069, 0.0
    %v4101 = vmax.f32 %v4070, 0.0
    %v4102 = vmax.f32 %v4071, 0.0
    %v4103 = vmax.f32 %v4072, 0.0
    %v4104 = vmax.f32 %v4073, 0.0
    %v4105 = vmax.f32 %v4074, 0.0
    %v4106 = vmax.f32 %v4075, 0.0
    %v4107 = vmax.f32 %v4076, 0.0
    %v4108 = vmax.f32 %v4077, 0.0
    %v4109 = vmax.f32 %v4078, 0.0
    %v4110 = vmax.f32 %v4079, 0.0
    %v4111 = vmax.f32 %v4080, 0.0
    %v4112 = vmax.f32 %v4081, 0.0
    %v4113 = vmax.f32 %v4082, 0.0
    %v4114 = vmax.f32 %v4083, 0.0
    %v4115 = vmax.f32 %v4084, 0.0
    %v4116 = vmax.f32 %v4085, 0.0
    %v4117 = vmax.f32 %v4086, 0.0
    %v4118 = vmax.f32 %v4087, 0.0
    %v4119 = vmax.f32 %v4088, 0.0
    %v4120 = vmax.f32 %v4089, 0.0
    %v4121 = vmax.f32 %v4090, 0.0
    %v4122 = vmax.f32 %v4091, 0.0
    %v4123 = vmax.f32 %v4092, 0.0
    %v4155 = vrot.slane %v4093, 2
    %v4156 = vrot.slane %v4094, 2
    %v4157 = vsel %vm783, %v4155, %v4156
    %v4158 = vrot.slane %v4095, 2
    %v4159 = vsel %vm783, %v4156, %v4158
    %v4160 = vrot.slane %v4096, 2
    %v4161 = vsel %vm783, %v4158, %v4160
    %v4162 = vrot.slane %v4097, 2
    %v4163 = vsel %vm783, %v4160, %v4162
    %v4164 = vrot.slane %v4098, 2
    %v4165 = vsel %vm783, %v4162, %v4164
    %v4166 = vrot.slane %v4099, 2
    %v4167 = vsel %vm783, %v4164, %v4166
    %v4168 = vrot.slane %v4100, 2
    %v4169 = vsel %vm783, %v4166, %v4168
    %v4170 = vrot.slane %v4101, 2
    %v4171 = vsel %vm783, %v4168, %v4170
    %v4172 = vrot.slane %v4102, 2
    %v4173 = vsel %vm783, %v4170, %v4172
    %v4174 = vrot.slane %v4103, 2
    %v4175 = vsel %vm783, %v4172, %v4174
    %v4176 = vrot.slane %v4104, 2
    %v4177 = vsel %vm783, %v4174, %v4176
    %v4178 = vrot.slane %v4105, 2
    %v4179 = vsel %vm783, %v4176, %v4178
    %v4180 = vrot.slane %v4106, 2
    %v4181 = vsel %vm783, %v4178, %v4180
    %v4182 = vrot.slane %v4107, 2
    %v4183 = vsel %vm783, %v4180, %v4182
    %v4184 = vrot.slane %v4108, 2
    %v4185 = vsel %vm783, %v4182, %v4184
    %v4186 = vrot.slane %v4109, 2
    %v4187 = vsel %vm783, %v4184, %v4186
    %v4188 = vrot.slane %v4110, 2
    %v4189 = vsel %vm783, %v4186, %v4188
    %v4190 = vrot.slane %v4111, 2
    %v4191 = vsel %vm783, %v4188, %v4190
    %v4192 = vrot.slane %v4112, 2
    %v4193 = vsel %vm783, %v4190, %v4192
    %v4194 = vrot.slane %v4113, 2
    %v4195 = vsel %vm783, %v4192, %v4194
    %v4196 = vrot.slane %v4114, 2
    %v4197 = vsel %vm783, %v4194, %v4196
    %v4198 = vrot.slane %v4115, 2
    %v4199 = vsel %vm783, %v4196, %v4198
    %v4200 = vrot.slane %v4116, 2
    %v4201 = vsel %vm783, %v4198, %v4200
    %v4202 = vrot.slane %v4117, 2
    %v4203 = vsel %vm783, %v4200, %v4202
    %v4204 = vrot.slane %v4118, 2
    %v4205 = vsel %vm783, %v4202, %v4204
    %v4206 = vrot.slane %v4119, 2
    %v4207 = vsel %vm783, %v4204, %v4206
    %v4208 = vrot.slane %v4120, 2
    %v4209 = vsel %vm783, %v4206, %v4208
    %v4210 = vrot.slane %v4121, 2
    %v4211 = vsel %vm783, %v4208, %v4210
    %v4212 = vrot.slane %v4122, 2
    %v4213 = vsel %vm783, %v4210, %v4212
    %v4214 = vrot.slane %v4123, 2
    %v4215 = vsel %vm783, %v4212, %v4214
    %v4247 = vmax.f32 %v4093, %v4157
    %v4248 = vmax.f32 %v4094, %v4159
    %v4249 = vmax.f32 %v4095, %v4161
    %v4250 = vmax.f32 %v4096, %v4163
    %v4251 = vmax.f32 %v4097, %v4165
    %v4252 = vmax.f32 %v4098, %v4167
    %v4253 = vmax.f32 %v4099, %v4169
    %v4254 = vmax.f32 %v4100, %v4171
    %v4255 = vmax.f32 %v4101, %v4173
    %v4256 = vmax.f32 %v4102, %v4175
    %v4257 = vmax.f32 %v4103, %v4177
    %v4258 = vmax.f32 %v4104, %v4179
    %v4259 = vmax.f32 %v4105, %v4181
    %v4260 = vmax.f32 %v4106, %v4183
    %v4261 = vmax.f32 %v4107, %v4185
    %v4262 = vmax.f32 %v4108, %v4187
    %v4263 = vmax.f32 %v4109, %v4189
    %v4264 = vmax.f32 %v4110, %v4191
    %v4265 = vmax.f32 %v4111, %v4193
    %v4266 = vmax.f32 %v4112, %v4195
    %v4267 = vmax.f32 %v4113, %v4197
    %v4268 = vmax.f32 %v4114, %v4199
    %v4269 = vmax.f32 %v4115, %v4201
    %v4270 = vmax.f32 %v4116, %v4203
    %v4271 = vmax.f32 %v4117, %v4205
    %v4272 = vmax.f32 %v4118, %v4207
    %v4273 = vmax.f32 %v4119, %v4209
    %v4274 = vmax.f32 %v4120, %v4211
    %v4275 = vmax.f32 %v4121, %v4213
    %v4276 = vmax.f32 %v4122, %v4215
    %v4277 = vmax.f32 %v4123, %v4214
    %v4278 = vld [vmem:[%s1] sm:$0xff]
    %v4279 = vld [vmem:[%s1 + $0x8] sm:$0xff]
    %v4280 = vld [vmem:[%s1 + $0x10] sm:$0xff]
    %v4281 = vld [vmem:[%s1 + $0x18] sm:$0xff]
    %v4282 = vld [vmem:[%s1 + $0x20] sm:$0xff]
    %v4283 = vld [vmem:[%s1 + $0x28] sm:$0xff]
    %v4284 = vld [vmem:[%s1 + $0x30] sm:$0xff]
    %v4285 = vld [vmem:[%s1 + $0x38] sm:$0xff]
    %v4286 = vld [vmem:[%s1 + $0x40] sm:$0xff]
    %v4287 = vld [vmem:[%s1 + $0x48] sm:$0xff]
    %vm4288 = vcmask 924672
    %v4290 = vsel %vm4288, %v4279, 0
    %v4293 = vsel %vm4288, %v4281, 0
    %v4296 = vsel %vm4288, %v4283, 0
    %v4299 = vsel %vm4288, %v4285, 0
    %v4302 = vsel %vm4288, %v4287, 0
    %vm4304 = vcmask 1040384
    %v4306 = vsel %vm4304, %v4277, 0
    %4308 = vmatpush.msra.mxu0 %v4262
    %4309 = vmatpush.msra.mxu0 %v4261
    %4310 = vmatpush.msra.mxu0 %v4260
    %4311 = vmatpush.msra.mxu0 %v4259
    %4312 = vmatpush.msra.mxu0 %v4258
    %4313 = vmatpush.msra.mxu0 %v4257
    %4314 = vmatpush.msra.mxu0 %v4256
    %4315 = vmatpush.msra.mxu0 %v4255
    %4316 = vmatpush.msra.mxu0 %v4254
    %4317 = vmatpush.msra.mxu0 %v4253
    %4318 = vmatpush.msra.mxu0 %v4252
    %4319 = vmatpush.msra.mxu0 %v4251
    %4320 = vmatpush.msra.mxu0 %v4250
    %4321 = vmatpush.msra.mxu0 %v4249
    %4322 = vmatpush.msra.mxu0 %v4248
    %4323 = vmatpush.msra.mxu0 %v4247
    %4324 = vmatmul.f32.gmra.mxu0 %v4278
    %v4325 = vpop.f32.mrf.mxu0
    %v4326 = vadd.f32 0.0, %v4325
    %4327 = vmatmul.f32.gmra.mxu0 %v4280
    %v4328 = vpop.f32.mrf.mxu0
    %v4329 = vadd.f32 0.0, %v4328
    %4330 = vmatmul.f32.gmra.mxu0 %v4282
    %v4331 = vpop.f32.mrf.mxu0
    %v4332 = vadd.f32 0.0, %v4331
    %4333 = vmatmul.f32.gmra.mxu0 %v4284
    %v4334 = vpop.f32.mrf.mxu0
    %v4335 = vadd.f32 0.0, %v4334
    %4336 = vmatmul.f32.gmra.mxu0 %v4286
    %v4337 = vpop.f32.mrf.mxu0
    %v4338 = vadd.f32 0.0, %v4337
    %4339 = vdwg.mxu0
    %4340 = vmatpush.msra.mxu0 0.0
    %4341 = vmatpush.msra.mxu0 %v4306
    %4342 = vmatpush.msra.mxu0 %v4276
    %4343 = vmatpush.msra.mxu0 %v4275
    %4344 = vmatpush.msra.mxu0 %v4274
    %4345 = vmatpush.msra.mxu0 %v4273
    %4346 = vmatpush.msra.mxu0 %v4272
    %4347 = vmatpush.msra.mxu0 %v4271
    %4348 = vmatpush.msra.mxu0 %v4270
    %4349 = vmatpush.msra.mxu0 %v4269
    %4350 = vmatpush.msra.mxu0 %v4268
    %4351 = vmatpush.msra.mxu0 %v4267
    %4352 = vmatpush.msra.mxu0 %v4266
    %4353 = vmatpush.msra.mxu0 %v4265
    %4354 = vmatpush.msra.mxu0 %v4264
    %4355 = vmatpush.msra.mxu0 %v4263
    %4356 = vmatmul.f32.gmra.mxu0 %v4290
    %v4357 = vpop.f32.mrf.mxu0
    %v4358 = vadd.f32 %v4326, %v4357
    %4359 = vmatmul.f32.gmra.mxu0 %v4293
    %v4360 = vpop.f32.mrf.mxu0
    %v4361 = vadd.f32 %v4329, %v4360
    %4362 = vmatmul.f32.gmra.mxu0 %v4296
    %v4363 = vpop.f32.mrf.mxu0
    %v4364 = vadd.f32 %v4332, %v4363
    %4365 = vmatmul.f32.gmra.mxu0 %v4299
    %v4366 = vpop.f32.mrf.mxu0
    %v4367 = vadd.f32 %v4335, %v4366
    %4368 = vmatmul.f32.gmra.mxu0 %v4302
    %v4369 = vpop.f32.mrf.mxu0
    %v4370 = vadd.f32 %v4338, %v4369
    %4371 = vdwg.mxu0
    %v4372 = vld [vmem:[%s7] sm:$0x1]
    %v4373 = vld [vmem:[%s6] sm:$0xff]
    %v4374 = vld [vmem:[%s6 + $0x8] sm:$0xff]
    %v4375 = vld [vmem:[%s6 + $0x10] sm:$0xff]
    %v4376 = vld [vmem:[%s6 + $0x18] sm:$0xff]
    %v4377 = vld [vmem:[%s6 + $0x20] sm:$0xff]
    %v4378 = vld [vmem:[%s6 + $0x28] sm:$0xff]
    %v4379 = vld [vmem:[%s6 + $0x30] sm:$0xff]
    %v4380 = vld [vmem:[%s6 + $0x38] sm:$0xff]
    %v4381 = vld [vmem:[%s6 + $0x40] sm:$0xff]
    %v4382 = vld [vmem:[%s6 + $0x48] sm:$0xff]
    %v4383 = vld [vmem:[%s6 + $0x50] sm:$0xff]
    %v4384 = vld [vmem:[%s6 + $0x58] sm:$0xff]
    %v4385 = vld [vmem:[%s6 + $0x60] sm:$0xff]
    %v4386 = vld [vmem:[%s6 + $0x68] sm:$0xff]
    %v4387 = vld [vmem:[%s6 + $0x70] sm:$0xff]
    %v4388 = vld [vmem:[%s6 + $0x78] sm:$0xff]
    %4389 = vmatpush.msra.mxu0 %v4388
    %4390 = vmatpush.msra.mxu0 %v4387
    %4391 = vmatpush.msra.mxu0 %v4386
    %4392 = vmatpush.msra.mxu0 %v4385
    %4393 = vmatpush.msra.mxu0 %v4384
    %4394 = vmatpush.msra.mxu0 %v4383
    %4395 = vmatpush.msra.mxu0 %v4382
    %4396 = vmatpush.msra.mxu0 %v4381
    %4397 = vmatpush.msra.mxu0 %v4380
    %4398 = vmatpush.msra.mxu0 %v4379
    %4399 = vmatpush.msra.mxu0 %v4378
    %4400 = vmatpush.msra.mxu0 %v4377
    %4401 = vmatpush.msra.mxu0 %v4376
    %4402 = vmatpush.msra.mxu0 %v4375
    %4403 = vmatpush.msra.mxu0 %v4374
    %4404 = vmatpush.msra.mxu0 %v4373
    %4405 = vmatmul.f32.gmra.mxu0 %v4358
    %v4406 = vpop.f32.mrf.mxu0
    %v4407 = vadd.f32 0.0, %v4406
    %4408 = vdwg.mxu0
    %v4410 = vperm.slane %v4372, 0
    %v4412 = vadd.f32 %v4410, %v4407
    %s4413 = scalar_lea.vmem %s6, 128
    %v4414 = vld [vmem:[%s4413] sm:$0xff]
    %v4415 = vld [vmem:[%s4413 + $0x8] sm:$0xff]
    %v4416 = vld [vmem:[%s4413 + $0x10] sm:$0xff]
    %v4417 = vld [vmem:[%s4413 + $0x18] sm:$0xff]
    %v4418 = vld [vmem:[%s4413 + $0x20] sm:$0xff]
    %v4419 = vld [vmem:[%s4413 + $0x28] sm:$0xff]
    %v4420 = vld [vmem:[%s4413 + $0x30] sm:$0xff]
    %v4421 = vld [vmem:[%s4413 + $0x38] sm:$0xff]
    %v4422 = vld [vmem:[%s4413 + $0x40] sm:$0xff]
    %v4423 = vld [vmem:[%s4413 + $0x48] sm:$0xff]
    %v4424 = vld [vmem:[%s4413 + $0x50] sm:$0xff]
    %v4425 = vld [vmem:[%s4413 + $0x58] sm:$0xff]
    %v4426 = vld [vmem:[%s4413 + $0x60] sm:$0xff]
    %v4427 = vld [vmem:[%s4413 + $0x68] sm:$0xff]
    %v4428 = vld [vmem:[%s4413 + $0x70] sm:$0xff]
    %v4429 = vld [vmem:[%s4413 + $0x78] sm:$0xff]
    %4430 = vmatpush.msra.mxu0 %v4429
    %4431 = vmatpush.msra.mxu0 %v4428
    %4432 = vmatpush.msra.mxu0 %v4427
    %4433 = vmatpush.msra.mxu0 %v4426
    %4434 = vmatpush.msra.mxu0 %v4425
    %4435 = vmatpush.msra.mxu0 %v4424
    %4436 = vmatpush.msra.mxu0 %v4423
    %4437 = vmatpush.msra.mxu0 %v4422
    %4438 = vmatpush.msra.mxu0 %v4421
    %4439 = vmatpush.msra.mxu0 %v4420
    %4440 = vmatpush.msra.mxu0 %v4419
    %4441 = vmatpush.msra.mxu0 %v4418
    %4442 = vmatpush.msra.mxu0 %v4417
    %4443 = vmatpush.msra.mxu0 %v4416
    %4444 = vmatpush.msra.mxu0 %v4415
    %4445 = vmatpush.msra.mxu0 %v4414
    %4446 = vmatmul.f32.gmra.mxu0 %v4361
    %v4447 = vpop.f32.mrf.mxu0
    %v4448 = vadd.f32 0.0, %v4447
    %4449 = vdwg.mxu0
    %v4450 = vadd.f32 %v4412, %v4448
    %s4451 = scalar_lea.vmem %s6, 256
    %v4452 = vld [vmem:[%s4451] sm:$0xff]
    %v4453 = vld [vmem:[%s4451 + $0x8] sm:$0xff]
    %v4454 = vld [vmem:[%s4451 + $0x10] sm:$0xff]
    %v4455 = vld [vmem:[%s4451 + $0x18] sm:$0xff]
    %v4456 = vld [vmem:[%s4451 + $0x20] sm:$0xff]
    %v4457 = vld [vmem:[%s4451 + $0x28] sm:$0xff]
    %v4458 = vld [vmem:[%s4451 + $0x30] sm:$0xff]
    %v4459 = vld [vmem:[%s4451 + $0x38] sm:$0xff]
    %v4460 = vld [vmem:[%s4451 + $0x40] sm:$0xff]
    %v4461 = vld [vmem:[%s4451 + $0x48] sm:$0xff]
    %v4462 = vld [vmem:[%s4451 + $0x50] sm:$0xff]
    %v4463 = vld [vmem:[%s4451 + $0x58] sm:$0xff]
    %v4464 = vld [vmem:[%s4451 + $0x60] sm:$0xff]
    %v4465 = vld [vmem:[%s4451 + $0x68] sm:$0xff]
    %v4466 = vld [vmem:[%s4451 + $0x70] sm:$0xff]
    %v4467 = vld [vmem:[%s4451 + $0x78] sm:$0xff]
    %4468 = vmatpush.msra.mxu0 %v4467
    %4469 = vmatpush.msra.mxu0 %v4466
    %4470 = vmatpush.msra.mxu0 %v4465
    %4471 = vmatpush.msra.mxu0 %v4464
    %4472 = vmatpush.msra.mxu0 %v4463
    %4473 = vmatpush.msra.mxu0 %v4462
    %4474 = vmatpush.msra.mxu0 %v4461
    %4475 = vmatpush.msra.mxu0 %v4460
    %4476 = vmatpush.msra.mxu0 %v4459
    %4477 = vmatpush.msra.mxu0 %v4458
    %4478 = vmatpush.msra.mxu0 %v4457
    %4479 = vmatpush.msra.mxu0 %v4456
    %4480 = vmatpush.msra.mxu0 %v4455
    %4481 = vmatpush.msra.mxu0 %v4454
    %4482 = vmatpush.msra.mxu0 %v4453
    %4483 = vmatpush.msra.mxu0 %v4452
    %4484 = vmatmul.f32.gmra.mxu0 %v4364
    %v4485 = vpop.f32.mrf.mxu0
    %v4486 = vadd.f32 0.0, %v4485
    %4487 = vdwg.mxu0
    %v4488 = vadd.f32 %v4450, %v4486
    %s4489 = scalar_lea.vmem %s6, 384
    %v4490 = vld [vmem:[%s4489] sm:$0xff]
    %v4491 = vld [vmem:[%s4489 + $0x8] sm:$0xff]
    %v4492 = vld [vmem:[%s4489 + $0x10] sm:$0xff]
    %v4493 = vld [vmem:[%s4489 + $0x18] sm:$0xff]
    %v4494 = vld [vmem:[%s4489 + $0x20] sm:$0xff]
    %v4495 = vld [vmem:[%s4489 + $0x28] sm:$0xff]
    %v4496 = vld [vmem:[%s4489 + $0x30] sm:$0xff]
    %v4497 = vld [vmem:[%s4489 + $0x38] sm:$0xff]
    %v4498 = vld [vmem:[%s4489 + $0x40] sm:$0xff]
    %v4499 = vld [vmem:[%s4489 + $0x48] sm:$0xff]
    %v4500 = vld [vmem:[%s4489 + $0x50] sm:$0xff]
    %v4501 = vld [vmem:[%s4489 + $0x58] sm:$0xff]
    %v4502 = vld [vmem:[%s4489 + $0x60] sm:$0xff]
    %v4503 = vld [vmem:[%s4489 + $0x68] sm:$0xff]
    %v4504 = vld [vmem:[%s4489 + $0x70] sm:$0xff]
    %v4505 = vld [vmem:[%s4489 + $0x78] sm:$0xff]
    %4506 = vmatpush.msra.mxu0 %v4505
    %4507 = vmatpush.msra.mxu0 %v4504
    %4508 = vmatpush.msra.mxu0 %v4503
    %4509 = vmatpush.msra.mxu0 %v4502
    %4510 = vmatpush.msra.mxu0 %v4501
    %4511 = vmatpush.msra.mxu0 %v4500
    %4512 = vmatpush.msra.mxu0 %v4499
    %4513 = vmatpush.msra.mxu0 %v4498
    %4514 = vmatpush.msra.mxu0 %v4497
    %4515 = vmatpush.msra.mxu0 %v4496
    %4516 = vmatpush.msra.mxu0 %v4495
    %4517 = vmatpush.msra.mxu0 %v4494
    %4518 = vmatpush.msra.mxu0 %v4493
    %4519 = vmatpush.msra.mxu0 %v4492
    %4520 = vmatpush.msra.mxu0 %v4491
    %4521 = vmatpush.msra.mxu0 %v4490
    %4522 = vmatmul.f32.gmra.mxu0 %v4367
    %v4523 = vpop.f32.mrf.mxu0
    %v4524 = vadd.f32 0.0, %v4523
    %4525 = vdwg.mxu0
    %v4526 = vadd.f32 %v4488, %v4524
    %s4527 = scalar_lea.vmem %s6, 512
    %v4528 = vld [vmem:[%s4527] sm:$0xff]
    %v4529 = vld [vmem:[%s4527 + $0x8] sm:$0xff]
    %v4530 = vld [vmem:[%s4527 + $0x10] sm:$0xff]
    %v4531 = vld [vmem:[%s4527 + $0x18] sm:$0xff]
    %v4532 = vld [vmem:[%s4527 + $0x20] sm:$0xff]
    %v4533 = vld [vmem:[%s4527 + $0x28] sm:$0xff]
    %v4534 = vld [vmem:[%s4527 + $0x30] sm:$0xff]
    %v4535 = vld [vmem:[%s4527 + $0x38] sm:$0xff]
    %v4536 = vld [vmem:[%s4527 + $0x40] sm:$0xff]
    %v4537 = vld [vmem:[%s4527 + $0x48] sm:$0xff]
    %v4538 = vld [vmem:[%s4527 + $0x50] sm:$0xff]
    %v4539 = vld [vmem:[%s4527 + $0x58] sm:$0xff]
    %v4540 = vld [vmem:[%s4527 + $0x60] sm:$0xff]
    %v4541 = vld [vmem:[%s4527 + $0x68] sm:$0xff]
    %v4542 = vld [vmem:[%s4527 + $0x70] sm:$0xff]
    %v4543 = vld [vmem:[%s4527 + $0x78] sm:$0xff]
    %4544 = vmatpush.msra.mxu0 %v4543
    %4545 = vmatpush.msra.mxu0 %v4542
    %4546 = vmatpush.msra.mxu0 %v4541
    %4547 = vmatpush.msra.mxu0 %v4540
    %4548 = vmatpush.msra.mxu0 %v4539
    %4549 = vmatpush.msra.mxu0 %v4538
    %4550 = vmatpush.msra.mxu0 %v4537
    %4551 = vmatpush.msra.mxu0 %v4536
    %4552 = vmatpush.msra.mxu0 %v4535
    %4553 = vmatpush.msra.mxu0 %v4534
    %4554 = vmatpush.msra.mxu0 %v4533
    %4555 = vmatpush.msra.mxu0 %v4532
    %4556 = vmatpush.msra.mxu0 %v4531
    %4557 = vmatpush.msra.mxu0 %v4530
    %4558 = vmatpush.msra.mxu0 %v4529
    %4559 = vmatpush.msra.mxu0 %v4528
    %4560 = vmatmul.f32.gmra.mxu0 %v4370
    %v4561 = vpop.f32.mrf.mxu0
    %v4562 = vadd.f32 0.0, %v4561
    %4563 = vdwg.mxu0
    %v4564 = vadd.f32 %v4526, %v4562
    %v4565 = vmax.f32 %v4564, 0.0
    %v4566 = vld [vmem:[%s8] sm:$0xff]
    %v4567 = vld [vmem:[%s8 + $0x8] sm:$0xff]
    %v4568 = vld [vmem:[%s8 + $0x10] sm:$0xff]
    %v4569 = vld [vmem:[%s8 + $0x18] sm:$0xff]
    %v4570 = vld [vmem:[%s8 + $0x20] sm:$0xff]
    %v4571 = vld [vmem:[%s8 + $0x28] sm:$0xff]
    %v4572 = vld [vmem:[%s8 + $0x30] sm:$0xff]
    %v4573 = vld [vmem:[%s8 + $0x38] sm:$0xff]
    %v4574 = vld [vmem:[%s8 + $0x40] sm:$0xff]
    %v4575 = vld [vmem:[%s8 + $0x48] sm:$0xff]
    %v4576 = vld [vmem:[%s8 + $0x50] sm:$0xff]
    %v4577 = vld [vmem:[%s8 + $0x58] sm:$0xff]
    %v4578 = vld [vmem:[%s8 + $0x60] sm:$0xff]
    %v4579 = vld [vmem:[%s8 + $0x68] sm:$0xff]
    %v4580 = vld [vmem:[%s8 + $0x70] sm:$0xff]
    %v4581 = vld [vmem:[%s8 + $0x78] sm:$0xff]
    %v4582 = vld [vmem:[%s9] sm:$0x1]
    %v4584 = vperm.slane %v4582, 0
    %4586 = vmatpush.msra.mxu0 %v4581
    %4587 = vmatpush.msra.mxu0 %v4580
    %4588 = vmatpush.msra.mxu0 %v4579
    %4589 = vmatpush.msra.mxu0 %v4578
    %4590 = vmatpush.msra.mxu0 %v4577
    %4591 = vmatpush.msra.mxu0 %v4576
    %4592 = vmatpush.msra.mxu0 %v4575
    %4593 = vmatpush.msra.mxu0 %v4574
    %4594 = vmatpush.msra.mxu0 %v4573
    %4595 = vmatpush.msra.mxu0 %v4572
    %4596 = vmatpush.msra.mxu0 %v4571
    %4597 = vmatpush.msra.mxu0 %v4570
    %4598 = vmatpush.msra.mxu0 %v4569
    %4599 = vmatpush.msra.mxu0 %v4568
    %4600 = vmatpush.msra.mxu0 %v4567
    %4601 = vmatpush.msra.mxu0 %v4566
    %4602 = vmatmul.f32.gmra.mxu0 %v4565
    %v4603 = vpop.f32.mrf.mxu0
    %v4604 = vadd.f32 %v4584, %v4603
    %4605 = vdwg.mxu0
    %v4606 = vmax.f32 %v4604, 0.0
    %v4607 = vld [vmem:[%s10] sm:$0xff]
    %v4608 = vld [vmem:[%s10 + $0x8] sm:$0xff]
    %v4609 = vld [vmem:[%s10 + $0x10] sm:$0xff]
    %v4610 = vld [vmem:[%s10 + $0x18] sm:$0xff]
    %v4611 = vld [vmem:[%s10 + $0x20] sm:$0xff]
    %v4612 = vld [vmem:[%s10 + $0x28] sm:$0xff]
    %v4613 = vld [vmem:[%s10 + $0x30] sm:$0xff]
    %v4614 = vld [vmem:[%s10 + $0x38] sm:$0xff]
    %v4615 = vld [vmem:[%s10 + $0x40] sm:$0xff]
    %v4616 = vld [vmem:[%s10 + $0x48] sm:$0xff]
    %v4617 = vld [vmem:[%s10 + $0x50] sm:$0xff]
    %v4618 = vld [vmem:[%s10 + $0x58] sm:$0xff]
    %v4619 = vld [vmem:[%s10 + $0x60] sm:$0xff]
    %v4620 = vld [vmem:[%s10 + $0x68] sm:$0xff]
    %v4621 = vld [vmem:[%s10 + $0x70] sm:$0xff]
    %v4622 = vld [vmem:[%s10 + $0x78] sm:$0xff]
    %v4623 = vld [vmem:[%s11] sm:$0x1]
    %v4625 = vperm.slane %v4623, 0
    %4627 = vmatpush.msra.mxu0 %v4622
    %4628 = vmatpush.msra.mxu0 %v4621
    %4629 = vmatpush.msra.mxu0 %v4620
    %4630 = vmatpush.msra.mxu0 %v4619
    %4631 = vmatpush.msra.mxu0 %v4618
    %4632 = vmatpush.msra.mxu0 %v4617
    %4633 = vmatpush.msra.mxu0 %v4616
    %4634 = vmatpush.msra.mxu0 %v4615
    %4635 = vmatpush.msra.mxu0 %v4614
    %4636 = vmatpush.msra.mxu0 %v4613
    %4637 = vmatpush.msra.mxu0 %v4612
    %4638 = vmatpush.msra.mxu0 %v4611
    %4639 = vmatpush.msra.mxu0 %v4610
    %4640 = vmatpush.msra.mxu0 %v4609
    %4641 = vmatpush.msra.mxu0 %v4608
    %4642 = vmatpush.msra.mxu0 %v4607
    %4643 = vmatmul.f32.gmra.mxu0 %v4606
    %v4644 = vpop.f32.mrf.mxu0
    %v4645 = vadd.f32 %v4625, %v4644
    %4646 = vdwg.mxu0
    %4647 = vst [vmem:[%s12] sm:$0xff] %v4645
    // Predicated region
    $region58: #{lenet_forward.1} parent=1 // pred_check
      _
    $region59: #{lenet_forward.1} parent=1 // pred_check_branch
      %4649 = sbr.rel (0) target = $region61
    $region60: #{lenet_forward.1} parent=1 // pred_region
      _
    $region61: #{lenet_forward.1} parent=1 // pred_fallthru
      _
    // Predicated region
    $region62: #{lenet_forward.1} parent=1 // pred_check
      _
    $region63: #{lenet_forward.1} parent=1 // pred_check_branch
      %4651 = sbr.rel (0) target = $region65
    $region64: #{lenet_forward.1} parent=1 // pred_region
      _
    $region65: #{lenet_forward.1} parent=1 // pred_fallthru
      _
    %4652 = vsyncpa [#allocation3], 1
    %4653 = vsyncpa [#allocation5], 1

</llo_original>
